<compile_context>
chip_gen: v7x
topology: tpu7x:2x2x1
jax: 0.10.0
libtpu: 0.0.40
codegen_flags: <defaults>
</compile_context>

<pallas_src>
import functools

import numpy as np
import jax
import jax.numpy as jnp
from jax.experimental import pallas as pl
from jax.experimental.pallas import tpu as pltpu

SQRT_HALF = 0.7071067811865476
_PAD = 8  # sublane-aligned zero border of the conv-tap scratch


def _round_up(x, m):
    return (x + m - 1) // m * m


def _sigmoid(x):
    # sigmoid(x) == 0.5*tanh(0.5*x) + 0.5: one EUP transcendental per element.
    return 0.5 * jnp.tanh(0.5 * x) + 0.5


# ---------------------------------------------------------------------------
# Pallas kernel: one (batch, time-tile) of the Converter per grid step
# ---------------------------------------------------------------------------
def converter_kernel(xl_ref, xm_ref, xr_ref, w1_ref, b1_ref, wgA_ref, bgA_ref,
                     wgB_ref, bgB_ref, wf_ref, bf_ref, o_ref, hp_ref,
                     *, T, TT, HALO, KA, dA, KB, dB, cdtype):
    C = w1_ref.shape[1]
    L = TT + 2 * HALO

    # Global time index of window row 0, and a scalar "this tile touches the
    # sequence boundary" predicate (true only for the first / last tiles).
    base = pl.program_id(1) * TT - HALO
    needs_mask = jnp.logical_or(base < 0, base + L > T)

    # Zero the 8-row borders of the tap scratch once per grid step (taps that
    # fall outside the halo'd window read these rows; the affected output rows
    # all lie inside the discarded halo).
    hp_ref[0:_PAD, :] = jnp.zeros((_PAD, C), cdtype)
    hp_ref[_PAD + L:_PAD + L + _PAD, :] = jnp.zeros((_PAD, C), cdtype)

    def store_conv_input(h):
        # Write the (boundary-masked) activations into the aligned interior of
        # the scratch.  Interior tiles skip the iota/compare/select entirely.
        @pl.when(needs_mask)
        def _():
            row = jax.lax.broadcasted_iota(jnp.int32, (L, C), 0) + base
            valid = jnp.logical_and(row >= 0, row < T)
            hp_ref[_PAD:_PAD + L, :] = jnp.where(valid, h, 0.0).astype(cdtype)

        @pl.when(jnp.logical_not(needs_mask))
        def _():
            hp_ref[_PAD:_PAD + L, :] = h.astype(cdtype)

    def glu(h, w_fused, bg, K, d):
        # Non-causal Conv1dGLU + residual; the K taps fused into one matmul.
        # tap k of output row t reads scratch row (_PAD + t) + k*d - p.
        p = (K - 1) // 2 * d
        store_conv_input(h)
        taps = [hp_ref[_PAD - p + k * d:_PAD - p + k * d + L, :] for k in range(K)]
        hcat = jnp.concatenate(taps, axis=1)                       # (L, K*C)
        acc = jnp.dot(hcat, w_fused, preferred_element_type=jnp.float32) + bg
        a = acc[:, :C]
        g = acc[:, C:]
        return (a * _sigmoid(g) + h) * SQRT_HALF

    # Conv1D(in_dim -> C, k=1)  ==  matmul over the halo'd window.
    x = jnp.concatenate([xl_ref[0], xm_ref[0], xr_ref[0]], axis=0)  # (L, in_pad)
    h = jnp.dot(x, w1_ref[...], preferred_element_type=jnp.float32) + b1_ref[...]

    # Conv1DGLU, kernel=3, dilation=3
    h = glu(h, wgA_ref[...], bgA_ref[...], KA, dA)

    # n_stack x Conv1DGLU, kernel=5, dilation=1
    for i in range(wgB_ref.shape[0]):
        h = glu(h, wgB_ref[i], bgB_ref[i], KB, dB)

    # Conv1D(C -> out_pad, k=1) + sigmoid on the central TT rows only.
    hc = h[HALO:HALO + TT, :].astype(cdtype)
    y = jnp.dot(hc, wf_ref[...], preferred_element_type=jnp.float32) + bf_ref[...]
    o_ref[0] = _sigmoid(y).astype(o_ref.dtype)


# ---------------------------------------------------------------------------
# Wrapper: halo via extra BlockSpecs on the same padded input, lane-dense
# padded channels, bf16 MXU operands, f32 math everywhere else.
# ---------------------------------------------------------------------------
def converter_forward(x, params, *, compute_dtype=jnp.bfloat16, time_tile=1024,
                      out_dtype=jnp.float32):
    B, T, in_dim = x.shape
    C = params["w1"].shape[1]
    out_dim = params["wf"].shape[1]
    KA = params["wgA"].shape[0]
    n_stack, KB = params["wgB"].shape[0], params["wgB"].shape[1]
    dA, dB = 3, 1

    # Receptive-field halo of the GLU stack, rounded up to a sublane multiple.
    halo_rows = (KA - 1) // 2 * dA + n_stack * ((KB - 1) // 2 * dB)   # = 11
    HALO = _round_up(halo_rows, 8)                                    # = 16

    # Time tile: multiple of HALO so the halo blocks are block-aligned.  When
    # B == 1 keep >= 2 time tiles so the "parallel" grid can span both
    # TensorCores on v7x.
    TT = min(_round_up(time_tile, HALO), _round_up(T, HALO))
    if B == 1:
        TT = min(TT, max(HALO, _round_up((T + 1) // 2, HALO)))
    nT = pl.cdiv(T, TT)
    Tpad = nT * TT
    R = TT // HALO
    L = TT + 2 * HALO

    in_pad = _round_up(in_dim, 128)
    out_pad = _round_up(out_dim, 128)

    # Single padded copy of the input (no per-tile HBM duplication): pad time on
    # the right so the last tile + its right halo exist, pad channels to a
    # lane-dense 128 (zero contraction rows -> numerically exact).
    xp = jnp.pad(x, ((0, 0), (0, Tpad + HALO - T), (0, in_pad - in_dim)))
    xp = xp.astype(compute_dtype)

    # Weights: compute-dtype matmul operands, conv taps fused along the
    # contraction dim, f32 biases, lane-dense (128-padded) projections.
    w1 = jnp.pad(params["w1"], ((0, in_pad - in_dim), (0, 0))).astype(compute_dtype)
    b1 = params["b1"].astype(jnp.float32)                                # (1, C)
    wgA = params["wgA"].reshape(KA * C, 2 * C).astype(compute_dtype)     # (3C, 2C)
    bgA = params["bgA"].astype(jnp.float32)                              # (1, 2C)
    wgB = params["wgB"].reshape(n_stack, KB * C, 2 * C).astype(compute_dtype)
    bgB = params["bgB"].astype(jnp.float32)                              # (ns,1,2C)
    wf = jnp.pad(params["wf"], ((0, 0), (0, out_pad - out_dim))).astype(compute_dtype)
    bf = jnp.pad(params["bf"], ((0, 0), (0, out_pad - out_dim))).astype(jnp.float32)

    kernel = functools.partial(
        converter_kernel, T=T, TT=TT, HALO=HALO,
        KA=KA, dA=dA, KB=KB, dB=dB, cdtype=compute_dtype)

    # The padded input is passed three times (same HBM buffer): an auto-pipelined
    # main block plus left/right halo blocks.  Edge tiles clamp to an in-range
    # block; the in-kernel mask zeroes anything with a time index outside [0, T).
    in_specs = [
        pl.BlockSpec((1, HALO, in_pad),
                     lambda b, t: (b, jnp.maximum(t * R - 1, 0), 0)),
        pl.BlockSpec((1, TT, in_pad), lambda b, t: (b, t, 0)),
        pl.BlockSpec((1, HALO, in_pad), lambda b, t: (b, (t + 1) * R, 0)),
        pl.BlockSpec(w1.shape, lambda b, t: (0, 0)),
        pl.BlockSpec(b1.shape, lambda b, t: (0, 0)),
        pl.BlockSpec(wgA.shape, lambda b, t: (0, 0)),
        pl.BlockSpec(bgA.shape, lambda b, t: (0, 0)),
        pl.BlockSpec(wgB.shape, lambda b, t: (0, 0, 0)),
        pl.BlockSpec(bgB.shape, lambda b, t: (0, 0, 0)),
        pl.BlockSpec(wf.shape, lambda b, t: (0, 0)),
        pl.BlockSpec(bf.shape, lambda b, t: (0, 0)),
    ]
    out_specs = pl.BlockSpec((1, TT, out_pad), lambda b, t: (b, t, 0))

    out = pl.pallas_call(
        kernel,
        out_shape=jax.ShapeDtypeStruct((B, Tpad, out_pad), out_dtype),
        grid=(B, nT),
        in_specs=in_specs,
        out_specs=out_specs,
        scratch_shapes=[pltpu.VMEM((L + 2 * _PAD, C), compute_dtype)],
        compiler_params=pltpu.CompilerParams(
            dimension_semantics=("parallel", "parallel"),
            vmem_limit_bytes=48 * 1024 * 1024,
        ),
    )(xp, xp, xp, w1, b1, wgA, bgA, wgB, bgB, wf, bf)

    return out[:, :T, :out_dim]


# ---------------------------------------------------------------------------
# Deterministic parameter init (PyTorch conv weight layout (out, in, K),
# transposed to (K, in, out) for the channel-last kernel).
# ---------------------------------------------------------------------------
def init_params(key, in_dim, C, out_dim, n_stack=4, scale=0.08):
    ks = jax.random.split(key, 8)
    # Conv1D(in_dim, C, k=1): torch weight (C, in_dim, 1)
    w1_t = jax.random.normal(ks[0], (C, in_dim, 1), jnp.float32) * scale
    b1 = jax.random.normal(ks[1], (1, C), jnp.float32) * scale
    w1 = jnp.transpose(w1_t[:, :, 0])                          # (in_dim, C)
    # Conv1DGLU(C, C, k=3, d=3): torch weight (2C, C, 3)
    wgA_t = jax.random.normal(ks[2], (2 * C, C, 3), jnp.float32) * scale
    bgA = jax.random.normal(ks[3], (1, 2 * C), jnp.float32) * scale
    wgA = jnp.transpose(wgA_t, (2, 1, 0))                      # (3, C, 2C)
    # n_stack x Conv1DGLU(C, C, k=5, d=1): torch weight (2C, C, 5) each
    wgB_t = jax.random.normal(ks[4], (n_stack, 2 * C, C, 5), jnp.float32) * scale
    bgB = jax.random.normal(ks[5], (n_stack, 1, 2 * C), jnp.float32) * scale
    wgB = jnp.transpose(wgB_t, (0, 3, 2, 1))                   # (n_stack, 5, C, 2C)
    # Conv1D(C, out_dim, k=1): torch weight (out_dim, C, 1)
    wf_t = jax.random.normal(ks[6], (out_dim, C, 1), jnp.float32) * scale
    bf = jax.random.normal(ks[7], (1, out_dim), jnp.float32) * scale
    wf = jnp.transpose(wf_t[:, :, 0])                          # (C, out_dim)
    return dict(w1=w1, b1=b1, wgA=wgA, bgA=bgA, wgB=wgB, bgB=bgB, wf=wf, bf=bf)


# ---------------------------------------------------------------------------
# Pure-JAX reference (PyTorch conv1d cross-correlation + per-layer zero padding).
# Matmul operands are rounded to `compute_dtype` exactly like the kernel; all
# accumulation / elementwise math stays f32.
# ---------------------------------------------------------------------------
def _ref_glu(h, wg, bg, d, cd):
    B, T, C = h.shape
    K = wg.shape[0]
    p = (K - 1) // 2 * d
    hp = jnp.pad(h.astype(cd), ((0, 0), (p, p), (0, 0)))
    acc = jnp.zeros((B, T, 2 * C), jnp.float32) + bg
    for k in range(K):
        acc = acc + jnp.einsum("btc,cd->btd", hp[:, k * d:k * d + T, :],
                               wg[k].astype(cd),
                               preferred_element_type=jnp.float32,
                               precision=jax.lax.Precision.HIGHEST)
    a, g = acc[..., :C], acc[..., C:]
    return (a * jax.nn.sigmoid(g) + h) * SQRT_HALF


def ref_forward(x, params, compute_dtype=jnp.float32):
    cd = compute_dtype
    hi = jax.lax.Precision.HIGHEST
    h = jnp.einsum("bti,ic->btc", x.astype(cd), params["w1"].astype(cd),
                   preferred_element_type=jnp.float32, precision=hi) + params["b1"]
    h = _ref_glu(h, params["wgA"], params["bgA"], d=3, cd=cd)
    for i in range(params["wgB"].shape[0]):
        h = _ref_glu(h, params["wgB"][i], params["bgB"][i], d=1, cd=cd)
    y = jnp.einsum("btc,co->bto", h.astype(cd), params["wf"].astype(cd),
                   preferred_element_type=jnp.float32, precision=hi) + params["bf"]
    return jax.nn.sigmoid(y)


if __name__ == "__main__":
    key = jax.random.PRNGKey(0)
    B, T, in_dim, C, out_dim = 2, 40, 32, 128, 80   # small synthetic shapes
    kx, kp = jax.random.split(key)
    x = jax.random.normal(kx, (B, T, in_dim), jnp.float32)     # (B, T, in_dim)
    params = init_params(kp, in_dim, C, out_dim)

    ref_f32 = ref_forward(x, params, compute_dtype=jnp.float32)

    # 1) f32 path, single time tile covering the whole (padded) sequence:
    #    checks conv / GLU / boundary-mask semantics inside one tile.
    out_f32 = jax.block_until_ready(
        converter_forward(x, params, compute_dtype=jnp.float32))
    assert out_f32.shape == (B, T, out_dim)
    np.testing.assert_allclose(np.asarray(out_f32), np.asarray(ref_f32),
                               rtol=2e-3, atol=2e-3)

    # 2) f32 path, forced multi-tile (time_tile=16 -> 3 tiles, T not a multiple
    #    of the tile): exercises the halo BlockSpecs, the edge-clamped index
    #    maps and the boundary masks across tile seams.
    out_mt = jax.block_until_ready(
        converter_forward(x, params, compute_dtype=jnp.float32, time_tile=16))
    np.testing.assert_allclose(np.asarray(out_mt), np.asarray(ref_f32),
                               rtol=2e-3, atol=2e-3)

    # 3) bf16-on-MXU path (recommended production config).
    out_bf16 = jax.block_until_ready(
        converter_forward(x, params, compute_dtype=jnp.bfloat16))
    ref_bf16 = ref_forward(x, params, compute_dtype=jnp.bfloat16)
    np.testing.assert_allclose(np.asarray(out_bf16), np.asarray(ref_bf16),
                               rtol=2e-3, atol=2e-3)

    print("KERNEL_OK")
</pallas_src>

<mosaic_0001>
module attributes {stable_mosaic.version = 11 : i64} {
  func.func @converter_kernel(%arg0: i32, %arg1: i32, %arg2: memref<1x16x128xf32, #tpu.memory_space<vmem>>, %arg3: memref<1x48x128xf32, #tpu.memory_space<vmem>>, %arg4: memref<1x16x128xf32, #tpu.memory_space<vmem>>, %arg5: memref<128x128xf32, #tpu.memory_space<vmem>>, %arg6: memref<1x128xf32, #tpu.memory_space<vmem>>, %arg7: memref<384x256xf32, #tpu.memory_space<vmem>>, %arg8: memref<1x256xf32, #tpu.memory_space<vmem>>, %arg9: memref<4x640x256xf32, #tpu.memory_space<vmem>>, %arg10: memref<4x1x256xf32, #tpu.memory_space<vmem>>, %arg11: memref<128x128xf32, #tpu.memory_space<vmem>>, %arg12: memref<1x128xf32, #tpu.memory_space<vmem>>, %arg13: memref<1x48x128xf32, #tpu.memory_space<vmem>>, %arg14: memref<96x128xf32, #tpu.memory_space<vmem>>) attributes {dimension_semantics = [#tpu.dimension_semantics<parallel>, #tpu.dimension_semantics<parallel>], iteration_bounds = array<i64: 2, 1>, scalar_prefetch = 0 : i64, scratch_operands = 1 : i64, tpu.core_type = #tpu.core_type<tc>, window_params = [{transform_indices = @transform_0, window_bounds = array<i64: 1, 16, 128>}, {transform_indices = @transform_1, window_bounds = array<i64: 1, 48, 128>}, {transform_indices = @transform_2, window_bounds = array<i64: 1, 16, 128>}, {pipeline_mode = #tpu.pipeline_mode<synchronous>, transform_indices = @transform_3, window_bounds = array<i64: 128, 128>}, {pipeline_mode = #tpu.pipeline_mode<synchronous>, transform_indices = @transform_4, window_bounds = array<i64: 1, 128>}, {pipeline_mode = #tpu.pipeline_mode<synchronous>, transform_indices = @transform_5, window_bounds = array<i64: 384, 256>}, {pipeline_mode = #tpu.pipeline_mode<synchronous>, transform_indices = @transform_6, window_bounds = array<i64: 1, 256>}, {pipeline_mode = #tpu.pipeline_mode<synchronous>, transform_indices = @transform_7, window_bounds = array<i64: 4, 640, 256>}, {pipeline_mode = #tpu.pipeline_mode<synchronous>, transform_indices = @transform_8, window_bounds = array<i64: 4, 1, 256>}, {pipeline_mode = #tpu.pipeline_mode<synchronous>, transform_indices = @transform_9, window_bounds = array<i64: 128, 128>}, {pipeline_mode = #tpu.pipeline_mode<synchronous>, transform_indices = @transform_10, window_bounds = array<i64: 1, 128>}, {transform_indices = @transform_11, window_bounds = array<i64: 1, 48, 128>}]} {
    %c48_i32 = arith.constant 48 : i32
    %0 = arith.muli %arg1, %c48_i32 : i32
    %c16_i32 = arith.constant 16 : i32
    %1 = arith.subi %0, %c16_i32 : i32
    %c0_i32 = arith.constant 0 : i32
    %2 = arith.cmpi slt, %1, %c0_i32 : i32
    %c80_i32 = arith.constant 80 : i32
    %3 = arith.addi %1, %c80_i32 : i32
    %c40_i32 = arith.constant 40 : i32
    %4 = arith.cmpi sgt, %3, %c40_i32 : i32
    %5 = arith.ori %2, %4 : i1
    %cst = arith.constant 0.000000e+00 : f32
    %6 = vector.broadcast %cst : f32 to vector<8x128xf32>
    %c0 = arith.constant 0 : index
    %c0_0 = arith.constant 0 : index
    %7 = vector.load %arg14[%c0, %c0_0] : memref<96x128xf32, #tpu.memory_space<vmem>>, vector<8x128xf32>
    tpu.vector_store %arg14[%c0, %c0_0], %6 {strides = array<i32>} : memref<96x128xf32, #tpu.memory_space<vmem>>, vector<8x128xf32>,
    %cst_1 = arith.constant 0.000000e+00 : f32
    %8 = vector.broadcast %cst_1 : f32 to vector<8x128xf32>
    %c88 = arith.constant 88 : index
    %c0_2 = arith.constant 0 : index
    %9 = vector.load %arg14[%c88, %c0_2] : memref<96x128xf32, #tpu.memory_space<vmem>>, vector<8x128xf32>
    tpu.vector_store %arg14[%c88, %c0_2], %8 {strides = array<i32>} : memref<96x128xf32, #tpu.memory_space<vmem>>, vector<8x128xf32>,
    %c0_3 = arith.constant 0 : index
    %c0_4 = arith.constant 0 : index
    %c0_5 = arith.constant 0 : index
    %10 = vector.load %arg2[%c0_3, %c0_4, %c0_5] : memref<1x16x128xf32, #tpu.memory_space<vmem>>, vector<1x16x128xf32>
    %11 = vector.shape_cast %10 : vector<1x16x128xf32> to vector<16x128xf32>
    %c0_6 = arith.constant 0 : index
    %c0_7 = arith.constant 0 : index
    %c0_8 = arith.constant 0 : index
    %12 = vector.load %arg3[%c0_6, %c0_7, %c0_8] : memref<1x48x128xf32, #tpu.memory_space<vmem>>, vector<1x48x128xf32>
    %13 = vector.shape_cast %12 : vector<1x48x128xf32> to vector<48x128xf32>
    %c0_9 = arith.constant 0 : index
    %c0_10 = arith.constant 0 : index
    %c0_11 = arith.constant 0 : index
    %14 = vector.load %arg4[%c0_9, %c0_10, %c0_11] : memref<1x16x128xf32, #tpu.memory_space<vmem>>, vector<1x16x128xf32>
    %15 = vector.shape_cast %14 : vector<1x16x128xf32> to vector<16x128xf32>
    %16 = tpu.concatenate %11, %13, %15 in 0 : vector<16x128xf32>, vector<48x128xf32>, vector<16x128xf32> -> vector<80x128xf32>
    %c0_12 = arith.constant 0 : index
    %c0_13 = arith.constant 0 : index
    %17 = vector.load %arg5[%c0_12, %c0_13] : memref<128x128xf32, #tpu.memory_space<vmem>>, vector<128x128xf32>
    %cst_14 = arith.constant dense<0.000000e+00> : vector<80x128xf32>
    %18 = tpu.matmul %16, %17, %cst_14 {dimension_numbers = #tpu.dot_dimension_numbers<[1], [0], [0], [1], [0, 0, 1, 1], [], []>} : vector<80x128xf32>, vector<128x128xf32>, vector<80x128xf32> -> vector<80x128xf32>
    %c0_15 = arith.constant 0 : index
    %c0_16 = arith.constant 0 : index
    %19 = vector.load %arg6[%c0_15, %c0_16] : memref<1x128xf32, #tpu.memory_space<vmem>>, vector<1x128xf32>
    %20 = vector.broadcast %19 : vector<1x128xf32> to vector<80x128xf32>
    %21 = arith.addf %18, %20 : vector<80x128xf32>
    %c0_17 = arith.constant 0 : index
    %c0_18 = arith.constant 0 : index
    %22 = vector.load %arg7[%c0_17, %c0_18] : memref<384x256xf32, #tpu.memory_space<vmem>>, vector<384x256xf32>
    %c0_19 = arith.constant 0 : index
    %c0_20 = arith.constant 0 : index
    %23 = vector.load %arg8[%c0_19, %c0_20] : memref<1x256xf32, #tpu.memory_space<vmem>>, vector<1x256xf32>
    %24 = arith.extui %5 : i1 to i32
    %c0_i32_21 = arith.constant 0 : i32
    %25 = arith.cmpi ne, %24, %c0_i32_21 : i32
    scf.if %25 {
      %189 = tpu.iota {dimensions = array<i32: 0>} : vector<80x128xi32>
      %190 = vector.broadcast %1 : i32 to vector<80x128xi32>
      %191 = arith.addi %189, %190 : vector<80x128xi32>
      %c0_i32_131 = arith.constant 0 : i32
      %192 = vector.broadcast %c0_i32_131 : i32 to vector<80x128xi32>
      %193 = arith.cmpi sge, %191, %192 : vector<80x128xi32>
      %c40_i32_132 = arith.constant 40 : i32
      %194 = vector.broadcast %c40_i32_132 : i32 to vector<80x128xi32>
      %195 = arith.cmpi slt, %191, %194 : vector<80x128xi32>
      %196 = arith.andi %193, %195 : vector<80x128xi1>
      %cst_133 = arith.constant 0.000000e+00 : f32
      %197 = vector.broadcast %cst_133 : f32 to vector<80x128xf32>
      %198 = arith.select %196, %21, %197 : vector<80x128xi1>, vector<80x128xf32>
      %c8_134 = arith.constant 8 : index
      %c0_135 = arith.constant 0 : index
      %199 = vector.load %arg14[%c8_134, %c0_135] : memref<96x128xf32, #tpu.memory_space<vmem>>, vector<80x128xf32>
      tpu.vector_store %arg14[%c8_134, %c0_135], %198 {strides = array<i32>} : memref<96x128xf32, #tpu.memory_space<vmem>>, vector<80x128xf32>,
    } else {
    }
    %true = arith.constant true
    %26 = arith.xori %5, %true : i1
    %27 = arith.extui %26 : i1 to i32
    %c0_i32_22 = arith.constant 0 : i32
    %28 = arith.cmpi ne, %27, %c0_i32_22 : i32
    scf.if %28 {
      %c8_131 = arith.constant 8 : index
      %c0_132 = arith.constant 0 : index
      %189 = vector.load %arg14[%c8_131, %c0_132] : memref<96x128xf32, #tpu.memory_space<vmem>>, vector<80x128xf32>
      tpu.vector_store %arg14[%c8_131, %c0_132], %21 {strides = array<i32>} : memref<96x128xf32, #tpu.memory_space<vmem>>, vector<80x128xf32>,
    } else {
    }
    %c5 = arith.constant 5 : index
    %c0_23 = arith.constant 0 : index
    %29 = vector.load %arg14[%c5, %c0_23] : memref<96x128xf32, #tpu.memory_space<vmem>>, vector<80x128xf32>
    %c8 = arith.constant 8 : index
    %c0_24 = arith.constant 0 : index
    %30 = vector.load %arg14[%c8, %c0_24] : memref<96x128xf32, #tpu.memory_space<vmem>>, vector<80x128xf32>
    %c11 = arith.constant 11 : index
    %c0_25 = arith.constant 0 : index
    %31 = vector.load %arg14[%c11, %c0_25] : memref<96x128xf32, #tpu.memory_space<vmem>>, vector<80x128xf32>
    %32 = tpu.concatenate %29, %30, %31 in 1 : vector<80x128xf32>, vector<80x128xf32>, vector<80x128xf32> -> vector<80x384xf32>
    %cst_26 = arith.constant dense<0.000000e+00> : vector<80x256xf32>
    %33 = tpu.matmul %32, %22, %cst_26 {dimension_numbers = #tpu.dot_dimension_numbers<[1], [0], [0], [1], [0, 0, 1, 1], [], []>} : vector<80x384xf32>, vector<384x256xf32>, vector<80x256xf32> -> vector<80x256xf32>
    %34 = vector.broadcast %23 : vector<1x256xf32> to vector<80x256xf32>
    %35 = arith.addf %33, %34 : vector<80x256xf32>
    %36 = vector.extract_strided_slice %35 {offsets = [0, 0], sizes = [80, 128], strides = [1, 1]} : vector<80x256xf32> to vector<80x128xf32>
    %37 = vector.extract_strided_slice %35 {offsets = [0, 128], sizes = [80, 128], strides = [1, 1]} : vector<80x256xf32> to vector<80x128xf32>
    %cst_27 = arith.constant 5.000000e-01 : f32
    %38 = vector.broadcast %cst_27 : f32 to vector<80x128xf32>
    %39 = arith.mulf %38, %37 : vector<80x128xf32>
    %40 = math.tanh %39 : vector<80x128xf32>
    %cst_28 = arith.constant 5.000000e-01 : f32
    %41 = vector.broadcast %cst_28 : f32 to vector<80x128xf32>
    %42 = arith.mulf %41, %40 : vector<80x128xf32>
    %cst_29 = arith.constant 5.000000e-01 : f32
    %43 = vector.broadcast %cst_29 : f32 to vector<80x128xf32>
    %44 = arith.addf %42, %43 : vector<80x128xf32>
    %45 = arith.mulf %36, %44 : vector<80x128xf32>
    %46 = arith.addf %45, %21 : vector<80x128xf32>
    %cst_30 = arith.constant 0.707106769 : f32
    %47 = vector.broadcast %cst_30 : f32 to vector<80x128xf32>
    %48 = arith.mulf %46, %47 : vector<80x128xf32>
    %c0_31 = arith.constant 0 : index
    %c0_32 = arith.constant 0 : index
    %c0_33 = arith.constant 0 : index
    %49 = vector.load %arg9[%c0_31, %c0_32, %c0_33] : memref<4x640x256xf32, #tpu.memory_space<vmem>>, vector<1x640x256xf32>
    %50 = vector.shape_cast %49 : vector<1x640x256xf32> to vector<640x256xf32>
    %c0_34 = arith.constant 0 : index
    %c0_35 = arith.constant 0 : index
    %c0_36 = arith.constant 0 : index
    %51 = vector.load %arg10[%c0_34, %c0_35, %c0_36] : memref<4x1x256xf32, #tpu.memory_space<vmem>>, vector<1x1x256xf32>
    %52 = vector.shape_cast %51 : vector<1x1x256xf32> to vector<1x256xf32>
    %53 = arith.extui %5 : i1 to i32
    %c0_i32_37 = arith.constant 0 : i32
    %54 = arith.cmpi ne, %53, %c0_i32_37 : i32
    scf.if %54 {
      %189 = tpu.iota {dimensions = array<i32: 0>} : vector<80x128xi32>
      %190 = vector.broadcast %1 : i32 to vector<80x128xi32>
      %191 = arith.addi %189, %190 : vector<80x128xi32>
      %c0_i32_131 = arith.constant 0 : i32
      %192 = vector.broadcast %c0_i32_131 : i32 to vector<80x128xi32>
      %193 = arith.cmpi sge, %191, %192 : vector<80x128xi32>
      %c40_i32_132 = arith.constant 40 : i32
      %194 = vector.broadcast %c40_i32_132 : i32 to vector<80x128xi32>
      %195 = arith.cmpi slt, %191, %194 : vector<80x128xi32>
      %196 = arith.andi %193, %195 : vector<80x128xi1>
      %cst_133 = arith.constant 0.000000e+00 : f32
      %197 = vector.broadcast %cst_133 : f32 to vector<80x128xf32>
      %198 = arith.select %196, %48, %197 : vector<80x128xi1>, vector<80x128xf32>
      %c8_134 = arith.constant 8 : index
      %c0_135 = arith.constant 0 : index
      %199 = vector.load %arg14[%c8_134, %c0_135] : memref<96x128xf32, #tpu.memory_space<vmem>>, vector<80x128xf32>
      tpu.vector_store %arg14[%c8_134, %c0_135], %198 {strides = array<i32>} : memref<96x128xf32, #tpu.memory_space<vmem>>, vector<80x128xf32>,
    } else {
    }
    %true_38 = arith.constant true
    %55 = arith.xori %5, %true_38 : i1
    %56 = arith.extui %55 : i1 to i32
    %c0_i32_39 = arith.constant 0 : i32
    %57 = arith.cmpi ne, %56, %c0_i32_39 : i32
    scf.if %57 {
      %c8_131 = arith.constant 8 : index
      %c0_132 = arith.constant 0 : index
      %189 = vector.load %arg14[%c8_131, %c0_132] : memref<96x128xf32, #tpu.memory_space<vmem>>, vector<80x128xf32>
      tpu.vector_store %arg14[%c8_131, %c0_132], %48 {strides = array<i32>} : memref<96x128xf32, #tpu.memory_space<vmem>>, vector<80x128xf32>,
    } else {
    }
    %c6 = arith.constant 6 : index
    %c0_40 = arith.constant 0 : index
    %58 = vector.load %arg14[%c6, %c0_40] : memref<96x128xf32, #tpu.memory_space<vmem>>, vector<80x128xf32>
    %c7 = arith.constant 7 : index
    %c0_41 = arith.constant 0 : index
    %59 = vector.load %arg14[%c7, %c0_41] : memref<96x128xf32, #tpu.memory_space<vmem>>, vector<80x128xf32>
    %c8_42 = arith.constant 8 : index
    %c0_43 = arith.constant 0 : index
    %60 = vector.load %arg14[%c8_42, %c0_43] : memref<96x128xf32, #tpu.memory_space<vmem>>, vector<80x128xf32>
    %c9 = arith.constant 9 : index
    %c0_44 = arith.constant 0 : index
    %61 = vector.load %arg14[%c9, %c0_44] : memref<96x128xf32, #tpu.memory_space<vmem>>, vector<80x128xf32>
    %c10 = arith.constant 10 : index
    %c0_45 = arith.constant 0 : index
    %62 = vector.load %arg14[%c10, %c0_45] : memref<96x128xf32, #tpu.memory_space<vmem>>, vector<80x128xf32>
    %63 = tpu.concatenate %58, %59, %60, %61, %62 in 1 : vector<80x128xf32>, vector<80x128xf32>, vector<80x128xf32>, vector<80x128xf32>, vector<80x128xf32> -> vector<80x640xf32>
    %cst_46 = arith.constant dense<0.000000e+00> : vector<80x256xf32>
    %64 = tpu.matmul %63, %50, %cst_46 {dimension_numbers = #tpu.dot_dimension_numbers<[1], [0], [0], [1], [0, 0, 1, 1], [], []>} : vector<80x640xf32>, vector<640x256xf32>, vector<80x256xf32> -> vector<80x256xf32>
    %65 = vector.broadcast %52 : vector<1x256xf32> to vector<80x256xf32>
    %66 = arith.addf %64, %65 : vector<80x256xf32>
    %67 = vector.extract_strided_slice %66 {offsets = [0, 0], sizes = [80, 128], strides = [1, 1]} : vector<80x256xf32> to vector<80x128xf32>
    %68 = vector.extract_strided_slice %66 {offsets = [0, 128], sizes = [80, 128], strides = [1, 1]} : vector<80x256xf32> to vector<80x128xf32>
    %cst_47 = arith.constant 5.000000e-01 : f32
    %69 = vector.broadcast %cst_47 : f32 to vector<80x128xf32>
    %70 = arith.mulf %69, %68 : vector<80x128xf32>
    %71 = math.tanh %70 : vector<80x128xf32>
    %cst_48 = arith.constant 5.000000e-01 : f32
    %72 = vector.broadcast %cst_48 : f32 to vector<80x128xf32>
    %73 = arith.mulf %72, %71 : vector<80x128xf32>
    %cst_49 = arith.constant 5.000000e-01 : f32
    %74 = vector.broadcast %cst_49 : f32 to vector<80x128xf32>
    %75 = arith.addf %73, %74 : vector<80x128xf32>
    %76 = arith.mulf %67, %75 : vector<80x128xf32>
    %77 = arith.addf %76, %48 : vector<80x128xf32>
    %cst_50 = arith.constant 0.707106769 : f32
    %78 = vector.broadcast %cst_50 : f32 to vector<80x128xf32>
    %79 = arith.mulf %77, %78 : vector<80x128xf32>
    %c1 = arith.constant 1 : index
    %c0_51 = arith.constant 0 : index
    %c0_52 = arith.constant 0 : index
    %80 = vector.load %arg9[%c1, %c0_51, %c0_52] : memref<4x640x256xf32, #tpu.memory_space<vmem>>, vector<1x640x256xf32>
    %81 = vector.shape_cast %80 : vector<1x640x256xf32> to vector<640x256xf32>
    %c1_53 = arith.constant 1 : index
    %c0_54 = arith.constant 0 : index
    %c0_55 = arith.constant 0 : index
    %82 = vector.load %arg10[%c1_53, %c0_54, %c0_55] : memref<4x1x256xf32, #tpu.memory_space<vmem>>, vector<1x1x256xf32>
    %83 = vector.shape_cast %82 : vector<1x1x256xf32> to vector<1x256xf32>
    %84 = arith.extui %5 : i1 to i32
    %c0_i32_56 = arith.constant 0 : i32
    %85 = arith.cmpi ne, %84, %c0_i32_56 : i32
    scf.if %85 {
      %189 = tpu.iota {dimensions = array<i32: 0>} : vector<80x128xi32>
      %190 = vector.broadcast %1 : i32 to vector<80x128xi32>
      %191 = arith.addi %189, %190 : vector<80x128xi32>
      %c0_i32_131 = arith.constant 0 : i32
      %192 = vector.broadcast %c0_i32_131 : i32 to vector<80x128xi32>
      %193 = arith.cmpi sge, %191, %192 : vector<80x128xi32>
      %c40_i32_132 = arith.constant 40 : i32
      %194 = vector.broadcast %c40_i32_132 : i32 to vector<80x128xi32>
      %195 = arith.cmpi slt, %191, %194 : vector<80x128xi32>
      %196 = arith.andi %193, %195 : vector<80x128xi1>
      %cst_133 = arith.constant 0.000000e+00 : f32
      %197 = vector.broadcast %cst_133 : f32 to vector<80x128xf32>
      %198 = arith.select %196, %79, %197 : vector<80x128xi1>, vector<80x128xf32>
      %c8_134 = arith.constant 8 : index
      %c0_135 = arith.constant 0 : index
      %199 = vector.load %arg14[%c8_134, %c0_135] : memref<96x128xf32, #tpu.memory_space<vmem>>, vector<80x128xf32>
      tpu.vector_store %arg14[%c8_134, %c0_135], %198 {strides = array<i32>} : memref<96x128xf32, #tpu.memory_space<vmem>>, vector<80x128xf32>,
    } else {
    }
    %true_57 = arith.constant true
    %86 = arith.xori %5, %true_57 : i1
    %87 = arith.extui %86 : i1 to i32
    %c0_i32_58 = arith.constant 0 : i32
    %88 = arith.cmpi ne, %87, %c0_i32_58 : i32
    scf.if %88 {
      %c8_131 = arith.constant 8 : index
      %c0_132 = arith.constant 0 : index
      %189 = vector.load %arg14[%c8_131, %c0_132] : memref<96x128xf32, #tpu.memory_space<vmem>>, vector<80x128xf32>
      tpu.vector_store %arg14[%c8_131, %c0_132], %79 {strides = array<i32>} : memref<96x128xf32, #tpu.memory_space<vmem>>, vector<80x128xf32>,
    } else {
    }
    %c6_59 = arith.constant 6 : index
    %c0_60 = arith.constant 0 : index
    %89 = vector.load %arg14[%c6_59, %c0_60] : memref<96x128xf32, #tpu.memory_space<vmem>>, vector<80x128xf32>
    %c7_61 = arith.constant 7 : index
    %c0_62 = arith.constant 0 : index
    %90 = vector.load %arg14[%c7_61, %c0_62] : memref<96x128xf32, #tpu.memory_space<vmem>>, vector<80x128xf32>
    %c8_63 = arith.constant 8 : index
    %c0_64 = arith.constant 0 : index
    %91 = vector.load %arg14[%c8_63, %c0_64] : memref<96x128xf32, #tpu.memory_space<vmem>>, vector<80x128xf32>
    %c9_65 = arith.constant 9 : index
    %c0_66 = arith.constant 0 : index
    %92 = vector.load %arg14[%c9_65, %c0_66] : memref<96x128xf32, #tpu.memory_space<vmem>>, vector<80x128xf32>
    %c10_67 = arith.constant 10 : index
    %c0_68 = arith.constant 0 : index
    %93 = vector.load %arg14[%c10_67, %c0_68] : memref<96x128xf32, #tpu.memory_space<vmem>>, vector<80x128xf32>
    %94 = tpu.concatenate %89, %90, %91, %92, %93 in 1 : vector<80x128xf32>, vector<80x128xf32>, vector<80x128xf32>, vector<80x128xf32>, vector<80x128xf32> -> vector<80x640xf32>
    %cst_69 = arith.constant dense<0.000000e+00> : vector<80x256xf32>
    %95 = tpu.matmul %94, %81, %cst_69 {dimension_numbers = #tpu.dot_dimension_numbers<[1], [0], [0], [1], [0, 0, 1, 1], [], []>} : vector<80x640xf32>, vector<640x256xf32>, vector<80x256xf32> -> vector<80x256xf32>
    %96 = vector.broadcast %83 : vector<1x256xf32> to vector<80x256xf32>
    %97 = arith.addf %95, %96 : vector<80x256xf32>
    %98 = vector.extract_strided_slice %97 {offsets = [0, 0], sizes = [80, 128], strides = [1, 1]} : vector<80x256xf32> to vector<80x128xf32>
    %99 = vector.extract_strided_slice %97 {offsets = [0, 128], sizes = [80, 128], strides = [1, 1]} : vector<80x256xf32> to vector<80x128xf32>
    %cst_70 = arith.constant 5.000000e-01 : f32
    %100 = vector.broadcast %cst_70 : f32 to vector<80x128xf32>
    %101 = arith.mulf %100, %99 : vector<80x128xf32>
    %102 = math.tanh %101 : vector<80x128xf32>
    %cst_71 = arith.constant 5.000000e-01 : f32
    %103 = vector.broadcast %cst_71 : f32 to vector<80x128xf32>
    %104 = arith.mulf %103, %102 : vector<80x128xf32>
    %cst_72 = arith.constant 5.000000e-01 : f32
    %105 = vector.broadcast %cst_72 : f32 to vector<80x128xf32>
    %106 = arith.addf %104, %105 : vector<80x128xf32>
    %107 = arith.mulf %98, %106 : vector<80x128xf32>
    %108 = arith.addf %107, %79 : vector<80x128xf32>
    %cst_73 = arith.constant 0.707106769 : f32
    %109 = vector.broadcast %cst_73 : f32 to vector<80x128xf32>
    %110 = arith.mulf %108, %109 : vector<80x128xf32>
    %c2 = arith.constant 2 : index
    %c0_74 = arith.constant 0 : index
    %c0_75 = arith.constant 0 : index
    %111 = vector.load %arg9[%c2, %c0_74, %c0_75] : memref<4x640x256xf32, #tpu.memory_space<vmem>>, vector<1x640x256xf32>
    %112 = vector.shape_cast %111 : vector<1x640x256xf32> to vector<640x256xf32>
    %c2_76 = arith.constant 2 : index
    %c0_77 = arith.constant 0 : index
    %c0_78 = arith.constant 0 : index
    %113 = vector.load %arg10[%c2_76, %c0_77, %c0_78] : memref<4x1x256xf32, #tpu.memory_space<vmem>>, vector<1x1x256xf32>
    %114 = vector.shape_cast %113 : vector<1x1x256xf32> to vector<1x256xf32>
    %115 = arith.extui %5 : i1 to i32
    %c0_i32_79 = arith.constant 0 : i32
    %116 = arith.cmpi ne, %115, %c0_i32_79 : i32
    scf.if %116 {
      %189 = tpu.iota {dimensions = array<i32: 0>} : vector<80x128xi32>
      %190 = vector.broadcast %1 : i32 to vector<80x128xi32>
      %191 = arith.addi %189, %190 : vector<80x128xi32>
      %c0_i32_131 = arith.constant 0 : i32
      %192 = vector.broadcast %c0_i32_131 : i32 to vector<80x128xi32>
      %193 = arith.cmpi sge, %191, %192 : vector<80x128xi32>
      %c40_i32_132 = arith.constant 40 : i32
      %194 = vector.broadcast %c40_i32_132 : i32 to vector<80x128xi32>
      %195 = arith.cmpi slt, %191, %194 : vector<80x128xi32>
      %196 = arith.andi %193, %195 : vector<80x128xi1>
      %cst_133 = arith.constant 0.000000e+00 : f32
      %197 = vector.broadcast %cst_133 : f32 to vector<80x128xf32>
      %198 = arith.select %196, %110, %197 : vector<80x128xi1>, vector<80x128xf32>
      %c8_134 = arith.constant 8 : index
      %c0_135 = arith.constant 0 : index
      %199 = vector.load %arg14[%c8_134, %c0_135] : memref<96x128xf32, #tpu.memory_space<vmem>>, vector<80x128xf32>
      tpu.vector_store %arg14[%c8_134, %c0_135], %198 {strides = array<i32>} : memref<96x128xf32, #tpu.memory_space<vmem>>, vector<80x128xf32>,
    } else {
    }
    %true_80 = arith.constant true
    %117 = arith.xori %5, %true_80 : i1
    %118 = arith.extui %117 : i1 to i32
    %c0_i32_81 = arith.constant 0 : i32
    %119 = arith.cmpi ne, %118, %c0_i32_81 : i32
    scf.if %119 {
      %c8_131 = arith.constant 8 : index
      %c0_132 = arith.constant 0 : index
      %189 = vector.load %arg14[%c8_131, %c0_132] : memref<96x128xf32, #tpu.memory_space<vmem>>, vector<80x128xf32>
      tpu.vector_store %arg14[%c8_131, %c0_132], %110 {strides = array<i32>} : memref<96x128xf32, #tpu.memory_space<vmem>>, vector<80x128xf32>,
    } else {
    }
    %c6_82 = arith.constant 6 : index
    %c0_83 = arith.constant 0 : index
    %120 = vector.load %arg14[%c6_82, %c0_83] : memref<96x128xf32, #tpu.memory_space<vmem>>, vector<80x128xf32>
    %c7_84 = arith.constant 7 : index
    %c0_85 = arith.constant 0 : index
    %121 = vector.load %arg14[%c7_84, %c0_85] : memref<96x128xf32, #tpu.memory_space<vmem>>, vector<80x128xf32>
    %c8_86 = arith.constant 8 : index
    %c0_87 = arith.constant 0 : index
    %122 = vector.load %arg14[%c8_86, %c0_87] : memref<96x128xf32, #tpu.memory_space<vmem>>, vector<80x128xf32>
    %c9_88 = arith.constant 9 : index
    %c0_89 = arith.constant 0 : index
    %123 = vector.load %arg14[%c9_88, %c0_89] : memref<96x128xf32, #tpu.memory_space<vmem>>, vector<80x128xf32>
    %c10_90 = arith.constant 10 : index
    %c0_91 = arith.constant 0 : index
    %124 = vector.load %arg14[%c10_90, %c0_91] : memref<96x128xf32, #tpu.memory_space<vmem>>, vector<80x128xf32>
    %125 = tpu.concatenate %120, %121, %122, %123, %124 in 1 : vector<80x128xf32>, vector<80x128xf32>, vector<80x128xf32>, vector<80x128xf32>, vector<80x128xf32> -> vector<80x640xf32>
    %cst_92 = arith.constant dense<0.000000e+00> : vector<80x256xf32>
    %126 = tpu.matmul %125, %112, %cst_92 {dimension_numbers = #tpu.dot_dimension_numbers<[1], [0], [0], [1], [0, 0, 1, 1], [], []>} : vector<80x640xf32>, vector<640x256xf32>, vector<80x256xf32> -> vector<80x256xf32>
    %127 = vector.broadcast %114 : vector<1x256xf32> to vector<80x256xf32>
    %128 = arith.addf %126, %127 : vector<80x256xf32>
    %129 = vector.extract_strided_slice %128 {offsets = [0, 0], sizes = [80, 128], strides = [1, 1]} : vector<80x256xf32> to vector<80x128xf32>
    %130 = vector.extract_strided_slice %128 {offsets = [0, 128], sizes = [80, 128], strides = [1, 1]} : vector<80x256xf32> to vector<80x128xf32>
    %cst_93 = arith.constant 5.000000e-01 : f32
    %131 = vector.broadcast %cst_93 : f32 to vector<80x128xf32>
    %132 = arith.mulf %131, %130 : vector<80x128xf32>
    %133 = math.tanh %132 : vector<80x128xf32>
    %cst_94 = arith.constant 5.000000e-01 : f32
    %134 = vector.broadcast %cst_94 : f32 to vector<80x128xf32>
    %135 = arith.mulf %134, %133 : vector<80x128xf32>
    %cst_95 = arith.constant 5.000000e-01 : f32
    %136 = vector.broadcast %cst_95 : f32 to vector<80x128xf32>
    %137 = arith.addf %135, %136 : vector<80x128xf32>
    %138 = arith.mulf %129, %137 : vector<80x128xf32>
    %139 = arith.addf %138, %110 : vector<80x128xf32>
    %cst_96 = arith.constant 0.707106769 : f32
    %140 = vector.broadcast %cst_96 : f32 to vector<80x128xf32>
    %141 = arith.mulf %139, %140 : vector<80x128xf32>
    %c3 = arith.constant 3 : index
    %c0_97 = arith.constant 0 : index
    %c0_98 = arith.constant 0 : index
    %142 = vector.load %arg9[%c3, %c0_97, %c0_98] : memref<4x640x256xf32, #tpu.memory_space<vmem>>, vector<1x640x256xf32>
    %143 = vector.shape_cast %142 : vector<1x640x256xf32> to vector<640x256xf32>
    %c3_99 = arith.constant 3 : index
    %c0_100 = arith.constant 0 : index
    %c0_101 = arith.constant 0 : index
    %144 = vector.load %arg10[%c3_99, %c0_100, %c0_101] : memref<4x1x256xf32, #tpu.memory_space<vmem>>, vector<1x1x256xf32>
    %145 = vector.shape_cast %144 : vector<1x1x256xf32> to vector<1x256xf32>
    %146 = arith.extui %5 : i1 to i32
    %c0_i32_102 = arith.constant 0 : i32
    %147 = arith.cmpi ne, %146, %c0_i32_102 : i32
    scf.if %147 {
      %189 = tpu.iota {dimensions = array<i32: 0>} : vector<80x128xi32>
      %190 = vector.broadcast %1 : i32 to vector<80x128xi32>
      %191 = arith.addi %189, %190 : vector<80x128xi32>
      %c0_i32_131 = arith.constant 0 : i32
      %192 = vector.broadcast %c0_i32_131 : i32 to vector<80x128xi32>
      %193 = arith.cmpi sge, %191, %192 : vector<80x128xi32>
      %c40_i32_132 = arith.constant 40 : i32
      %194 = vector.broadcast %c40_i32_132 : i32 to vector<80x128xi32>
      %195 = arith.cmpi slt, %191, %194 : vector<80x128xi32>
      %196 = arith.andi %193, %195 : vector<80x128xi1>
      %cst_133 = arith.constant 0.000000e+00 : f32
      %197 = vector.broadcast %cst_133 : f32 to vector<80x128xf32>
      %198 = arith.select %196, %141, %197 : vector<80x128xi1>, vector<80x128xf32>
      %c8_134 = arith.constant 8 : index
      %c0_135 = arith.constant 0 : index
      %199 = vector.load %arg14[%c8_134, %c0_135] : memref<96x128xf32, #tpu.memory_space<vmem>>, vector<80x128xf32>
      tpu.vector_store %arg14[%c8_134, %c0_135], %198 {strides = array<i32>} : memref<96x128xf32, #tpu.memory_space<vmem>>, vector<80x128xf32>,
    } else {
    }
    %true_103 = arith.constant true
    %148 = arith.xori %5, %true_103 : i1
    %149 = arith.extui %148 : i1 to i32
    %c0_i32_104 = arith.constant 0 : i32
    %150 = arith.cmpi ne, %149, %c0_i32_104 : i32
    scf.if %150 {
      %c8_131 = arith.constant 8 : index
      %c0_132 = arith.constant 0 : index
      %189 = vector.load %arg14[%c8_131, %c0_132] : memref<96x128xf32, #tpu.memory_space<vmem>>, vector<80x128xf32>
      tpu.vector_store %arg14[%c8_131, %c0_132], %141 {strides = array<i32>} : memref<96x128xf32, #tpu.memory_space<vmem>>, vector<80x128xf32>,
    } else {
    }
    %c6_105 = arith.constant 6 : index
    %c0_106 = arith.constant 0 : index
    %151 = vector.load %arg14[%c6_105, %c0_106] : memref<96x128xf32, #tpu.memory_space<vmem>>, vector<80x128xf32>
    %c7_107 = arith.constant 7 : index
    %c0_108 = arith.constant 0 : index
    %152 = vector.load %arg14[%c7_107, %c0_108] : memref<96x128xf32, #tpu.memory_space<vmem>>, vector<80x128xf32>
    %c8_109 = arith.constant 8 : index
    %c0_110 = arith.constant 0 : index
    %153 = vector.load %arg14[%c8_109, %c0_110] : memref<96x128xf32, #tpu.memory_space<vmem>>, vector<80x128xf32>
    %c9_111 = arith.constant 9 : index
    %c0_112 = arith.constant 0 : index
    %154 = vector.load %arg14[%c9_111, %c0_112] : memref<96x128xf32, #tpu.memory_space<vmem>>, vector<80x128xf32>
    %c10_113 = arith.constant 10 : index
    %c0_114 = arith.constant 0 : index
    %155 = vector.load %arg14[%c10_113, %c0_114] : memref<96x128xf32, #tpu.memory_space<vmem>>, vector<80x128xf32>
    %156 = tpu.concatenate %151, %152, %153, %154, %155 in 1 : vector<80x128xf32>, vector<80x128xf32>, vector<80x128xf32>, vector<80x128xf32>, vector<80x128xf32> -> vector<80x640xf32>
    %cst_115 = arith.constant dense<0.000000e+00> : vector<80x256xf32>
    %157 = tpu.matmul %156, %143, %cst_115 {dimension_numbers = #tpu.dot_dimension_numbers<[1], [0], [0], [1], [0, 0, 1, 1], [], []>} : vector<80x640xf32>, vector<640x256xf32>, vector<80x256xf32> -> vector<80x256xf32>
    %158 = vector.broadcast %145 : vector<1x256xf32> to vector<80x256xf32>
    %159 = arith.addf %157, %158 : vector<80x256xf32>
    %160 = vector.extract_strided_slice %159 {offsets = [0, 0], sizes = [80, 128], strides = [1, 1]} : vector<80x256xf32> to vector<80x128xf32>
    %161 = vector.extract_strided_slice %159 {offsets = [0, 128], sizes = [80, 128], strides = [1, 1]} : vector<80x256xf32> to vector<80x128xf32>
    %cst_116 = arith.constant 5.000000e-01 : f32
    %162 = vector.broadcast %cst_116 : f32 to vector<80x128xf32>
    %163 = arith.mulf %162, %161 : vector<80x128xf32>
    %164 = math.tanh %163 : vector<80x128xf32>
    %cst_117 = arith.constant 5.000000e-01 : f32
    %165 = vector.broadcast %cst_117 : f32 to vector<80x128xf32>
    %166 = arith.mulf %165, %164 : vector<80x128xf32>
    %cst_118 = arith.constant 5.000000e-01 : f32
    %167 = vector.broadcast %cst_118 : f32 to vector<80x128xf32>
    %168 = arith.addf %166, %167 : vector<80x128xf32>
    %169 = arith.mulf %160, %168 : vector<80x128xf32>
    %170 = arith.addf %169, %141 : vector<80x128xf32>
    %cst_119 = arith.constant 0.707106769 : f32
    %171 = vector.broadcast %cst_119 : f32 to vector<80x128xf32>
    %172 = arith.mulf %170, %171 : vector<80x128xf32>
    %173 = vector.extract_strided_slice %172 {offsets = [16, 0], sizes = [48, 128], strides = [1, 1]} : vector<80x128xf32> to vector<48x128xf32>
    %c0_120 = arith.constant 0 : index
    %c0_121 = arith.constant 0 : index
    %174 = vector.load %arg11[%c0_120, %c0_121] : memref<128x128xf32, #tpu.memory_space<vmem>>, vector<128x128xf32>
    %cst_122 = arith.constant dense<0.000000e+00> : vector<48x128xf32>
    %175 = tpu.matmul %173, %174, %cst_122 {dimension_numbers = #tpu.dot_dimension_numbers<[1], [0], [0], [1], [0, 0, 1, 1], [], []>} : vector<48x128xf32>, vector<128x128xf32>, vector<48x128xf32> -> vector<48x128xf32>
    %c0_123 = arith.constant 0 : index
    %c0_124 = arith.constant 0 : index
    %176 = vector.load %arg12[%c0_123, %c0_124] : memref<1x128xf32, #tpu.memory_space<vmem>>, vector<1x128xf32>
    %177 = vector.broadcast %176 : vector<1x128xf32> to vector<48x128xf32>
    %178 = arith.addf %175, %177 : vector<48x128xf32>
    %cst_125 = arith.constant 5.000000e-01 : f32
    %179 = vector.broadcast %cst_125 : f32 to vector<48x128xf32>
    %180 = arith.mulf %179, %178 : vector<48x128xf32>
    %181 = math.tanh %180 : vector<48x128xf32>
    %cst_126 = arith.constant 5.000000e-01 : f32
    %182 = vector.broadcast %cst_126 : f32 to vector<48x128xf32>
    %183 = arith.mulf %182, %181 : vector<48x128xf32>
    %cst_127 = arith.constant 5.000000e-01 : f32
    %184 = vector.broadcast %cst_127 : f32 to vector<48x128xf32>
    %185 = arith.addf %183, %184 : vector<48x128xf32>
    %c0_128 = arith.constant 0 : index
    %c0_129 = arith.constant 0 : index
    %c0_130 = arith.constant 0 : index
    %186 = vector.load %arg13[%c0_128, %c0_129, %c0_130] : memref<1x48x128xf32, #tpu.memory_space<vmem>>, vector<1x48x128xf32>
    %187 = vector.shape_cast %186 : vector<1x48x128xf32> to vector<48x128xf32>
    %188 = vector.shape_cast %185 : vector<48x128xf32> to vector<1x48x128xf32>
    tpu.vector_store %arg13[%c0_128, %c0_129, %c0_130], %188 {strides = array<i32>} : memref<1x48x128xf32, #tpu.memory_space<vmem>>, vector<1x48x128xf32>,
    return
  }
  func.func @transform_0(%arg0: i32, %arg1: i32) -> (i32, i32, i32) {
    %c3_i32 = arith.constant 3 : i32
    %0 = arith.muli %arg1, %c3_i32 : i32
    %c1_i32 = arith.constant 1 : i32
    %1 = arith.subi %0, %c1_i32 : i32
    %c0_i32 = arith.constant 0 : i32
    %2 = arith.maxsi %1, %c0_i32 : i32
    %c0_i32_0 = arith.constant 0 : i32
    %c0_i32_1 = arith.constant 0 : i32
    return %arg0, %2, %c0_i32_0 : i32, i32, i32
  }
  func.func @transform_1(%arg0: i32, %arg1: i32) -> (i32, i32, i32) {
    %c0_i32 = arith.constant 0 : i32
    %c0_i32_0 = arith.constant 0 : i32
    return %arg0, %arg1, %c0_i32 : i32, i32, i32
  }
  func.func @transform_2(%arg0: i32, %arg1: i32) -> (i32, i32, i32) {
    %c1_i32 = arith.constant 1 : i32
    %0 = arith.addi %arg1, %c1_i32 : i32
    %c3_i32 = arith.constant 3 : i32
    %1 = arith.muli %0, %c3_i32 : i32
    %c0_i32 = arith.constant 0 : i32
    %c0_i32_0 = arith.constant 0 : i32
    return %arg0, %1, %c0_i32 : i32, i32, i32
  }
  func.func @transform_3(%arg0: i32, %arg1: i32) -> (i32, i32) {
    %c0_i32 = arith.constant 0 : i32
    %c0_i32_0 = arith.constant 0 : i32
    %c0_i32_1 = arith.constant 0 : i32
    return %c0_i32, %c0_i32_0 : i32, i32
  }
  func.func @transform_4(%arg0: i32, %arg1: i32) -> (i32, i32) {
    %c0_i32 = arith.constant 0 : i32
    %c0_i32_0 = arith.constant 0 : i32
    %c0_i32_1 = arith.constant 0 : i32
    return %c0_i32, %c0_i32_0 : i32, i32
  }
  func.func @transform_5(%arg0: i32, %arg1: i32) -> (i32, i32) {
    %c0_i32 = arith.constant 0 : i32
    %c0_i32_0 = arith.constant 0 : i32
    %c0_i32_1 = arith.constant 0 : i32
    return %c0_i32, %c0_i32_0 : i32, i32
  }
  func.func @transform_6(%arg0: i32, %arg1: i32) -> (i32, i32) {
    %c0_i32 = arith.constant 0 : i32
    %c0_i32_0 = arith.constant 0 : i32
    %c0_i32_1 = arith.constant 0 : i32
    return %c0_i32, %c0_i32_0 : i32, i32
  }
  func.func @transform_7(%arg0: i32, %arg1: i32) -> (i32, i32, i32) {
    %c0_i32 = arith.constant 0 : i32
    %c0_i32_0 = arith.constant 0 : i32
    %c0_i32_1 = arith.constant 0 : i32
    %c0_i32_2 = arith.constant 0 : i32
    return %c0_i32, %c0_i32_0, %c0_i32_1 : i32, i32, i32
  }
  func.func @transform_8(%arg0: i32, %arg1: i32) -> (i32, i32, i32) {
    %c0_i32 = arith.constant 0 : i32
    %c0_i32_0 = arith.constant 0 : i32
    %c0_i32_1 = arith.constant 0 : i32
    %c0_i32_2 = arith.constant 0 : i32
    return %c0_i32, %c0_i32_0, %c0_i32_1 : i32, i32, i32
  }
  func.func @transform_9(%arg0: i32, %arg1: i32) -> (i32, i32) {
    %c0_i32 = arith.constant 0 : i32
    %c0_i32_0 = arith.constant 0 : i32
    %c0_i32_1 = arith.constant 0 : i32
    return %c0_i32, %c0_i32_0 : i32, i32
  }
  func.func @transform_10(%arg0: i32, %arg1: i32) -> (i32, i32) {
    %c0_i32 = arith.constant 0 : i32
    %c0_i32_0 = arith.constant 0 : i32
    %c0_i32_1 = arith.constant 0 : i32
    return %c0_i32, %c0_i32_0 : i32, i32
  }
  func.func @transform_11(%arg0: i32, %arg1: i32) -> (i32, i32, i32) {
    %c0_i32 = arith.constant 0 : i32
    %c0_i32_0 = arith.constant 0 : i32
    return %arg0, %arg1, %c0_i32 : i32, i32, i32
  }
}

</mosaic_0001>

<llo_original>
// kernel: tpu_custom_call.1
$region0: #{tpu_custom_call.1}
  #allocation0 [shape = 'u32[]', space=smem, size = 0x4, offset = 0x4, fixed_abs, tag = 'smem constant byte address 0x4 - core index']
  #allocation1 [shape = 'u32[144,128]{1,0:T(1,128)}', space=vmem, size = 0x12000, scoped, tag = 'internal scratch']
  #allocation2 [shape = 'f32[96,128]{1,0:T(8,128)}', space=vmem, size = 0xc000, scoped, tag = 'scratch operand']
  %s0 = inlined_call_operand.hbm [shape: f32[2,64,128], index: 0, kind: input, shape index: {}]
  %s1 = inlined_call_operand.hbm [shape: f32[2,64,128], index: 1, kind: input, shape index: {}]
  %s2 = inlined_call_operand.hbm [shape: f32[2,64,128], index: 2, kind: input, shape index: {}]
  %s3 = inlined_call_operand.hbm [shape: f32[128,128], index: 3, kind: input, shape index: {}]
  %s4 = inlined_call_operand.hbm [shape: f32[1,128], index: 4, kind: input, shape index: {}]
  %s5 = inlined_call_operand.hbm [shape: f32[384,256], index: 5, kind: input, shape index: {}]
  %s6 = inlined_call_operand.hbm [shape: f32[1,256], index: 6, kind: input, shape index: {}]
  %s7 = inlined_call_operand.hbm [shape: f32[4,640,256], index: 7, kind: input, shape index: {}]
  %s8 = inlined_call_operand.hbm [shape: f32[4,1,256], index: 8, kind: input, shape index: {}]
  %s9 = inlined_call_operand.hbm [shape: f32[128,128], index: 9, kind: input, shape index: {}]
  %s10 = inlined_call_operand.hbm [shape: f32[1,128], index: 10, kind: input, shape index: {}]
  %s11 = inlined_call_operand.hbm [shape: f32[2,48,128], index: 11, kind: output, shape index: {}]
  %s12 = sld [smem:[#allocation0]]
  $region161: #{tpu_custom_call.1} parent=0
    _
  %s14 = ssub.s32 1, %s12
  %s15 = scalar_select 0, %s14, %s12
  $region1: #{tpu_custom_call.1} parent=0
    #allocation3 [shape = 'u8[16384]{0}', space=vmem, size = 0x4000, scoped, tag = 'input window, operand 0']
    #allocation4 [shape = 's32[2]{0}', space=sflag, size = 0x8, scoped, tag = 'scoped memory for tpu_custom_call.1']
    #allocation5 [shape = 's32[2]{0}', space=sflag, size = 0x8, scoped, tag = 'scoped memory for tpu_custom_call.1']
    #allocation6 [shape = 'u8[49152]{0}', space=vmem, size = 0xc000, scoped, tag = 'input window, operand 1']
    #allocation7 [shape = 's32[2]{0}', space=sflag, size = 0x8, scoped, tag = 'scoped memory for tpu_custom_call.1']
    #allocation8 [shape = 'u8[16384]{0}', space=vmem, size = 0x4000, scoped, tag = 'input window, operand 2']
    #allocation9 [shape = 'u8[65536]{0}', space=vmem, size = 0x10000, scoped, tag = 'input window, operand 3, single buffered']
    #allocation10 [shape = 's32[1]{0}', space=sflag, size = 0x4, scoped, tag = 'scoped memory for tpu_custom_call.1']
    #allocation11 [shape = 'u8[512]{0}', space=vmem, size = 0x400, scoped, tag = 'input window, operand 4, single buffered']
    #allocation12 [shape = 'u8[393216]{0}', space=vmem, size = 0x60000, scoped, tag = 'input window, operand 5, single buffered']
    #allocation13 [shape = 's32[1]{0}', space=sflag, size = 0x4, scoped, tag = 'scoped memory for tpu_custom_call.1']
    #allocation14 [shape = 'u8[1024]{0}', space=vmem, size = 0x400, scoped, tag = 'input window, operand 6, single buffered']
    #allocation15 [shape = 'u8[2621440]{0}', space=vmem, size = 0x280000, scoped, tag = 'input window, operand 7, single buffered']
    #allocation16 [shape = 's32[1]{0}', space=sflag, size = 0x4, scoped, tag = 'scoped memory for tpu_custom_call.1']
    #allocation17 [shape = 'u8[4096]{0}', space=vmem, size = 0x1000, scoped, tag = 'input window, operand 8, single buffered']
    #allocation18 [shape = 'u8[65536]{0}', space=vmem, size = 0x10000, scoped, tag = 'input window, operand 9, single buffered']
    #allocation19 [shape = 's32[1]{0}', space=sflag, size = 0x4, scoped, tag = 'scoped memory for tpu_custom_call.1']
    #allocation20 [shape = 'u8[512]{0}', space=vmem, size = 0x400, scoped, tag = 'input window, operand 10, single buffered']
    #allocation21 [shape = 'u8[49152]{0}', space=vmem, size = 0xc000, scoped, tag = 'output window, operand 0']
    %16 = vsyncpa [#allocation4], 0
    %s17 = scalar_lea.sflag [#allocation4], 1
    %18 = vsyncpa %s17, 0
    %19 = vsyncpa [#allocation7], 0
    %s20 = scalar_lea.sflag [#allocation7], 1
    %21 = vsyncpa %s20, 0
    %22 = vsyncpa [#allocation10], 0
    %23 = vsyncpa [#allocation13], 0
    %24 = vsyncpa [#allocation16], 0
    %25 = vsyncpa [#allocation19], 0
    %26 = vsyncpa [#allocation5], 0
    %s27 = scalar_lea.sflag [#allocation5], 1
    %28 = vsyncpa %s27, 0
    loop: start=0, step=1, limit=4
    $region2: #{tpu_custom_call.1} parent=1 // loop_pre_header
      _
    $region3: #{tpu_custom_call.1} parent=1 // loop_header
      %s30 = sphi 0, %s34
      %p31 = scmp.ge.s32.totalorder %s30, 4
      %s37 = sphi 0, %s49
      %s38 = sphi 0, %s45
      %s39 = sphi 0, %s37
      %s40 = sphi 0, %s38
      %s41 = sphi 0, %s39
      %s42 = sphi 0, %s40
      %s62 = sphi 0, %s64
      %s65 = sphi 0, %s62
      %s66 = sphi 0, %s65
      %s82 = sphi 0, %s66
      %s90 = sphi 0, %s92
      %s93 = sphi 0, %s90
      %s94 = sphi 0, %s93
      %s110 = sphi 0, %s94
      %s122 = sphi 0, %s124
      %s125 = sphi 0, %s122
      %s126 = sphi 0, %s125
      %s142 = sphi 0, %s126
      %s146 = sphi 0, %s146
      %s148 = sphi 0, %s146
      %s149 = sphi 0, %s148
      %s163 = sphi 0, %s149
      %s167 = sphi 0, %s167
      %s169 = sphi 0, %s167
      %s170 = sphi 0, %s169
      %s184 = sphi 0, %s170
      %s188 = sphi 0, %s188
      %s190 = sphi 0, %s188
      %s191 = sphi 0, %s190
      %s205 = sphi 0, %s191
      %s209 = sphi 0, %s209
      %s211 = sphi 0, %s209
      %s212 = sphi 0, %s211
      %s226 = sphi 0, %s212
      %s230 = sphi 0, %s230
      %s232 = sphi 0, %s230
      %s233 = sphi 0, %s232
      %s247 = sphi 0, %s233
      %s251 = sphi 0, %s251
      %s253 = sphi 0, %s251
      %s254 = sphi 0, %s253
      %s268 = sphi 0, %s254
      %s272 = sphi 0, %s272
      %s274 = sphi 0, %s272
      %s275 = sphi 0, %s274
      %s289 = sphi 0, %s275
      %s293 = sphi 0, %s293
      %s295 = sphi 0, %s293
      %s296 = sphi 0, %s295
      %s310 = sphi 0, %s296
      %s318 = sphi 0, %s320
      %s321 = sphi 0, %s318
      %s322 = sphi 0, %s321
      %s338 = sphi 0, %s322
    $region4: #{tpu_custom_call.1} parent=1 // loop_header_branch
      %33 = sbr.rel (%p31) target = $region8
    $region5: #{tpu_custom_call.1} parent=1 // loop_body
      %s35 = ssub.s32 %s30, 1
      %s36 = ssub.s32 %s30, 2
      %s43 = sadd.s32 1, %s38
      %p44 = scmp.ge.s32.totalorder %s43, 1
      %s45 = scalar_select %p44, 0, %s43
      %s46 = sadd.s32 1, %s37
      %s47 = scalar_select %p44, %s46, %s37
      %p48 = scmp.ge.s32.totalorder %s47, 2
      %s49 = scalar_select %p48, 0, %s47
      %s50 = smul.u32 %s38, 3
      %s51 = ssub.s32 %s50, 1
      %p52 = scmp.gt.s32.totalorder %s51, 0
      %s53 = scalar_select %p52, %s51, 0
      %s54 = smul.u32 %s45, 3
      %s55 = ssub.s32 %s54, 1
      %p56 = scmp.gt.s32.totalorder %s55, 0
      %s57 = scalar_select %p56, %s55, 0
      %s58 = ssub.s32 %s37, %s49
      %s59 = ssub.s32 %s53, %s57
      %s60 = sor.u32 %s58, %s59
      %p61 = scmp.eq.s32.totalorder %s60, 0
      %s63 = sadd.s32 %s62, 1
      %s64 = scalar_select %p61, %s62, %s63
      %p67 = pneg %p61
      %p68 = scmp.eq.s32.totalorder %s30, 1
      %p69 = por %p67, %p68
      %p70 = scmp.ne.s32.totalorder %s62, %s65
      %p71 = scmp.eq.s32.totalorder %s30, 0
      %p72 = por %p70, %p71
      %p73 = scmp.ne.s32.totalorder %s62, %s65
      %p74 = scmp.eq.s32.totalorder %s35, 1
      %p75 = por %p73, %p74
      %p76 = scmp.ne.s32.totalorder %s65, %s66
      %p77 = scmp.eq.s32.totalorder %s35, 0
      %p78 = por %p76, %p77
      %p79 = scmp.ne.s32.totalorder %s65, %s66
      %p80 = scmp.eq.s32.totalorder %s36, 1
      %p81 = por %p79, %p80
      %p83 = scmp.ne.s32.totalorder %s66, %s82
      %p84 = scmp.eq.s32.totalorder %s36, 0
      %p85 = por %p83, %p84
      %s86 = ssub.s32 %s37, %s49
      %s87 = ssub.s32 %s38, %s45
      %s88 = sor.u32 %s86, %s87
      %p89 = scmp.eq.s32.totalorder %s88, 0
      %s91 = sadd.s32 %s90, 1
      %s92 = scalar_select %p89, %s90, %s91
      %p95 = pneg %p89
      %p96 = scmp.eq.s32.totalorder %s30, 1
      %p97 = por %p95, %p96
      %p98 = scmp.ne.s32.totalorder %s90, %s93
      %p99 = scmp.eq.s32.totalorder %s30, 0
      %p100 = por %p98, %p99
      %p101 = scmp.ne.s32.totalorder %s90, %s93
      %p102 = scmp.eq.s32.totalorder %s35, 1
      %p103 = por %p101, %p102
      %p104 = scmp.ne.s32.totalorder %s93, %s94
      %p105 = scmp.eq.s32.totalorder %s35, 0
      %p106 = por %p104, %p105
      %p107 = scmp.ne.s32.totalorder %s93, %s94
      %p108 = scmp.eq.s32.totalorder %s36, 1
      %p109 = por %p107, %p108
      %p111 = scmp.ne.s32.totalorder %s94, %s110
      %p112 = scmp.eq.s32.totalorder %s36, 0
      %p113 = por %p111, %p112
      %s114 = sadd.s32 %s38, 1
      %s115 = smul.u32 %s114, 3
      %s116 = sadd.s32 %s45, 1
      %s117 = smul.u32 %s116, 3
      %s118 = ssub.s32 %s37, %s49
      %s119 = ssub.s32 %s115, %s117
      %s120 = sor.u32 %s118, %s119
      %p121 = scmp.eq.s32.totalorder %s120, 0
      %s123 = sadd.s32 %s122, 1
      %s124 = scalar_select %p121, %s122, %s123
      %p127 = pneg %p121
      %p128 = scmp.eq.s32.totalorder %s30, 1
      %p129 = por %p127, %p128
      %p130 = scmp.ne.s32.totalorder %s122, %s125
      %p131 = scmp.eq.s32.totalorder %s30, 0
      %p132 = por %p130, %p131
      %p133 = scmp.ne.s32.totalorder %s122, %s125
      %p134 = scmp.eq.s32.totalorder %s35, 1
      %p135 = por %p133, %p134
      %p136 = scmp.ne.s32.totalorder %s125, %s126
      %p137 = scmp.eq.s32.totalorder %s35, 0
      %p138 = por %p136, %p137
      %p139 = scmp.ne.s32.totalorder %s125, %s126
      %p140 = scmp.eq.s32.totalorder %s36, 1
      %p141 = por %p139, %p140
      %p143 = scmp.ne.s32.totalorder %s126, %s142
      %p144 = scmp.eq.s32.totalorder %s36, 0
      %p145 = por %p143, %p144
      %s147 = sadd.s32 %s146, 1
      %p150 = scmp.eq.s32.totalorder %s30, 1
      %p151 = scmp.ne.s32.totalorder %s146, %s148
      %p152 = scmp.eq.s32.totalorder %s30, 0
      %p153 = por %p151, %p152
      %p154 = scmp.ne.s32.totalorder %s146, %s148
      %p155 = scmp.eq.s32.totalorder %s35, 1
      %p156 = por %p154, %p155
      %p157 = scmp.ne.s32.totalorder %s148, %s149
      %p158 = scmp.eq.s32.totalorder %s35, 0
      %p159 = por %p157, %p158
      %p160 = scmp.ne.s32.totalorder %s148, %s149
      %p161 = scmp.eq.s32.totalorder %s36, 1
      %p162 = por %p160, %p161
      %p164 = scmp.ne.s32.totalorder %s149, %s163
      %p165 = scmp.eq.s32.totalorder %s36, 0
      %p166 = por %p164, %p165
      %s168 = sadd.s32 %s167, 1
      %p171 = scmp.eq.s32.totalorder %s30, 1
      %p172 = scmp.ne.s32.totalorder %s167, %s169
      %p173 = scmp.eq.s32.totalorder %s30, 0
      %p174 = por %p172, %p173
      %p175 = scmp.ne.s32.totalorder %s167, %s169
      %p176 = scmp.eq.s32.totalorder %s35, 1
      %p177 = por %p175, %p176
      %p178 = scmp.ne.s32.totalorder %s169, %s170
      %p179 = scmp.eq.s32.totalorder %s35, 0
      %p180 = por %p178, %p179
      %p181 = scmp.ne.s32.totalorder %s169, %s170
      %p182 = scmp.eq.s32.totalorder %s36, 1
      %p183 = por %p181, %p182
      %p185 = scmp.ne.s32.totalorder %s170, %s184
      %p186 = scmp.eq.s32.totalorder %s36, 0
      %p187 = por %p185, %p186
      %s189 = sadd.s32 %s188, 1
      %p192 = scmp.eq.s32.totalorder %s30, 1
      %p193 = scmp.ne.s32.totalorder %s188, %s190
      %p194 = scmp.eq.s32.totalorder %s30, 0
      %p195 = por %p193, %p194
      %p196 = scmp.ne.s32.totalorder %s188, %s190
      %p197 = scmp.eq.s32.totalorder %s35, 1
      %p198 = por %p196, %p197
      %p199 = scmp.ne.s32.totalorder %s190, %s191
      %p200 = scmp.eq.s32.totalorder %s35, 0
      %p201 = por %p199, %p200
      %p202 = scmp.ne.s32.totalorder %s190, %s191
      %p203 = scmp.eq.s32.totalorder %s36, 1
      %p204 = por %p202, %p203
      %p206 = scmp.ne.s32.totalorder %s191, %s205
      %p207 = scmp.eq.s32.totalorder %s36, 0
      %p208 = por %p206, %p207
      %s210 = sadd.s32 %s209, 1
      %p213 = scmp.eq.s32.totalorder %s30, 1
      %p214 = scmp.ne.s32.totalorder %s209, %s211
      %p215 = scmp.eq.s32.totalorder %s30, 0
      %p216 = por %p214, %p215
      %p217 = scmp.ne.s32.totalorder %s209, %s211
      %p218 = scmp.eq.s32.totalorder %s35, 1
      %p219 = por %p217, %p218
      %p220 = scmp.ne.s32.totalorder %s211, %s212
      %p221 = scmp.eq.s32.totalorder %s35, 0
      %p222 = por %p220, %p221
      %p223 = scmp.ne.s32.totalorder %s211, %s212
      %p224 = scmp.eq.s32.totalorder %s36, 1
      %p225 = por %p223, %p224
      %p227 = scmp.ne.s32.totalorder %s212, %s226
      %p228 = scmp.eq.s32.totalorder %s36, 0
      %p229 = por %p227, %p228
      %s231 = sadd.s32 %s230, 1
      %p234 = scmp.eq.s32.totalorder %s30, 1
      %p235 = scmp.ne.s32.totalorder %s230, %s232
      %p236 = scmp.eq.s32.totalorder %s30, 0
      %p237 = por %p235, %p236
      %p238 = scmp.ne.s32.totalorder %s230, %s232
      %p239 = scmp.eq.s32.totalorder %s35, 1
      %p240 = por %p238, %p239
      %p241 = scmp.ne.s32.totalorder %s232, %s233
      %p242 = scmp.eq.s32.totalorder %s35, 0
      %p243 = por %p241, %p242
      %p244 = scmp.ne.s32.totalorder %s232, %s233
      %p245 = scmp.eq.s32.totalorder %s36, 1
      %p246 = por %p244, %p245
      %p248 = scmp.ne.s32.totalorder %s233, %s247
      %p249 = scmp.eq.s32.totalorder %s36, 0
      %p250 = por %p248, %p249
      %s252 = sadd.s32 %s251, 1
      %p255 = scmp.eq.s32.totalorder %s30, 1
      %p256 = scmp.ne.s32.totalorder %s251, %s253
      %p257 = scmp.eq.s32.totalorder %s30, 0
      %p258 = por %p256, %p257
      %p259 = scmp.ne.s32.totalorder %s251, %s253
      %p260 = scmp.eq.s32.totalorder %s35, 1
      %p261 = por %p259, %p260
      %p262 = scmp.ne.s32.totalorder %s253, %s254
      %p263 = scmp.eq.s32.totalorder %s35, 0
      %p264 = por %p262, %p263
      %p265 = scmp.ne.s32.totalorder %s253, %s254
      %p266 = scmp.eq.s32.totalorder %s36, 1
      %p267 = por %p265, %p266
      %p269 = scmp.ne.s32.totalorder %s254, %s268
      %p270 = scmp.eq.s32.totalorder %s36, 0
      %p271 = por %p269, %p270
      %s273 = sadd.s32 %s272, 1
      %p276 = scmp.eq.s32.totalorder %s30, 1
      %p277 = scmp.ne.s32.totalorder %s272, %s274
      %p278 = scmp.eq.s32.totalorder %s30, 0
      %p279 = por %p277, %p278
      %p280 = scmp.ne.s32.totalorder %s272, %s274
      %p281 = scmp.eq.s32.totalorder %s35, 1
      %p282 = por %p280, %p281
      %p283 = scmp.ne.s32.totalorder %s274, %s275
      %p284 = scmp.eq.s32.totalorder %s35, 0
      %p285 = por %p283, %p284
      %p286 = scmp.ne.s32.totalorder %s274, %s275
      %p287 = scmp.eq.s32.totalorder %s36, 1
      %p288 = por %p286, %p287
      %p290 = scmp.ne.s32.totalorder %s275, %s289
      %p291 = scmp.eq.s32.totalorder %s36, 0
      %p292 = por %p290, %p291
      %s294 = sadd.s32 %s293, 1
      %p297 = scmp.eq.s32.totalorder %s30, 1
      %p298 = scmp.ne.s32.totalorder %s293, %s295
      %p299 = scmp.eq.s32.totalorder %s30, 0
      %p300 = por %p298, %p299
      %p301 = scmp.ne.s32.totalorder %s293, %s295
      %p302 = scmp.eq.s32.totalorder %s35, 1
      %p303 = por %p301, %p302
      %p304 = scmp.ne.s32.totalorder %s295, %s296
      %p305 = scmp.eq.s32.totalorder %s35, 0
      %p306 = por %p304, %p305
      %p307 = scmp.ne.s32.totalorder %s295, %s296
      %p308 = scmp.eq.s32.totalorder %s36, 1
      %p309 = por %p307, %p308
      %p311 = scmp.ne.s32.totalorder %s296, %s310
      %p312 = scmp.eq.s32.totalorder %s36, 0
      %p313 = por %p311, %p312
      %s314 = ssub.s32 %s37, %s49
      %s315 = ssub.s32 %s38, %s45
      %s316 = sor.u32 %s314, %s315
      %p317 = scmp.eq.s32.totalorder %s316, 0
      %s319 = sadd.s32 %s318, 1
      %s320 = scalar_select %p317, %s318, %s319
      %p323 = pneg %p317
      %p324 = scmp.eq.s32.totalorder %s30, 1
      %p325 = por %p323, %p324
      %p326 = scmp.ne.s32.totalorder %s318, %s321
      %p327 = scmp.eq.s32.totalorder %s30, 0
      %p328 = por %p326, %p327
      %p329 = scmp.ne.s32.totalorder %s318, %s321
      %p330 = scmp.eq.s32.totalorder %s35, 1
      %p331 = por %p329, %p330
      %p332 = scmp.ne.s32.totalorder %s321, %s322
      %p333 = scmp.eq.s32.totalorder %s35, 0
      %p334 = por %p332, %p333
      %p335 = scmp.ne.s32.totalorder %s321, %s322
      %p336 = scmp.eq.s32.totalorder %s36, 1
      %p337 = por %p335, %p336
      %p339 = scmp.ne.s32.totalorder %s322, %s338
      %p340 = scmp.eq.s32.totalorder %s36, 0
      %p341 = por %p339, %p340
      %p342 = scmp.le.s32.totalorder 1, %s30
      %p343 = scmp.lt.s32.totalorder %s30, 3
      %p344 = pnand %p342, %p343
      %p345 = pneg %p344
      // Predicated region
      $region9: #{tpu_custom_call.1} parent=5 // pred_check
        _
      $region10: #{tpu_custom_call.1} parent=5 // pred_check_branch
        %347 = sbr.rel (%p344) target = $region12
      $region11: #{tpu_custom_call.1} parent=5 // pred_region
        %s348 = ssub.s32 %s30, 1
        // Predicated region
        $region13: #{tpu_custom_call.1} parent=11 // pred_check
          %p349 = pneg %p159
        $region14: #{tpu_custom_call.1} parent=11 // pred_check_branch
          %351 = sbr.rel (%p349) target = $region16
        $region15: #{tpu_custom_call.1} parent=11 // pred_region
          %s353 = ssub.s32 2048, 2048
          %354 = vsyncadd [#allocation10], %s353
          %s355 = sshll.u32 [#allocation9], 4
          %s356 = int_to_ptr.vmem [resolvable:$true] %s355
          %361 = dma.hbm_to_vmem [thread:$0]  %s3, 2048, %s356, [#allocation10], 128, 128, 8
        $region16: #{tpu_custom_call.1} parent=11 // pred_fallthru
          _
        // Predicated region
        $region17: #{tpu_custom_call.1} parent=11 // pred_check
          %p362 = pneg %p180
        $region18: #{tpu_custom_call.1} parent=11 // pred_check_branch
          %364 = sbr.rel (%p362) target = $region20
        $region19: #{tpu_custom_call.1} parent=11 // pred_region
          %s366 = ssub.s32 16, 16
          %367 = vsyncadd [#allocation10], %s366
          %s369 = sshll.u32 [#allocation11], 4
          %s370 = int_to_ptr.vmem [resolvable:$true] %s369
          %372 = dma.hbm_to_vmem [thread:$0]  %s4, 16, %s370, [#allocation10]
        $region20: #{tpu_custom_call.1} parent=11 // pred_fallthru
          _
        // Predicated region
        $region21: #{tpu_custom_call.1} parent=11 // pred_check
          %p373 = pneg %p201
        $region22: #{tpu_custom_call.1} parent=11 // pred_check_branch
          %375 = sbr.rel (%p373) target = $region24
        $region23: #{tpu_custom_call.1} parent=11 // pred_region
          %s377 = ssub.s32 12288, 12288
          %378 = vsyncadd [#allocation13], %s377
          %s379 = sshll.u32 [#allocation12], 4
          %s380 = int_to_ptr.vmem [resolvable:$true] %s379
          %385 = dma.hbm_to_vmem [thread:$0]  %s5, 12288, %s380, [#allocation13], 256, 256, 16
        $region24: #{tpu_custom_call.1} parent=11 // pred_fallthru
          _
        // Predicated region
        $region25: #{tpu_custom_call.1} parent=11 // pred_check
          %p386 = pneg %p222
        $region26: #{tpu_custom_call.1} parent=11 // pred_check_branch
          %388 = sbr.rel (%p386) target = $region28
        $region27: #{tpu_custom_call.1} parent=11 // pred_region
          %s390 = ssub.s32 32, 32
          %391 = vsyncadd [#allocation13], %s390
          %s393 = sshll.u32 [#allocation14], 4
          %s394 = int_to_ptr.vmem [resolvable:$true] %s393
          %396 = dma.hbm_to_vmem [thread:$0]  %s6, 32, %s394, [#allocation13]
        $region28: #{tpu_custom_call.1} parent=11 // pred_fallthru
          _
        // Predicated region
        $region29: #{tpu_custom_call.1} parent=11 // pred_check
          %p397 = pneg %p243
        $region30: #{tpu_custom_call.1} parent=11 // pred_check_branch
          %399 = sbr.rel (%p397) target = $region32
        $region31: #{tpu_custom_call.1} parent=11 // pred_region
          %s401 = ssub.s32 81920, 81920
          %402 = vsyncadd [#allocation16], %s401
          %s403 = sshll.u32 [#allocation15], 4
          %s404 = int_to_ptr.vmem [resolvable:$true] %s403
          %409 = dma.hbm_to_vmem [thread:$0]  %s7, 81920, %s404, [#allocation16], 256, 256, 16
        $region32: #{tpu_custom_call.1} parent=11 // pred_fallthru
          _
        // Predicated region
        $region33: #{tpu_custom_call.1} parent=11 // pred_check
          %p410 = pneg %p264
        $region34: #{tpu_custom_call.1} parent=11 // pred_check_branch
          %412 = sbr.rel (%p410) target = $region36
        $region35: #{tpu_custom_call.1} parent=11 // pred_region
          %s414 = ssub.s32 128, 128
          %415 = vsyncadd [#allocation16], %s414
          %s416 = sshll.u32 [#allocation17], 4
          %s417 = int_to_ptr.vmem [resolvable:$true] %s416
          %422 = dma.hbm_to_vmem [thread:$0]  %s8, 128, %s417, [#allocation16], 32, 32, 2
        $region36: #{tpu_custom_call.1} parent=11 // pred_fallthru
          _
        // Predicated region
        $region37: #{tpu_custom_call.1} parent=11 // pred_check
          %p423 = pneg %p285
        $region38: #{tpu_custom_call.1} parent=11 // pred_check_branch
          %425 = sbr.rel (%p423) target = $region40
        $region39: #{tpu_custom_call.1} parent=11 // pred_region
          %s427 = ssub.s32 2048, 2048
          %428 = vsyncadd [#allocation19], %s427
          %s429 = sshll.u32 [#allocation18], 4
          %s430 = int_to_ptr.vmem [resolvable:$true] %s429
          %435 = dma.hbm_to_vmem [thread:$0]  %s9, 2048, %s430, [#allocation19], 128, 128, 8
        $region40: #{tpu_custom_call.1} parent=11 // pred_fallthru
          _
        // Predicated region
        $region41: #{tpu_custom_call.1} parent=11 // pred_check
          %p436 = pneg %p306
        $region42: #{tpu_custom_call.1} parent=11 // pred_check_branch
          %438 = sbr.rel (%p436) target = $region44
        $region43: #{tpu_custom_call.1} parent=11 // pred_region
          %s440 = ssub.s32 16, 16
          %441 = vsyncadd [#allocation19], %s440
          %s443 = sshll.u32 [#allocation20], 4
          %s444 = int_to_ptr.vmem [resolvable:$true] %s443
          %446 = dma.hbm_to_vmem [thread:$0]  %s10, 16, %s444, [#allocation19]
        $region44: #{tpu_custom_call.1} parent=11 // pred_fallthru
          _
      $region12: #{tpu_custom_call.1} parent=5 // pred_fallthru
        _
      %p447 = scmp.lt.s32.totalorder %s30, 2
      // Predicated region
      $region45: #{tpu_custom_call.1} parent=5 // pred_check
        %p448 = pneg %p447
      $region46: #{tpu_custom_call.1} parent=5 // pred_check_branch
        %450 = sbr.rel (%p448) target = $region48
      $region47: #{tpu_custom_call.1} parent=5 // pred_region
        // Predicated region
        $region49: #{tpu_custom_call.1} parent=47 // pred_check
          %p451 = pneg %p72
        $region50: #{tpu_custom_call.1} parent=47 // pred_check_branch
          %453 = sbr.rel (%p451) target = $region52
        $region51: #{tpu_custom_call.1} parent=47 // pred_region
          %s454 = sand.u32 %s62, 1
          %s455 = scalar_lea.sflag [#allocation4], %s454
          %s456 = sand.u32 %s62, 1
          %s457 = smul.addr %s456, 16
          %s458 = scalar_lea.vmem [#allocation3], %s457
          %s459 = smul.u32 %s38, 3
          %s460 = ssub.s32 %s459, 1
          %p461 = scmp.gt.s32.totalorder %s460, 0
          %s462 = scalar_select %p461, %s460, 0
          %s463 = smul.u32 2, %s462
          %s465 = ssub.s32 256, 256
          %466 = vsyncadd %s455, %s465
          %s467 = smul.addr %s37, 8
          %s468 = sadd.s32 %s463, %s467
          %s469 = smul.addr %s468, 128
          %s470 = scalar_lea.hbm %s0, %s469
          %s471 = sshll.u32 %s458, 4
          %s472 = int_to_ptr.vmem [resolvable:$true] %s471
          %477 = dma.hbm_to_vmem [thread:$0]  %s470, 256, %s472, %s455, 128, 128, 8
        $region52: #{tpu_custom_call.1} parent=47 // pred_fallthru
          _
        // Predicated region
        $region53: #{tpu_custom_call.1} parent=47 // pred_check
          %p478 = pneg %p100
        $region54: #{tpu_custom_call.1} parent=47 // pred_check_branch
          %480 = sbr.rel (%p478) target = $region56
        $region55: #{tpu_custom_call.1} parent=47 // pred_region
          %s481 = sand.u32 %s30, 1
          %s482 = scalar_lea.sflag [#allocation7], %s481
          %s483 = sand.u32 %s90, 1
          %s484 = smul.addr %s483, 48
          %s485 = scalar_lea.vmem [#allocation6], %s484
          %s486 = smul.u32 6, %s38
          %s487 = ssub.s32 8, %s486
          %p488 = scmp.lt.s32.totalorder %s487, 6
          %s489 = scalar_select %p488, %s487, 6
          %s490 = smul.u32 128, %s489
          %s492 = ssub.s32 768, %s490
          %493 = vsyncadd %s482, %s492
          %p494 = scmp.ne.s32.totalorder 0, %s490
          %s495 = smul.addr %s37, 8
          %s496 = sadd.s32 %s486, %s495
          %s497 = smul.addr %s496, 128
          %s498 = scalar_lea.hbm %s1, %s497
          %s499 = smul.u32 8, %s489
          %s500 = sshll.u32 %s485, 4
          %s501 = int_to_ptr.vmem [resolvable:$true] %s500
          %s502 = sshll.u32 %s499, 4
          %506 = dma.hbm_to_vmem [thread:$0]  (%p494), %s498, %s502, %s501, %s482, 128, 128, 8
        $region56: #{tpu_custom_call.1} parent=47 // pred_fallthru
          _
        // Predicated region
        $region57: #{tpu_custom_call.1} parent=47 // pred_check
          %p507 = pneg %p132
        $region58: #{tpu_custom_call.1} parent=47 // pred_check_branch
          %509 = sbr.rel (%p507) target = $region60
        $region59: #{tpu_custom_call.1} parent=47 // pred_region
          %s510 = sand.u32 %s30, 1
          %s511 = scalar_lea.sflag [#allocation7], %s510
          %s512 = sand.u32 %s122, 1
          %s513 = smul.addr %s512, 16
          %s514 = scalar_lea.vmem [#allocation8], %s513
          %s515 = sadd.s32 %s38, 1
          %s516 = smul.u32 %s515, 3
          %s517 = smul.u32 2, %s516
          %s519 = ssub.s32 256, 256
          %520 = vsyncadd %s511, %s519
          %s521 = smul.addr %s37, 8
          %s522 = sadd.s32 %s517, %s521
          %s523 = smul.addr %s522, 128
          %s524 = scalar_lea.hbm %s2, %s523
          %s525 = sshll.u32 %s514, 4
          %s526 = int_to_ptr.vmem [resolvable:$true] %s525
          %531 = dma.hbm_to_vmem [thread:$0]  %s524, 256, %s526, %s511, 128, 128, 8
        $region60: #{tpu_custom_call.1} parent=47 // pred_fallthru
          _
      $region48: #{tpu_custom_call.1} parent=5 // pred_fallthru
        _
      %p532 = scmp.le.s32.totalorder 1, %s30
      %p533 = scmp.lt.s32.totalorder %s30, 3
      %p534 = pnand %p532, %p533
      %p535 = pneg %p534
      // Predicated region
      $region61: #{tpu_custom_call.1} parent=5 // pred_check
        _
      $region62: #{tpu_custom_call.1} parent=5 // pred_check_branch
        %537 = sbr.rel (%p534) target = $region64
      $region63: #{tpu_custom_call.1} parent=5 // pred_region
        %s538 = ssub.s32 %s30, 1
        %s539 = sand.u32 %s65, 1
        %s540 = scalar_lea.sflag [#allocation4], %s539
        %s541 = sand.u32 %s65, 1
        %s542 = smul.addr %s541, 16
        %s543 = scalar_lea.vmem [#allocation3], %s542
        // Predicated region
        $region65: #{tpu_custom_call.1} parent=63 // pred_check
          %p544 = pneg %p78
        $region66: #{tpu_custom_call.1} parent=63 // pred_check_branch
          %546 = sbr.rel (%p544) target = $region68
        $region67: #{tpu_custom_call.1} parent=63 // pred_region
          %547 = dma.done %s540, 256
        $region68: #{tpu_custom_call.1} parent=63 // pred_fallthru
          _
        %s548 = sand.u32 %s35, 1
        %s549 = scalar_lea.sflag [#allocation7], %s548
        %s550 = sand.u32 %s93, 1
        %s551 = smul.addr %s550, 48
        %s552 = scalar_lea.vmem [#allocation6], %s551
        // Predicated region
        $region69: #{tpu_custom_call.1} parent=63 // pred_check
          %p553 = pneg %p106
        $region70: #{tpu_custom_call.1} parent=63 // pred_check_branch
          %555 = sbr.rel (%p553) target = $region72
        $region71: #{tpu_custom_call.1} parent=63 // pred_region
          %556 = dma.done %s549, 768
        $region72: #{tpu_custom_call.1} parent=63 // pred_fallthru
          _
        %s557 = sand.u32 %s35, 1
        %s558 = scalar_lea.sflag [#allocation7], %s557
        %s559 = sand.u32 %s125, 1
        %s560 = smul.addr %s559, 16
        %s561 = scalar_lea.vmem [#allocation8], %s560
        // Predicated region
        $region73: #{tpu_custom_call.1} parent=63 // pred_check
          %p562 = pneg %p138
        $region74: #{tpu_custom_call.1} parent=63 // pred_check_branch
          %564 = sbr.rel (%p562) target = $region76
        $region75: #{tpu_custom_call.1} parent=63 // pred_region
          %565 = dma.done %s558, 256
        $region76: #{tpu_custom_call.1} parent=63 // pred_fallthru
          _
        // Predicated region
        $region77: #{tpu_custom_call.1} parent=63 // pred_check
          %p566 = pneg %p159
        $region78: #{tpu_custom_call.1} parent=63 // pred_check_branch
          %568 = sbr.rel (%p566) target = $region80
        $region79: #{tpu_custom_call.1} parent=63 // pred_region
          %569 = dma.done [#allocation10], 2048
        $region80: #{tpu_custom_call.1} parent=63 // pred_fallthru
          _
        // Predicated region
        $region81: #{tpu_custom_call.1} parent=63 // pred_check
          %p570 = pneg %p180
        $region82: #{tpu_custom_call.1} parent=63 // pred_check_branch
          %572 = sbr.rel (%p570) target = $region84
        $region83: #{tpu_custom_call.1} parent=63 // pred_region
          %573 = dma.done [#allocation10], 16
        $region84: #{tpu_custom_call.1} parent=63 // pred_fallthru
          _
        // Predicated region
        $region85: #{tpu_custom_call.1} parent=63 // pred_check
          %p574 = pneg %p201
        $region86: #{tpu_custom_call.1} parent=63 // pred_check_branch
          %576 = sbr.rel (%p574) target = $region88
        $region87: #{tpu_custom_call.1} parent=63 // pred_region
          %577 = dma.done [#allocation13], 12288
        $region88: #{tpu_custom_call.1} parent=63 // pred_fallthru
          _
        // Predicated region
        $region89: #{tpu_custom_call.1} parent=63 // pred_check
          %p578 = pneg %p222
        $region90: #{tpu_custom_call.1} parent=63 // pred_check_branch
          %580 = sbr.rel (%p578) target = $region92
        $region91: #{tpu_custom_call.1} parent=63 // pred_region
          %581 = dma.done [#allocation13], 32
        $region92: #{tpu_custom_call.1} parent=63 // pred_fallthru
          _
        // Predicated region
        $region93: #{tpu_custom_call.1} parent=63 // pred_check
          %p582 = pneg %p243
        $region94: #{tpu_custom_call.1} parent=63 // pred_check_branch
          %584 = sbr.rel (%p582) target = $region96
        $region95: #{tpu_custom_call.1} parent=63 // pred_region
          %585 = dma.done [#allocation16], 81920
        $region96: #{tpu_custom_call.1} parent=63 // pred_fallthru
          _
        // Predicated region
        $region97: #{tpu_custom_call.1} parent=63 // pred_check
          %p586 = pneg %p264
        $region98: #{tpu_custom_call.1} parent=63 // pred_check_branch
          %588 = sbr.rel (%p586) target = $region100
        $region99: #{tpu_custom_call.1} parent=63 // pred_region
          %589 = dma.done [#allocation16], 128
        $region100: #{tpu_custom_call.1} parent=63 // pred_fallthru
          _
        // Predicated region
        $region101: #{tpu_custom_call.1} parent=63 // pred_check
          %p590 = pneg %p285
        $region102: #{tpu_custom_call.1} parent=63 // pred_check_branch
          %592 = sbr.rel (%p590) target = $region104
        $region103: #{tpu_custom_call.1} parent=63 // pred_region
          %593 = dma.done [#allocation19], 2048
        $region104: #{tpu_custom_call.1} parent=63 // pred_fallthru
          _
        // Predicated region
        $region105: #{tpu_custom_call.1} parent=63 // pred_check
          %p594 = pneg %p306
        $region106: #{tpu_custom_call.1} parent=63 // pred_check_branch
          %596 = sbr.rel (%p594) target = $region108
        $region107: #{tpu_custom_call.1} parent=63 // pred_region
          %597 = dma.done [#allocation19], 16
        $region108: #{tpu_custom_call.1} parent=63 // pred_fallthru
          _
        %s598 = sand.u32 %s65, 1
        %s599 = scalar_lea.sflag [#allocation4], %s598
        %s600 = sand.u32 %s65, 1
        %s601 = smul.addr %s600, 16
        %s602 = scalar_lea.vmem [#allocation3], %s601
        %p603 = pneg %p78
        %p604 = pneg %p75
        %s605 = sand.u32 %s35, 1
        %s606 = scalar_lea.sflag [#allocation7], %s605
        %s607 = sand.u32 %s93, 1
        %s608 = smul.addr %s607, 48
        %s609 = scalar_lea.vmem [#allocation6], %s608
        %p610 = pneg %p106
        %p611 = pneg %p103
        %s612 = sand.u32 %s35, 1
        %s613 = scalar_lea.sflag [#allocation7], %s612
        %s614 = sand.u32 %s125, 1
        %s615 = smul.addr %s614, 16
        %s616 = scalar_lea.vmem [#allocation8], %s615
        %p617 = pneg %p138
        %p618 = pneg %p135
        %p619 = pneg %p159
        %p620 = pneg %p156
        %p621 = pneg %p180
        %p622 = pneg %p177
        %p623 = pneg %p201
        %p624 = pneg %p198
        %p625 = pneg %p222
        %p626 = pneg %p219
        %p627 = pneg %p243
        %p628 = pneg %p240
        %p629 = pneg %p264
        %p630 = pneg %p261
        %p631 = pneg %p285
        %p632 = pneg %p282
        %p633 = pneg %p306
        %p634 = pneg %p303
        %p635 = pneg %p334
        %p636 = pneg %p331
        %s637 = sand.u32 %s321, 1
        %s638 = scalar_lea.sflag [#allocation5], %s637
        %s639 = sand.u32 %s321, 1
        %s640 = smul.addr %s639, 48
        %s641 = scalar_lea.vmem [#allocation21], %s640
        %s642 = smul.u32 %s40, 3
        %s643 = ssub.s32 %s642, 1
        %p644 = scmp.gt.s32.totalorder %s643, 0
        %s645 = scalar_select %p644, %s643, 0
        %s646 = smul.u32 2, %s645
        %s647 = smul.u32 6, %s40
        %s648 = ssub.s32 8, %s647
        %p649 = scmp.lt.s32.totalorder %s648, 6
        %s650 = scalar_select %p649, %s648, 6
        %s651 = smul.u32 128, %s650
        %s652 = sadd.s32 %s40, 1
        %s653 = smul.u32 %s652, 3
        %s654 = smul.u32 2, %s653
        %s655 = smul.u32 6, %s40
        %s656 = smul.u32 %s40, 48
        %s657 = ssub.s32 %s656, 16
        %p658 = scmp.lt.s32.totalorder %s657, 0
        %s659 = sadd.s32 %s656, 64
        %p660 = scmp.gt.s32.totalorder %s659, 40
        %p661 = por %p658, %p660
        %662 = vst [vmem:[#allocation2] sm:$0xff] 0.0
        %663 = vst [vmem:[#allocation2 + $0x58] sm:$0xff] 0.0
        %v664 = vld [vmem:[%s543] sm:$0xff]
        %v665 = vld [vmem:[%s543 + $0x8] sm:$0xff]
        %v666 = vld [vmem:[%s552] sm:$0xff]
        %v667 = vld [vmem:[%s552 + $0x8] sm:$0xff]
        %v668 = vld [vmem:[%s552 + $0x10] sm:$0xff]
        %v669 = vld [vmem:[%s552 + $0x18] sm:$0xff]
        %v670 = vld [vmem:[%s552 + $0x20] sm:$0xff]
        %v671 = vld [vmem:[%s552 + $0x28] sm:$0xff]
        %v672 = vld [vmem:[%s561] sm:$0xff]
        %v673 = vld [vmem:[%s561 + $0x8] sm:$0xff]
        %v674 = vld [vmem:[#allocation9] sm:$0xff]
        %v675 = vld [vmem:[#allocation9 + $0x8] sm:$0xff]
        %v676 = vld [vmem:[#allocation9 + $0x10] sm:$0xff]
        %v677 = vld [vmem:[#allocation9 + $0x18] sm:$0xff]
        %v678 = vld [vmem:[#allocation9 + $0x20] sm:$0xff]
        %v679 = vld [vmem:[#allocation9 + $0x28] sm:$0xff]
        %v680 = vld [vmem:[#allocation9 + $0x30] sm:$0xff]
        %v681 = vld [vmem:[#allocation9 + $0x38] sm:$0xff]
        %v682 = vld [vmem:[#allocation9 + $0x40] sm:$0xff]
        %v683 = vld [vmem:[#allocation9 + $0x48] sm:$0xff]
        %v684 = vld [vmem:[#allocation9 + $0x50] sm:$0xff]
        %v685 = vld [vmem:[#allocation9 + $0x58] sm:$0xff]
        %v686 = vld [vmem:[#allocation9 + $0x60] sm:$0xff]
        %v687 = vld [vmem:[#allocation9 + $0x68] sm:$0xff]
        %v688 = vld [vmem:[#allocation9 + $0x70] sm:$0xff]
        %v689 = vld [vmem:[#allocation9 + $0x78] sm:$0xff]
        %v690 = vld [vmem:[#allocation11] sm:$0x1]
        %v692 = vlaneseq
        %v693 = vshrl.u32 %v692, 7
        %v694 = vsub.s32 0, %v693
        %v695 = vrot.slane %v690, %v694
        %697 = vmatprep.subr.mxu0 0.0
        %698 = vmatpush1.msra.mxu0 %v674
        %699 = vmatprep.subr.mxu0 0.0
        %700 = vmatpush1.msra.mxu0 %v675
        %701 = vmatprep.subr.mxu0 0.0
        %702 = vmatpush1.msra.mxu0 %v676
        %703 = vmatprep.subr.mxu0 0.0
        %704 = vmatpush1.msra.mxu0 %v677
        %705 = vmatprep.subr.mxu0 0.0
        %706 = vmatpush1.msra.mxu0 %v678
        %707 = vmatprep.subr.mxu0 0.0
        %708 = vmatpush1.msra.mxu0 %v679
        %709 = vmatprep.subr.mxu0 0.0
        %710 = vmatpush1.msra.mxu0 %v680
        %711 = vmatprep.subr.mxu0 0.0
        %712 = vmatpush1.msra.mxu0 %v681
        %713 = vmatprep.subr.mxu0 0.0
        %714 = vmatpush1.msra.mxu0 %v682
        %715 = vmatprep.subr.mxu0 0.0
        %716 = vmatpush1.msra.mxu0 %v683
        %717 = vmatprep.subr.mxu0 0.0
        %718 = vmatpush1.msra.mxu0 %v684
        %719 = vmatprep.subr.mxu0 0.0
        %720 = vmatpush1.msra.mxu0 %v685
        %721 = vmatprep.subr.mxu0 0.0
        %722 = vmatpush1.msra.mxu0 %v686
        %723 = vmatprep.subr.mxu0 0.0
        %724 = vmatpush1.msra.mxu0 %v687
        %725 = vmatprep.subr.mxu0 0.0
        %726 = vmatpush1.msra.mxu0 %v688
        %727 = vmatprep.subr.mxu0 0.0
        %728 = vmatpush1.msra.mxu0 %v689
        %729 = vmatprep.subr.mxu0 0.0
        %730 = vmatpush1.msra.mxu0 0.0
        %731 = vmatprep.subr.mxu0 0.0
        %732 = vmatpush1.msra.mxu0 0.0
        %733 = vmatprep.subr.mxu0 0.0
        %734 = vmatpush1.msra.mxu0 0.0
        %735 = vmatprep.subr.mxu0 0.0
        %736 = vmatpush1.msra.mxu0 0.0
        %737 = vmatprep.subr.mxu0 0.0
        %738 = vmatpush1.msra.mxu0 0.0
        %739 = vmatprep.subr.mxu0 0.0
        %740 = vmatpush1.msra.mxu0 0.0
        %741 = vmatprep.subr.mxu0 0.0
        %742 = vmatpush1.msra.mxu0 0.0
        %743 = vmatprep.subr.mxu0 0.0
        %744 = vmatpush1.msra.mxu0 0.0
        %745 = vmatprep.subr.mxu0 0.0
        %746 = vmatpush1.msra.mxu0 0.0
        %747 = vmatprep.subr.mxu0 0.0
        %748 = vmatpush1.msra.mxu0 0.0
        %749 = vmatprep.subr.mxu0 0.0
        %750 = vmatpush1.msra.mxu0 0.0
        %751 = vmatprep.subr.mxu0 0.0
        %752 = vmatpush1.msra.mxu0 0.0
        %753 = vmatprep.subr.mxu0 0.0
        %754 = vmatpush1.msra.mxu0 0.0
        %755 = vmatprep.subr.mxu0 0.0
        %756 = vmatpush1.msra.mxu0 0.0
        %757 = vmatprep.subr.mxu0 0.0
        %758 = vmatpush1.msra.mxu0 0.0
        %759 = vmatprep.subr.mxu0 0.0
        %760 = vmatpush1.msra.mxu0 0.0
        %761 = vmatprep.mubr.f32.mxu0 0.0
        %762 = vmatmul.mubr.f32.gmra.mrb[0].mxu0 %v664
        %v763 = vpop.f32.mrb[0].mxu0
        %v764 = vadd.f32 %v695, %v763
        %v765 = vpop.f32.mrb[0].mxu0
        %766 = vmatprep.mubr.f32.mxu0 0.0
        %767 = vmatmul.mubr.f32.gmra.mrb[0].mxu0 %v665
        %v768 = vpop.f32.mrb[0].mxu0
        %v769 = vadd.f32 %v695, %v768
        %v770 = vpop.f32.mrb[0].mxu0
        %771 = vmatprep.mubr.f32.mxu0 0.0
        %772 = vmatmul.mubr.f32.gmra.mrb[0].mxu0 %v666
        %v773 = vpop.f32.mrb[0].mxu0
        %v774 = vadd.f32 %v695, %v773
        %v775 = vpop.f32.mrb[0].mxu0
        %776 = vmatprep.mubr.f32.mxu0 0.0
        %777 = vmatmul.mubr.f32.gmra.mrb[0].mxu0 %v667
        %v778 = vpop.f32.mrb[0].mxu0
        %v779 = vadd.f32 %v695, %v778
        %v780 = vpop.f32.mrb[0].mxu0
        %781 = vmatprep.mubr.f32.mxu0 0.0
        %782 = vmatmul.mubr.f32.gmra.mrb[0].mxu0 %v668
        %v783 = vpop.f32.mrb[0].mxu0
        %v784 = vadd.f32 %v695, %v783
        %v785 = vpop.f32.mrb[0].mxu0
        %786 = vmatprep.mubr.f32.mxu0 0.0
        %787 = vmatmul.mubr.f32.gmra.mrb[0].mxu0 %v669
        %v788 = vpop.f32.mrb[0].mxu0
        %v789 = vadd.f32 %v695, %v788
        %v790 = vpop.f32.mrb[0].mxu0
        %791 = vmatprep.mubr.f32.mxu0 0.0
        %792 = vmatmul.mubr.f32.gmra.mrb[0].mxu0 %v670
        %v793 = vpop.f32.mrb[0].mxu0
        %v794 = vadd.f32 %v695, %v793
        %v795 = vpop.f32.mrb[0].mxu0
        %796 = vmatprep.mubr.f32.mxu0 0.0
        %797 = vmatmul.mubr.f32.gmra.mrb[0].mxu0 %v671
        %v798 = vpop.f32.mrb[0].mxu0
        %v799 = vadd.f32 %v695, %v798
        %v800 = vpop.f32.mrb[0].mxu0
        %801 = vmatprep.mubr.f32.mxu0 0.0
        %802 = vmatmul.mubr.f32.gmra.mrb[0].mxu0 %v672
        %v803 = vpop.f32.mrb[0].mxu0
        %v804 = vadd.f32 %v695, %v803
        %v805 = vpop.f32.mrb[0].mxu0
        %806 = vmatprep.mubr.f32.mxu0 0.0
        %807 = vmatmul.mubr.f32.gmra.mrb[0].mxu0 %v673
        %v808 = vpop.f32.mrb[0].mxu0
        %v809 = vadd.f32 %v695, %v808
        %v810 = vpop.f32.mrb[0].mxu0
        %811 = vdwg.mxu0
        %v812 = vld [vmem:[#allocation12] sm:$0xff]
        %v813 = vld [vmem:[#allocation12 + $0x8] sm:$0xff]
        %v814 = vld [vmem:[#allocation12 + $0x10] sm:$0xff]
        %v815 = vld [vmem:[#allocation12 + $0x18] sm:$0xff]
        %v816 = vld [vmem:[#allocation12 + $0x20] sm:$0xff]
        %v817 = vld [vmem:[#allocation12 + $0x28] sm:$0xff]
        %v818 = vld [vmem:[#allocation12 + $0x30] sm:$0xff]
        %v819 = vld [vmem:[#allocation12 + $0x38] sm:$0xff]
        %v820 = vld [vmem:[#allocation12 + $0x40] sm:$0xff]
        %v821 = vld [vmem:[#allocation12 + $0x48] sm:$0xff]
        %v822 = vld [vmem:[#allocation12 + $0x50] sm:$0xff]
        %v823 = vld [vmem:[#allocation12 + $0x58] sm:$0xff]
        %v824 = vld [vmem:[#allocation12 + $0x60] sm:$0xff]
        %v825 = vld [vmem:[#allocation12 + $0x68] sm:$0xff]
        %v826 = vld [vmem:[#allocation12 + $0x70] sm:$0xff]
        %v827 = vld [vmem:[#allocation12 + $0x78] sm:$0xff]
        %v828 = vld [vmem:[#allocation12 + $0x80] sm:$0xff]
        %v829 = vld [vmem:[#allocation12 + $0x88] sm:$0xff]
        %v830 = vld [vmem:[#allocation12 + $0x90] sm:$0xff]
        %v831 = vld [vmem:[#allocation12 + $0x98] sm:$0xff]
        %v832 = vld [vmem:[#allocation12 + $0xa0] sm:$0xff]
        %v833 = vld [vmem:[#allocation12 + $0xa8] sm:$0xff]
        %v834 = vld [vmem:[#allocation12 + $0xb0] sm:$0xff]
        %v835 = vld [vmem:[#allocation12 + $0xb8] sm:$0xff]
        %v836 = vld [vmem:[#allocation12 + $0xc0] sm:$0xff]
        %v837 = vld [vmem:[#allocation12 + $0xc8] sm:$0xff]
        %v838 = vld [vmem:[#allocation12 + $0xd0] sm:$0xff]
        %v839 = vld [vmem:[#allocation12 + $0xd8] sm:$0xff]
        %v840 = vld [vmem:[#allocation12 + $0xe0] sm:$0xff]
        %v841 = vld [vmem:[#allocation12 + $0xe8] sm:$0xff]
        %v842 = vld [vmem:[#allocation12 + $0xf0] sm:$0xff]
        %v843 = vld [vmem:[#allocation12 + $0xf8] sm:$0xff]
        %v844 = vld [vmem:[#allocation12 + $0x100] sm:$0xff]
        %v845 = vld [vmem:[#allocation12 + $0x108] sm:$0xff]
        %v846 = vld [vmem:[#allocation12 + $0x110] sm:$0xff]
        %v847 = vld [vmem:[#allocation12 + $0x118] sm:$0xff]
        %v848 = vld [vmem:[#allocation12 + $0x120] sm:$0xff]
        %v849 = vld [vmem:[#allocation12 + $0x128] sm:$0xff]
        %v850 = vld [vmem:[#allocation12 + $0x130] sm:$0xff]
        %v851 = vld [vmem:[#allocation12 + $0x138] sm:$0xff]
        %v852 = vld [vmem:[#allocation12 + $0x140] sm:$0xff]
        %v853 = vld [vmem:[#allocation12 + $0x148] sm:$0xff]
        %v854 = vld [vmem:[#allocation12 + $0x150] sm:$0xff]
        %v855 = vld [vmem:[#allocation12 + $0x158] sm:$0xff]
        %v856 = vld [vmem:[#allocation12 + $0x160] sm:$0xff]
        %v857 = vld [vmem:[#allocation12 + $0x168] sm:$0xff]
        %v858 = vld [vmem:[#allocation12 + $0x170] sm:$0xff]
        %v859 = vld [vmem:[#allocation12 + $0x178] sm:$0xff]
        %v860 = vld [vmem:[#allocation12 + $0x180] sm:$0xff]
        %v861 = vld [vmem:[#allocation12 + $0x188] sm:$0xff]
        %v862 = vld [vmem:[#allocation12 + $0x190] sm:$0xff]
        %v863 = vld [vmem:[#allocation12 + $0x198] sm:$0xff]
        %v864 = vld [vmem:[#allocation12 + $0x1a0] sm:$0xff]
        %v865 = vld [vmem:[#allocation12 + $0x1a8] sm:$0xff]
        %v866 = vld [vmem:[#allocation12 + $0x1b0] sm:$0xff]
        %v867 = vld [vmem:[#allocation12 + $0x1b8] sm:$0xff]
        %v868 = vld [vmem:[#allocation12 + $0x1c0] sm:$0xff]
        %v869 = vld [vmem:[#allocation12 + $0x1c8] sm:$0xff]
        %v870 = vld [vmem:[#allocation12 + $0x1d0] sm:$0xff]
        %v871 = vld [vmem:[#allocation12 + $0x1d8] sm:$0xff]
        %v872 = vld [vmem:[#allocation12 + $0x1e0] sm:$0xff]
        %v873 = vld [vmem:[#allocation12 + $0x1e8] sm:$0xff]
        %v874 = vld [vmem:[#allocation12 + $0x1f0] sm:$0xff]
        %v875 = vld [vmem:[#allocation12 + $0x1f8] sm:$0xff]
        %v876 = vld [vmem:[#allocation12 + $0x200] sm:$0xff]
        %v877 = vld [vmem:[#allocation12 + $0x208] sm:$0xff]
        %v878 = vld [vmem:[#allocation12 + $0x210] sm:$0xff]
        %v879 = vld [vmem:[#allocation12 + $0x218] sm:$0xff]
        %v880 = vld [vmem:[#allocation12 + $0x220] sm:$0xff]
        %v881 = vld [vmem:[#allocation12 + $0x228] sm:$0xff]
        %v882 = vld [vmem:[#allocation12 + $0x230] sm:$0xff]
        %v883 = vld [vmem:[#allocation12 + $0x238] sm:$0xff]
        %v884 = vld [vmem:[#allocation12 + $0x240] sm:$0xff]
        %v885 = vld [vmem:[#allocation12 + $0x248] sm:$0xff]
        %v886 = vld [vmem:[#allocation12 + $0x250] sm:$0xff]
        %v887 = vld [vmem:[#allocation12 + $0x258] sm:$0xff]
        %v888 = vld [vmem:[#allocation12 + $0x260] sm:$0xff]
        %v889 = vld [vmem:[#allocation12 + $0x268] sm:$0xff]
        %v890 = vld [vmem:[#allocation12 + $0x270] sm:$0xff]
        %v891 = vld [vmem:[#allocation12 + $0x278] sm:$0xff]
        %v892 = vld [vmem:[#allocation12 + $0x280] sm:$0xff]
        %v893 = vld [vmem:[#allocation12 + $0x288] sm:$0xff]
        %v894 = vld [vmem:[#allocation12 + $0x290] sm:$0xff]
        %v895 = vld [vmem:[#allocation12 + $0x298] sm:$0xff]
        %v896 = vld [vmem:[#allocation12 + $0x2a0] sm:$0xff]
        %v897 = vld [vmem:[#allocation12 + $0x2a8] sm:$0xff]
        %v898 = vld [vmem:[#allocation12 + $0x2b0] sm:$0xff]
        %v899 = vld [vmem:[#allocation12 + $0x2b8] sm:$0xff]
        %v900 = vld [vmem:[#allocation12 + $0x2c0] sm:$0xff]
        %v901 = vld [vmem:[#allocation12 + $0x2c8] sm:$0xff]
        %v902 = vld [vmem:[#allocation12 + $0x2d0] sm:$0xff]
        %v903 = vld [vmem:[#allocation12 + $0x2d8] sm:$0xff]
        %v904 = vld [vmem:[#allocation12 + $0x2e0] sm:$0xff]
        %v905 = vld [vmem:[#allocation12 + $0x2e8] sm:$0xff]
        %v906 = vld [vmem:[#allocation12 + $0x2f0] sm:$0xff]
        %v907 = vld [vmem:[#allocation12 + $0x2f8] sm:$0xff]
        %v908 = vld [vmem:[#allocation14] sm:$0x3]
        // Predicated region
        $region109: #{tpu_custom_call.1} parent=63 // pred_check
          %p909 = pneg %p661
        $region110: #{tpu_custom_call.1} parent=63 // pred_check_branch
          %911 = sbr.rel (%p909) target = $region112
        $region111: #{tpu_custom_call.1} parent=63 // pred_region
          %v912 = vlaneseq
          %v913 = vshrl.u32 %v912, 7
          %v914 = vadd.s32 %v913, 8
          %v915 = vadd.s32 %v913, 16
          %v916 = vadd.s32 %v913, 24
          %v917 = vadd.s32 %v913, 32
          %v918 = vadd.s32 %v913, 40
          %v919 = vadd.s32 %v913, 48
          %v920 = vadd.s32 %v913, 56
          %v921 = vadd.s32 %v913, 64
          %v922 = vadd.s32 %v913, 72
          %v923 = vstv %s657
          %v924 = vadd.s32 %v913, %v923
          %v925 = vadd.s32 %v914, %v923
          %v926 = vadd.s32 %v915, %v923
          %v927 = vadd.s32 %v916, %v923
          %v928 = vadd.s32 %v917, %v923
          %v929 = vadd.s32 %v918, %v923
          %v930 = vadd.s32 %v919, %v923
          %v931 = vadd.s32 %v920, %v923
          %v932 = vadd.s32 %v921, %v923
          %v933 = vadd.s32 %v922, %v923
          %vm934 = vcmp.ge.s32.totalorder %v924, 0
          %vm935 = vcmp.ge.s32.totalorder %v925, 0
          %vm936 = vcmp.ge.s32.totalorder %v926, 0
          %vm937 = vcmp.ge.s32.totalorder %v927, 0
          %vm938 = vcmp.ge.s32.totalorder %v928, 0
          %vm939 = vcmp.ge.s32.totalorder %v929, 0
          %vm940 = vcmp.ge.s32.totalorder %v930, 0
          %vm941 = vcmp.ge.s32.totalorder %v931, 0
          %vm942 = vcmp.ge.s32.totalorder %v932, 0
          %vm943 = vcmp.ge.s32.totalorder %v933, 0
          %vm944 = vcmp.lt.s32.totalorder %v924, 40
          %vm945 = vcmp.lt.s32.totalorder %v925, 40
          %vm946 = vcmp.lt.s32.totalorder %v926, 40
          %vm947 = vcmp.lt.s32.totalorder %v927, 40
          %vm948 = vcmp.lt.s32.totalorder %v928, 40
          %vm949 = vcmp.lt.s32.totalorder %v929, 40
          %vm950 = vcmp.lt.s32.totalorder %v930, 40
          %vm951 = vcmp.lt.s32.totalorder %v931, 40
          %vm952 = vcmp.lt.s32.totalorder %v932, 40
          %vm953 = vcmp.lt.s32.totalorder %v933, 40
          %vm954 = vmand %vm934, %vm944
          %vm955 = vmand %vm935, %vm945
          %vm956 = vmand %vm936, %vm946
          %vm957 = vmand %vm937, %vm947
          %vm958 = vmand %vm938, %vm948
          %vm959 = vmand %vm939, %vm949
          %vm960 = vmand %vm940, %vm950
          %vm961 = vmand %vm941, %vm951
          %vm962 = vmand %vm942, %vm952
          %vm963 = vmand %vm943, %vm953
          %v964 = vsel %vm954, %v764, 0.0
          %v965 = vsel %vm955, %v769, 0.0
          %v966 = vsel %vm956, %v774, 0.0
          %v967 = vsel %vm957, %v779, 0.0
          %v968 = vsel %vm958, %v784, 0.0
          %v969 = vsel %vm959, %v789, 0.0
          %v970 = vsel %vm960, %v794, 0.0
          %v971 = vsel %vm961, %v799, 0.0
          %v972 = vsel %vm962, %v804, 0.0
          %v973 = vsel %vm963, %v809, 0.0
          %974 = vst [vmem:[#allocation2 + $0x8] sm:$0xff] %v964
          %975 = vst [vmem:[#allocation2 + $0x10] sm:$0xff] %v965
          %976 = vst [vmem:[#allocation2 + $0x18] sm:$0xff] %v966
          %977 = vst [vmem:[#allocation2 + $0x20] sm:$0xff] %v967
          %978 = vst [vmem:[#allocation2 + $0x28] sm:$0xff] %v968
          %979 = vst [vmem:[#allocation2 + $0x30] sm:$0xff] %v969
          %980 = vst [vmem:[#allocation2 + $0x38] sm:$0xff] %v970
          %981 = vst [vmem:[#allocation2 + $0x40] sm:$0xff] %v971
          %982 = vst [vmem:[#allocation2 + $0x48] sm:$0xff] %v972
          %983 = vst [vmem:[#allocation2 + $0x50] sm:$0xff] %v973
        $region112: #{tpu_custom_call.1} parent=63 // pred_fallthru
          _
        %p984 = pneg %p661
        // Predicated region
        $region113: #{tpu_custom_call.1} parent=63 // pred_check
          _
        $region114: #{tpu_custom_call.1} parent=63 // pred_check_branch
          %986 = sbr.rel (%p661) target = $region116
        $region115: #{tpu_custom_call.1} parent=63 // pred_region
          %987 = vst [vmem:[#allocation2 + $0x8] sm:$0xff] %v764
          %988 = vst [vmem:[#allocation2 + $0x10] sm:$0xff] %v769
          %989 = vst [vmem:[#allocation2 + $0x18] sm:$0xff] %v774
          %990 = vst [vmem:[#allocation2 + $0x20] sm:$0xff] %v779
          %991 = vst [vmem:[#allocation2 + $0x28] sm:$0xff] %v784
          %992 = vst [vmem:[#allocation2 + $0x30] sm:$0xff] %v789
          %993 = vst [vmem:[#allocation2 + $0x38] sm:$0xff] %v794
          %994 = vst [vmem:[#allocation2 + $0x40] sm:$0xff] %v799
          %995 = vst [vmem:[#allocation2 + $0x48] sm:$0xff] %v804
          %996 = vst [vmem:[#allocation2 + $0x50] sm:$0xff] %v809
        $region116: #{tpu_custom_call.1} parent=63 // pred_fallthru
          _
        %v997 = vld [vmem:[#allocation2 + $0x5] sm:$0xff]
        %v998 = vld [vmem:[#allocation2 + $0xd] sm:$0xff]
        %v999 = vld [vmem:[#allocation2 + $0x15] sm:$0xff]
        %v1000 = vld [vmem:[#allocation2 + $0x1d] sm:$0xff]
        %v1001 = vld [vmem:[#allocation2 + $0x25] sm:$0xff]
        %v1002 = vld [vmem:[#allocation2 + $0x2d] sm:$0xff]
        %v1003 = vld [vmem:[#allocation2 + $0x35] sm:$0xff]
        %v1004 = vld [vmem:[#allocation2 + $0x3d] sm:$0xff]
        %v1005 = vld [vmem:[#allocation2 + $0x45] sm:$0xff]
        %v1006 = vld [vmem:[#allocation2 + $0x4d] sm:$0xff]
        %v1007 = vld [vmem:[#allocation2 + $0x8] sm:$0xff]
        %v1008 = vld [vmem:[#allocation2 + $0x10] sm:$0xff]
        %v1009 = vld [vmem:[#allocation2 + $0x18] sm:$0xff]
        %v1010 = vld [vmem:[#allocation2 + $0x20] sm:$0xff]
        %v1011 = vld [vmem:[#allocation2 + $0x28] sm:$0xff]
        %v1012 = vld [vmem:[#allocation2 + $0x30] sm:$0xff]
        %v1013 = vld [vmem:[#allocation2 + $0x38] sm:$0xff]
        %v1014 = vld [vmem:[#allocation2 + $0x40] sm:$0xff]
        %v1015 = vld [vmem:[#allocation2 + $0x48] sm:$0xff]
        %v1016 = vld [vmem:[#allocation2 + $0x50] sm:$0xff]
        %v1017 = vld [vmem:[#allocation2 + $0xb] sm:$0xff]
        %v1018 = vld [vmem:[#allocation2 + $0x13] sm:$0xff]
        %v1019 = vld [vmem:[#allocation2 + $0x1b] sm:$0xff]
        %v1020 = vld [vmem:[#allocation2 + $0x23] sm:$0xff]
        %v1021 = vld [vmem:[#allocation2 + $0x2b] sm:$0xff]
        %v1022 = vld [vmem:[#allocation2 + $0x33] sm:$0xff]
        %v1023 = vld [vmem:[#allocation2 + $0x3b] sm:$0xff]
        %v1024 = vld [vmem:[#allocation2 + $0x43] sm:$0xff]
        %v1025 = vld [vmem:[#allocation2 + $0x4b] sm:$0xff]
        %v1026 = vld [vmem:[#allocation2 + $0x53] sm:$0xff]
        %v1028 = vlaneseq
        %v1029 = vshrl.u32 %v1028, 7
        %v1030 = vsub.s32 0, %v1029
        %v1031 = vrot.slane %v908, %v1030
        %v1032 = vlaneseq
        %v1033 = vshrl.u32 %v1032, 7
        %v1034 = vsub.s32 1, %v1033
        %v1035 = vrot.slane %v908, %v1034
        %1038 = vmatprep.subr.mxu0 %v813
        %1039 = vmatpush1.msra.mxu0 %v812
        %1040 = vmatprep.subr.mxu0 %v815
        %1041 = vmatpush1.msra.mxu0 %v814
        %1042 = vmatprep.subr.mxu0 %v817
        %1043 = vmatpush1.msra.mxu0 %v816
        %1044 = vmatprep.subr.mxu0 %v819
        %1045 = vmatpush1.msra.mxu0 %v818
        %1046 = vmatprep.subr.mxu0 %v821
        %1047 = vmatpush1.msra.mxu0 %v820
        %1048 = vmatprep.subr.mxu0 %v823
        %1049 = vmatpush1.msra.mxu0 %v822
        %1050 = vmatprep.subr.mxu0 %v825
        %1051 = vmatpush1.msra.mxu0 %v824
        %1052 = vmatprep.subr.mxu0 %v827
        %1053 = vmatpush1.msra.mxu0 %v826
        %1054 = vmatprep.subr.mxu0 %v829
        %1055 = vmatpush1.msra.mxu0 %v828
        %1056 = vmatprep.subr.mxu0 %v831
        %1057 = vmatpush1.msra.mxu0 %v830
        %1058 = vmatprep.subr.mxu0 %v833
        %1059 = vmatpush1.msra.mxu0 %v832
        %1060 = vmatprep.subr.mxu0 %v835
        %1061 = vmatpush1.msra.mxu0 %v834
        %1062 = vmatprep.subr.mxu0 %v837
        %1063 = vmatpush1.msra.mxu0 %v836
        %1064 = vmatprep.subr.mxu0 %v839
        %1065 = vmatpush1.msra.mxu0 %v838
        %1066 = vmatprep.subr.mxu0 %v841
        %1067 = vmatpush1.msra.mxu0 %v840
        %1068 = vmatprep.subr.mxu0 %v843
        %1069 = vmatpush1.msra.mxu0 %v842
        %1070 = vmatprep.subr.mxu0 %v845
        %1071 = vmatpush1.msra.mxu0 %v844
        %1072 = vmatprep.subr.mxu0 %v847
        %1073 = vmatpush1.msra.mxu0 %v846
        %1074 = vmatprep.subr.mxu0 %v849
        %1075 = vmatpush1.msra.mxu0 %v848
        %1076 = vmatprep.subr.mxu0 %v851
        %1077 = vmatpush1.msra.mxu0 %v850
        %1078 = vmatprep.subr.mxu0 %v853
        %1079 = vmatpush1.msra.mxu0 %v852
        %1080 = vmatprep.subr.mxu0 %v855
        %1081 = vmatpush1.msra.mxu0 %v854
        %1082 = vmatprep.subr.mxu0 %v857
        %1083 = vmatpush1.msra.mxu0 %v856
        %1084 = vmatprep.subr.mxu0 %v859
        %1085 = vmatpush1.msra.mxu0 %v858
        %1086 = vmatprep.subr.mxu0 %v861
        %1087 = vmatpush1.msra.mxu0 %v860
        %1088 = vmatprep.subr.mxu0 %v863
        %1089 = vmatpush1.msra.mxu0 %v862
        %1090 = vmatprep.subr.mxu0 %v865
        %1091 = vmatpush1.msra.mxu0 %v864
        %1092 = vmatprep.subr.mxu0 %v867
        %1093 = vmatpush1.msra.mxu0 %v866
        %1094 = vmatprep.subr.mxu0 %v869
        %1095 = vmatpush1.msra.mxu0 %v868
        %1096 = vmatprep.subr.mxu0 %v871
        %1097 = vmatpush1.msra.mxu0 %v870
        %1098 = vmatprep.subr.mxu0 %v873
        %1099 = vmatpush1.msra.mxu0 %v872
        %1100 = vmatprep.subr.mxu0 %v875
        %1101 = vmatpush1.msra.mxu0 %v874
        %1102 = vmatprep.mubr.f32.mxu0 %v1007
        %1103 = vmatmul.mubr.f32.gmra.mrb[0].mxu0 %v997
        %v1104 = vpop.f32.mrb[0].mxu0
        %v1105 = vadd.f32 %v1031, %v1104
        %v1106 = vpop.f32.mrb[0].mxu0
        %v1107 = vadd.f32 %v1035, %v1106
        %1108 = vmatprep.mubr.f32.mxu0 %v1008
        %1109 = vmatmul.mubr.f32.gmra.mrb[0].mxu0 %v998
        %v1110 = vpop.f32.mrb[0].mxu0
        %v1111 = vadd.f32 %v1031, %v1110
        %v1112 = vpop.f32.mrb[0].mxu0
        %v1113 = vadd.f32 %v1035, %v1112
        %1114 = vmatprep.mubr.f32.mxu0 %v1009
        %1115 = vmatmul.mubr.f32.gmra.mrb[0].mxu0 %v999
        %v1116 = vpop.f32.mrb[0].mxu0
        %v1117 = vadd.f32 %v1031, %v1116
        %v1118 = vpop.f32.mrb[0].mxu0
        %v1119 = vadd.f32 %v1035, %v1118
        %1120 = vmatprep.mubr.f32.mxu0 %v1010
        %1121 = vmatmul.mubr.f32.gmra.mrb[0].mxu0 %v1000
        %v1122 = vpop.f32.mrb[0].mxu0
        %v1123 = vadd.f32 %v1031, %v1122
        %v1124 = vpop.f32.mrb[0].mxu0
        %v1125 = vadd.f32 %v1035, %v1124
        %1126 = vmatprep.mubr.f32.mxu0 %v1011
        %1127 = vmatmul.mubr.f32.gmra.mrb[0].mxu0 %v1001
        %v1128 = vpop.f32.mrb[0].mxu0
        %v1129 = vadd.f32 %v1031, %v1128
        %v1130 = vpop.f32.mrb[0].mxu0
        %v1131 = vadd.f32 %v1035, %v1130
        %1132 = vmatprep.mubr.f32.mxu0 %v1012
        %1133 = vmatmul.mubr.f32.gmra.mrb[0].mxu0 %v1002
        %v1134 = vpop.f32.mrb[0].mxu0
        %v1135 = vadd.f32 %v1031, %v1134
        %v1136 = vpop.f32.mrb[0].mxu0
        %v1137 = vadd.f32 %v1035, %v1136
        %1138 = vmatprep.mubr.f32.mxu0 %v1013
        %1139 = vmatmul.mubr.f32.gmra.mrb[0].mxu0 %v1003
        %v1140 = vpop.f32.mrb[0].mxu0
        %v1141 = vadd.f32 %v1031, %v1140
        %v1142 = vpop.f32.mrb[0].mxu0
        %v1143 = vadd.f32 %v1035, %v1142
        %1144 = vmatprep.mubr.f32.mxu0 %v1014
        %1145 = vmatmul.mubr.f32.gmra.mrb[0].mxu0 %v1004
        %v1146 = vpop.f32.mrb[0].mxu0
        %v1147 = vadd.f32 %v1031, %v1146
        %v1148 = vpop.f32.mrb[0].mxu0
        %v1149 = vadd.f32 %v1035, %v1148
        %1150 = vmatprep.mubr.f32.mxu0 %v1015
        %1151 = vmatmul.mubr.f32.gmra.mrb[0].mxu0 %v1005
        %v1152 = vpop.f32.mrb[0].mxu0
        %v1153 = vadd.f32 %v1031, %v1152
        %v1154 = vpop.f32.mrb[0].mxu0
        %v1155 = vadd.f32 %v1035, %v1154
        %1156 = vmatprep.mubr.f32.mxu0 %v1016
        %1157 = vmatmul.mubr.f32.gmra.mrb[0].mxu0 %v1006
        %v1158 = vpop.f32.mrb[0].mxu0
        %v1159 = vadd.f32 %v1031, %v1158
        %v1160 = vpop.f32.mrb[0].mxu0
        %v1161 = vadd.f32 %v1035, %v1160
        %1162 = vdwg.mxu0
        %1163 = vmatprep.subr.mxu0 %v877
        %1164 = vmatpush1.msra.mxu0 %v876
        %1165 = vmatprep.subr.mxu0 %v879
        %1166 = vmatpush1.msra.mxu0 %v878
        %1167 = vmatprep.subr.mxu0 %v881
        %1168 = vmatpush1.msra.mxu0 %v880
        %1169 = vmatprep.subr.mxu0 %v883
        %1170 = vmatpush1.msra.mxu0 %v882
        %1171 = vmatprep.subr.mxu0 %v885
        %1172 = vmatpush1.msra.mxu0 %v884
        %1173 = vmatprep.subr.mxu0 %v887
        %1174 = vmatpush1.msra.mxu0 %v886
        %1175 = vmatprep.subr.mxu0 %v889
        %1176 = vmatpush1.msra.mxu0 %v888
        %1177 = vmatprep.subr.mxu0 %v891
        %1178 = vmatpush1.msra.mxu0 %v890
        %1179 = vmatprep.subr.mxu0 %v893
        %1180 = vmatpush1.msra.mxu0 %v892
        %1181 = vmatprep.subr.mxu0 %v895
        %1182 = vmatpush1.msra.mxu0 %v894
        %1183 = vmatprep.subr.mxu0 %v897
        %1184 = vmatpush1.msra.mxu0 %v896
        %1185 = vmatprep.subr.mxu0 %v899
        %1186 = vmatpush1.msra.mxu0 %v898
        %1187 = vmatprep.subr.mxu0 %v901
        %1188 = vmatpush1.msra.mxu0 %v900
        %1189 = vmatprep.subr.mxu0 %v903
        %1190 = vmatpush1.msra.mxu0 %v902
        %1191 = vmatprep.subr.mxu0 %v905
        %1192 = vmatpush1.msra.mxu0 %v904
        %1193 = vmatprep.subr.mxu0 %v907
        %1194 = vmatpush1.msra.mxu0 %v906
        %1195 = vmatprep.subr.mxu0 0.0
        %1196 = vmatpush1.msra.mxu0 0.0
        %1197 = vmatprep.subr.mxu0 0.0
        %1198 = vmatpush1.msra.mxu0 0.0
        %1199 = vmatprep.subr.mxu0 0.0
        %1200 = vmatpush1.msra.mxu0 0.0
        %1201 = vmatprep.subr.mxu0 0.0
        %1202 = vmatpush1.msra.mxu0 0.0
        %1203 = vmatprep.subr.mxu0 0.0
        %1204 = vmatpush1.msra.mxu0 0.0
        %1205 = vmatprep.subr.mxu0 0.0
        %1206 = vmatpush1.msra.mxu0 0.0
        %1207 = vmatprep.subr.mxu0 0.0
        %1208 = vmatpush1.msra.mxu0 0.0
        %1209 = vmatprep.subr.mxu0 0.0
        %1210 = vmatpush1.msra.mxu0 0.0
        %1211 = vmatprep.subr.mxu0 0.0
        %1212 = vmatpush1.msra.mxu0 0.0
        %1213 = vmatprep.subr.mxu0 0.0
        %1214 = vmatpush1.msra.mxu0 0.0
        %1215 = vmatprep.subr.mxu0 0.0
        %1216 = vmatpush1.msra.mxu0 0.0
        %1217 = vmatprep.subr.mxu0 0.0
        %1218 = vmatpush1.msra.mxu0 0.0
        %1219 = vmatprep.subr.mxu0 0.0
        %1220 = vmatpush1.msra.mxu0 0.0
        %1221 = vmatprep.subr.mxu0 0.0
        %1222 = vmatpush1.msra.mxu0 0.0
        %1223 = vmatprep.subr.mxu0 0.0
        %1224 = vmatpush1.msra.mxu0 0.0
        %1225 = vmatprep.subr.mxu0 0.0
        %1226 = vmatpush1.msra.mxu0 0.0
        %1227 = vmatprep.mubr.f32.mxu0 0.0
        %1228 = vmatmul.mubr.f32.gmra.mrb[0].mxu0 %v1017
        %v1229 = vpop.f32.mrb[0].mxu0
        %v1230 = vadd.f32 %v1105, %v1229
        %v1231 = vpop.f32.mrb[0].mxu0
        %v1232 = vadd.f32 %v1107, %v1231
        %1233 = vmatprep.mubr.f32.mxu0 0.0
        %1234 = vmatmul.mubr.f32.gmra.mrb[0].mxu0 %v1018
        %v1235 = vpop.f32.mrb[0].mxu0
        %v1236 = vadd.f32 %v1111, %v1235
        %v1237 = vpop.f32.mrb[0].mxu0
        %v1238 = vadd.f32 %v1113, %v1237
        %1239 = vmatprep.mubr.f32.mxu0 0.0
        %1240 = vmatmul.mubr.f32.gmra.mrb[0].mxu0 %v1019
        %v1241 = vpop.f32.mrb[0].mxu0
        %v1242 = vadd.f32 %v1117, %v1241
        %v1243 = vpop.f32.mrb[0].mxu0
        %v1244 = vadd.f32 %v1119, %v1243
        %1245 = vmatprep.mubr.f32.mxu0 0.0
        %1246 = vmatmul.mubr.f32.gmra.mrb[0].mxu0 %v1020
        %v1247 = vpop.f32.mrb[0].mxu0
        %v1248 = vadd.f32 %v1123, %v1247
        %v1249 = vpop.f32.mrb[0].mxu0
        %v1250 = vadd.f32 %v1125, %v1249
        %1251 = vmatprep.mubr.f32.mxu0 0.0
        %1252 = vmatmul.mubr.f32.gmra.mrb[0].mxu0 %v1021
        %v1253 = vpop.f32.mrb[0].mxu0
        %v1254 = vadd.f32 %v1129, %v1253
        %v1255 = vpop.f32.mrb[0].mxu0
        %v1256 = vadd.f32 %v1131, %v1255
        %1257 = vmatprep.mubr.f32.mxu0 0.0
        %1258 = vmatmul.mubr.f32.gmra.mrb[0].mxu0 %v1022
        %v1259 = vpop.f32.mrb[0].mxu0
        %v1260 = vadd.f32 %v1135, %v1259
        %v1261 = vpop.f32.mrb[0].mxu0
        %v1262 = vadd.f32 %v1137, %v1261
        %1263 = vmatprep.mubr.f32.mxu0 0.0
        %1264 = vmatmul.mubr.f32.gmra.mrb[0].mxu0 %v1023
        %v1265 = vpop.f32.mrb[0].mxu0
        %v1266 = vadd.f32 %v1141, %v1265
        %v1267 = vpop.f32.mrb[0].mxu0
        %v1268 = vadd.f32 %v1143, %v1267
        %1269 = vmatprep.mubr.f32.mxu0 0.0
        %1270 = vmatmul.mubr.f32.gmra.mrb[0].mxu0 %v1024
        %v1271 = vpop.f32.mrb[0].mxu0
        %v1272 = vadd.f32 %v1147, %v1271
        %v1273 = vpop.f32.mrb[0].mxu0
        %v1274 = vadd.f32 %v1149, %v1273
        %1275 = vmatprep.mubr.f32.mxu0 0.0
        %1276 = vmatmul.mubr.f32.gmra.mrb[0].mxu0 %v1025
        %v1277 = vpop.f32.mrb[0].mxu0
        %v1278 = vadd.f32 %v1153, %v1277
        %v1279 = vpop.f32.mrb[0].mxu0
        %v1280 = vadd.f32 %v1155, %v1279
        %1281 = vmatprep.mubr.f32.mxu0 0.0
        %1282 = vmatmul.mubr.f32.gmra.mrb[0].mxu0 %v1026
        %v1283 = vpop.f32.mrb[0].mxu0
        %v1284 = vadd.f32 %v1159, %v1283
        %v1285 = vpop.f32.mrb[0].mxu0
        %v1286 = vadd.f32 %v1161, %v1285
        %1287 = vdwg.mxu0
        %v1288 = vmul.f32 %v1232, 0.5
        %v1289 = vmul.f32 %v1238, 0.5
        %v1290 = vmul.f32 %v1244, 0.5
        %v1291 = vmul.f32 %v1250, 0.5
        %v1292 = vmul.f32 %v1256, 0.5
        %v1293 = vmul.f32 %v1262, 0.5
        %v1294 = vmul.f32 %v1268, 0.5
        %v1295 = vmul.f32 %v1274, 0.5
        %v1296 = vmul.f32 %v1280, 0.5
        %v1297 = vmul.f32 %v1286, 0.5
        %v1298 = vtanh.pop %v1288
        %v1299 = vtanh.pop %v1289
        %v1300 = vtanh.pop %v1290
        %v1301 = vtanh.pop %v1291
        %v1302 = vtanh.pop %v1292
        %v1303 = vtanh.pop %v1293
        %v1304 = vtanh.pop %v1294
        %v1305 = vtanh.pop %v1295
        %v1306 = vtanh.pop %v1296
        %v1307 = vtanh.pop %v1297
        %v1308 = vmul.f32 %v1298, 0.5
        %v1309 = vmul.f32 %v1299, 0.5
        %v1310 = vmul.f32 %v1300, 0.5
        %v1311 = vmul.f32 %v1301, 0.5
        %v1312 = vmul.f32 %v1302, 0.5
        %v1313 = vmul.f32 %v1303, 0.5
        %v1314 = vmul.f32 %v1304, 0.5
        %v1315 = vmul.f32 %v1305, 0.5
        %v1316 = vmul.f32 %v1306, 0.5
        %v1317 = vmul.f32 %v1307, 0.5
        %v1318 = vadd.f32 %v1308, 0.5
        %v1319 = vadd.f32 %v1309, 0.5
        %v1320 = vadd.f32 %v1310, 0.5
        %v1321 = vadd.f32 %v1311, 0.5
        %v1322 = vadd.f32 %v1312, 0.5
        %v1323 = vadd.f32 %v1313, 0.5
        %v1324 = vadd.f32 %v1314, 0.5
        %v1325 = vadd.f32 %v1315, 0.5
        %v1326 = vadd.f32 %v1316, 0.5
        %v1327 = vadd.f32 %v1317, 0.5
        %v1328 = vmul.f32 %v1230, %v1318
        %v1329 = vmul.f32 %v1236, %v1319
        %v1330 = vmul.f32 %v1242, %v1320
        %v1331 = vmul.f32 %v1248, %v1321
        %v1332 = vmul.f32 %v1254, %v1322
        %v1333 = vmul.f32 %v1260, %v1323
        %v1334 = vmul.f32 %v1266, %v1324
        %v1335 = vmul.f32 %v1272, %v1325
        %v1336 = vmul.f32 %v1278, %v1326
        %v1337 = vmul.f32 %v1284, %v1327
        %v1338 = vadd.f32 %v1328, %v764
        %v1339 = vadd.f32 %v1329, %v769
        %v1340 = vadd.f32 %v1330, %v774
        %v1341 = vadd.f32 %v1331, %v779
        %v1342 = vadd.f32 %v1332, %v784
        %v1343 = vadd.f32 %v1333, %v789
        %v1344 = vadd.f32 %v1334, %v794
        %v1345 = vadd.f32 %v1335, %v799
        %v1346 = vadd.f32 %v1336, %v804
        %v1347 = vadd.f32 %v1337, %v809
        %v1348 = vmul.f32 %v1338, 0.70710677
        %v1349 = vmul.f32 %v1339, 0.70710677
        %v1350 = vmul.f32 %v1340, 0.70710677
        %v1351 = vmul.f32 %v1341, 0.70710677
        %v1352 = vmul.f32 %v1342, 0.70710677
        %v1353 = vmul.f32 %v1343, 0.70710677
        %v1354 = vmul.f32 %v1344, 0.70710677
        %v1355 = vmul.f32 %v1345, 0.70710677
        %v1356 = vmul.f32 %v1346, 0.70710677
        %v1357 = vmul.f32 %v1347, 0.70710677
        %v1358 = vld [vmem:[#allocation15] sm:$0xff]
        %v1359 = vld [vmem:[#allocation15 + $0x8] sm:$0xff]
        %v1360 = vld [vmem:[#allocation15 + $0x10] sm:$0xff]
        %v1361 = vld [vmem:[#allocation15 + $0x18] sm:$0xff]
        %v1362 = vld [vmem:[#allocation15 + $0x20] sm:$0xff]
        %v1363 = vld [vmem:[#allocation15 + $0x28] sm:$0xff]
        %v1364 = vld [vmem:[#allocation15 + $0x30] sm:$0xff]
        %v1365 = vld [vmem:[#allocation15 + $0x38] sm:$0xff]
        %v1366 = vld [vmem:[#allocation15 + $0x40] sm:$0xff]
        %v1367 = vld [vmem:[#allocation15 + $0x48] sm:$0xff]
        %v1368 = vld [vmem:[#allocation15 + $0x50] sm:$0xff]
        %v1369 = vld [vmem:[#allocation15 + $0x58] sm:$0xff]
        %v1370 = vld [vmem:[#allocation15 + $0x60] sm:$0xff]
        %v1371 = vld [vmem:[#allocation15 + $0x68] sm:$0xff]
        %v1372 = vld [vmem:[#allocation15 + $0x70] sm:$0xff]
        %v1373 = vld [vmem:[#allocation15 + $0x78] sm:$0xff]
        %v1374 = vld [vmem:[#allocation15 + $0x80] sm:$0xff]
        %v1375 = vld [vmem:[#allocation15 + $0x88] sm:$0xff]
        %v1376 = vld [vmem:[#allocation15 + $0x90] sm:$0xff]
        %v1377 = vld [vmem:[#allocation15 + $0x98] sm:$0xff]
        %v1378 = vld [vmem:[#allocation15 + $0xa0] sm:$0xff]
        %v1379 = vld [vmem:[#allocation15 + $0xa8] sm:$0xff]
        %v1380 = vld [vmem:[#allocation15 + $0xb0] sm:$0xff]
        %v1381 = vld [vmem:[#allocation15 + $0xb8] sm:$0xff]
        %v1382 = vld [vmem:[#allocation15 + $0xc0] sm:$0xff]
        %v1383 = vld [vmem:[#allocation15 + $0xc8] sm:$0xff]
        %v1384 = vld [vmem:[#allocation15 + $0xd0] sm:$0xff]
        %v1385 = vld [vmem:[#allocation15 + $0xd8] sm:$0xff]
        %v1386 = vld [vmem:[#allocation15 + $0xe0] sm:$0xff]
        %v1387 = vld [vmem:[#allocation15 + $0xe8] sm:$0xff]
        %v1388 = vld [vmem:[#allocation15 + $0xf0] sm:$0xff]
        %v1389 = vld [vmem:[#allocation15 + $0xf8] sm:$0xff]
        %v1390 = vld [vmem:[#allocation15 + $0x100] sm:$0xff]
        %v1391 = vld [vmem:[#allocation15 + $0x108] sm:$0xff]
        %v1392 = vld [vmem:[#allocation15 + $0x110] sm:$0xff]
        %v1393 = vld [vmem:[#allocation15 + $0x118] sm:$0xff]
        %v1394 = vld [vmem:[#allocation15 + $0x120] sm:$0xff]
        %v1395 = vld [vmem:[#allocation15 + $0x128] sm:$0xff]
        %v1396 = vld [vmem:[#allocation15 + $0x130] sm:$0xff]
        %v1397 = vld [vmem:[#allocation15 + $0x138] sm:$0xff]
        %v1398 = vld [vmem:[#allocation15 + $0x140] sm:$0xff]
        %v1399 = vld [vmem:[#allocation15 + $0x148] sm:$0xff]
        %v1400 = vld [vmem:[#allocation15 + $0x150] sm:$0xff]
        %v1401 = vld [vmem:[#allocation15 + $0x158] sm:$0xff]
        %v1402 = vld [vmem:[#allocation15 + $0x160] sm:$0xff]
        %v1403 = vld [vmem:[#allocation15 + $0x168] sm:$0xff]
        %v1404 = vld [vmem:[#allocation15 + $0x170] sm:$0xff]
        %v1405 = vld [vmem:[#allocation15 + $0x178] sm:$0xff]
        %v1406 = vld [vmem:[#allocation15 + $0x180] sm:$0xff]
        %v1407 = vld [vmem:[#allocation15 + $0x188] sm:$0xff]
        %v1408 = vld [vmem:[#allocation15 + $0x190] sm:$0xff]
        %v1409 = vld [vmem:[#allocation15 + $0x198] sm:$0xff]
        %v1410 = vld [vmem:[#allocation15 + $0x1a0] sm:$0xff]
        %v1411 = vld [vmem:[#allocation15 + $0x1a8] sm:$0xff]
        %v1412 = vld [vmem:[#allocation15 + $0x1b0] sm:$0xff]
        %v1413 = vld [vmem:[#allocation15 + $0x1b8] sm:$0xff]
        %v1414 = vld [vmem:[#allocation15 + $0x1c0] sm:$0xff]
        %v1415 = vld [vmem:[#allocation15 + $0x1c8] sm:$0xff]
        %v1416 = vld [vmem:[#allocation15 + $0x1d0] sm:$0xff]
        %v1417 = vld [vmem:[#allocation15 + $0x1d8] sm:$0xff]
        %v1418 = vld [vmem:[#allocation15 + $0x1e0] sm:$0xff]
        %v1419 = vld [vmem:[#allocation15 + $0x1e8] sm:$0xff]
        %v1420 = vld [vmem:[#allocation15 + $0x1f0] sm:$0xff]
        %v1421 = vld [vmem:[#allocation15 + $0x1f8] sm:$0xff]
        %v1422 = vld [vmem:[#allocation15 + $0x200] sm:$0xff]
        %v1423 = vld [vmem:[#allocation15 + $0x208] sm:$0xff]
        %v1424 = vld [vmem:[#allocation15 + $0x210] sm:$0xff]
        %v1425 = vld [vmem:[#allocation15 + $0x218] sm:$0xff]
        %v1426 = vld [vmem:[#allocation15 + $0x220] sm:$0xff]
        %v1427 = vld [vmem:[#allocation15 + $0x228] sm:$0xff]
        %v1428 = vld [vmem:[#allocation15 + $0x230] sm:$0xff]
        %v1429 = vld [vmem:[#allocation15 + $0x238] sm:$0xff]
        %v1430 = vld [vmem:[#allocation15 + $0x240] sm:$0xff]
        %v1431 = vld [vmem:[#allocation15 + $0x248] sm:$0xff]
        %v1432 = vld [vmem:[#allocation15 + $0x250] sm:$0xff]
        %v1433 = vld [vmem:[#allocation15 + $0x258] sm:$0xff]
        %v1434 = vld [vmem:[#allocation15 + $0x260] sm:$0xff]
        %v1435 = vld [vmem:[#allocation15 + $0x268] sm:$0xff]
        %v1436 = vld [vmem:[#allocation15 + $0x270] sm:$0xff]
        %v1437 = vld [vmem:[#allocation15 + $0x278] sm:$0xff]
        %v1438 = vld [vmem:[#allocation15 + $0x280] sm:$0xff]
        %v1439 = vld [vmem:[#allocation15 + $0x288] sm:$0xff]
        %v1440 = vld [vmem:[#allocation15 + $0x290] sm:$0xff]
        %v1441 = vld [vmem:[#allocation15 + $0x298] sm:$0xff]
        %v1442 = vld [vmem:[#allocation15 + $0x2a0] sm:$0xff]
        %v1443 = vld [vmem:[#allocation15 + $0x2a8] sm:$0xff]
        %v1444 = vld [vmem:[#allocation15 + $0x2b0] sm:$0xff]
        %v1445 = vld [vmem:[#allocation15 + $0x2b8] sm:$0xff]
        %v1446 = vld [vmem:[#allocation15 + $0x2c0] sm:$0xff]
        %v1447 = vld [vmem:[#allocation15 + $0x2c8] sm:$0xff]
        %v1448 = vld [vmem:[#allocation15 + $0x2d0] sm:$0xff]
        %v1449 = vld [vmem:[#allocation15 + $0x2d8] sm:$0xff]
        %v1450 = vld [vmem:[#allocation15 + $0x2e0] sm:$0xff]
        %v1451 = vld [vmem:[#allocation15 + $0x2e8] sm:$0xff]
        %v1452 = vld [vmem:[#allocation15 + $0x2f0] sm:$0xff]
        %v1453 = vld [vmem:[#allocation15 + $0x2f8] sm:$0xff]
        %v1454 = vld [vmem:[#allocation15 + $0x300] sm:$0xff]
        %v1455 = vld [vmem:[#allocation15 + $0x308] sm:$0xff]
        %v1456 = vld [vmem:[#allocation15 + $0x310] sm:$0xff]
        %v1457 = vld [vmem:[#allocation15 + $0x318] sm:$0xff]
        %v1458 = vld [vmem:[#allocation15 + $0x320] sm:$0xff]
        %v1459 = vld [vmem:[#allocation15 + $0x328] sm:$0xff]
        %v1460 = vld [vmem:[#allocation15 + $0x330] sm:$0xff]
        %v1461 = vld [vmem:[#allocation15 + $0x338] sm:$0xff]
        %v1462 = vld [vmem:[#allocation15 + $0x340] sm:$0xff]
        %v1463 = vld [vmem:[#allocation15 + $0x348] sm:$0xff]
        %v1464 = vld [vmem:[#allocation15 + $0x350] sm:$0xff]
        %v1465 = vld [vmem:[#allocation15 + $0x358] sm:$0xff]
        %v1466 = vld [vmem:[#allocation15 + $0x360] sm:$0xff]
        %v1467 = vld [vmem:[#allocation15 + $0x368] sm:$0xff]
        %v1468 = vld [vmem:[#allocation15 + $0x370] sm:$0xff]
        %v1469 = vld [vmem:[#allocation15 + $0x378] sm:$0xff]
        %v1470 = vld [vmem:[#allocation15 + $0x380] sm:$0xff]
        %v1471 = vld [vmem:[#allocation15 + $0x388] sm:$0xff]
        %v1472 = vld [vmem:[#allocation15 + $0x390] sm:$0xff]
        %v1473 = vld [vmem:[#allocation15 + $0x398] sm:$0xff]
        %v1474 = vld [vmem:[#allocation15 + $0x3a0] sm:$0xff]
        %v1475 = vld [vmem:[#allocation15 + $0x3a8] sm:$0xff]
        %v1476 = vld [vmem:[#allocation15 + $0x3b0] sm:$0xff]
        %v1477 = vld [vmem:[#allocation15 + $0x3b8] sm:$0xff]
        %v1478 = vld [vmem:[#allocation15 + $0x3c0] sm:$0xff]
        %v1479 = vld [vmem:[#allocation15 + $0x3c8] sm:$0xff]
        %v1480 = vld [vmem:[#allocation15 + $0x3d0] sm:$0xff]
        %v1481 = vld [vmem:[#allocation15 + $0x3d8] sm:$0xff]
        %v1482 = vld [vmem:[#allocation15 + $0x3e0] sm:$0xff]
        %v1483 = vld [vmem:[#allocation15 + $0x3e8] sm:$0xff]
        %v1484 = vld [vmem:[#allocation15 + $0x3f0] sm:$0xff]
        %v1485 = vld [vmem:[#allocation15 + $0x3f8] sm:$0xff]
        %v1486 = vld [vmem:[#allocation15 + $0x400] sm:$0xff]
        %v1487 = vld [vmem:[#allocation15 + $0x408] sm:$0xff]
        %v1488 = vld [vmem:[#allocation15 + $0x410] sm:$0xff]
        %v1489 = vld [vmem:[#allocation15 + $0x418] sm:$0xff]
        %v1490 = vld [vmem:[#allocation15 + $0x420] sm:$0xff]
        %v1491 = vld [vmem:[#allocation15 + $0x428] sm:$0xff]
        %v1492 = vld [vmem:[#allocation15 + $0x430] sm:$0xff]
        %v1493 = vld [vmem:[#allocation15 + $0x438] sm:$0xff]
        %v1494 = vld [vmem:[#allocation15 + $0x440] sm:$0xff]
        %v1495 = vld [vmem:[#allocation15 + $0x448] sm:$0xff]
        %v1496 = vld [vmem:[#allocation15 + $0x450] sm:$0xff]
        %v1497 = vld [vmem:[#allocation15 + $0x458] sm:$0xff]
        %v1498 = vld [vmem:[#allocation15 + $0x460] sm:$0xff]
        %v1499 = vld [vmem:[#allocation15 + $0x468] sm:$0xff]
        %v1500 = vld [vmem:[#allocation15 + $0x470] sm:$0xff]
        %v1501 = vld [vmem:[#allocation15 + $0x478] sm:$0xff]
        %v1502 = vld [vmem:[#allocation15 + $0x480] sm:$0xff]
        %v1503 = vld [vmem:[#allocation15 + $0x488] sm:$0xff]
        %v1504 = vld [vmem:[#allocation15 + $0x490] sm:$0xff]
        %v1505 = vld [vmem:[#allocation15 + $0x498] sm:$0xff]
        %v1506 = vld [vmem:[#allocation15 + $0x4a0] sm:$0xff]
        %v1507 = vld [vmem:[#allocation15 + $0x4a8] sm:$0xff]
        %v1508 = vld [vmem:[#allocation15 + $0x4b0] sm:$0xff]
        %v1509 = vld [vmem:[#allocation15 + $0x4b8] sm:$0xff]
        %v1510 = vld [vmem:[#allocation15 + $0x4c0] sm:$0xff]
        %v1511 = vld [vmem:[#allocation15 + $0x4c8] sm:$0xff]
        %v1512 = vld [vmem:[#allocation15 + $0x4d0] sm:$0xff]
        %v1513 = vld [vmem:[#allocation15 + $0x4d8] sm:$0xff]
        %v1514 = vld [vmem:[#allocation15 + $0x4e0] sm:$0xff]
        %v1515 = vld [vmem:[#allocation15 + $0x4e8] sm:$0xff]
        %v1516 = vld [vmem:[#allocation15 + $0x4f0] sm:$0xff]
        %v1517 = vld [vmem:[#allocation15 + $0x4f8] sm:$0xff]
        %v1518 = vld [vmem:[#allocation17] sm:$0x3]
        // Predicated region
        $region117: #{tpu_custom_call.1} parent=63 // pred_check
          %p1519 = pneg %p661
        $region118: #{tpu_custom_call.1} parent=63 // pred_check_branch
          %1521 = sbr.rel (%p1519) target = $region120
        $region119: #{tpu_custom_call.1} parent=63 // pred_region
          %v1522 = vlaneseq
          %v1523 = vshrl.u32 %v1522, 7
          %v1524 = vadd.s32 %v1523, 8
          %v1525 = vadd.s32 %v1523, 16
          %v1526 = vadd.s32 %v1523, 24
          %v1527 = vadd.s32 %v1523, 32
          %v1528 = vadd.s32 %v1523, 40
          %v1529 = vadd.s32 %v1523, 48
          %v1530 = vadd.s32 %v1523, 56
          %v1531 = vadd.s32 %v1523, 64
          %v1532 = vadd.s32 %v1523, 72
          %v1533 = vstv %s657
          %v1534 = vadd.s32 %v1523, %v1533
          %v1535 = vadd.s32 %v1524, %v1533
          %v1536 = vadd.s32 %v1525, %v1533
          %v1537 = vadd.s32 %v1526, %v1533
          %v1538 = vadd.s32 %v1527, %v1533
          %v1539 = vadd.s32 %v1528, %v1533
          %v1540 = vadd.s32 %v1529, %v1533
          %v1541 = vadd.s32 %v1530, %v1533
          %v1542 = vadd.s32 %v1531, %v1533
          %v1543 = vadd.s32 %v1532, %v1533
          %vm1544 = vcmp.ge.s32.totalorder %v1534, 0
          %vm1545 = vcmp.ge.s32.totalorder %v1535, 0
          %vm1546 = vcmp.ge.s32.totalorder %v1536, 0
          %vm1547 = vcmp.ge.s32.totalorder %v1537, 0
          %vm1548 = vcmp.ge.s32.totalorder %v1538, 0
          %vm1549 = vcmp.ge.s32.totalorder %v1539, 0
          %vm1550 = vcmp.ge.s32.totalorder %v1540, 0
          %vm1551 = vcmp.ge.s32.totalorder %v1541, 0
          %vm1552 = vcmp.ge.s32.totalorder %v1542, 0
          %vm1553 = vcmp.ge.s32.totalorder %v1543, 0
          %vm1554 = vcmp.lt.s32.totalorder %v1534, 40
          %vm1555 = vcmp.lt.s32.totalorder %v1535, 40
          %vm1556 = vcmp.lt.s32.totalorder %v1536, 40
          %vm1557 = vcmp.lt.s32.totalorder %v1537, 40
          %vm1558 = vcmp.lt.s32.totalorder %v1538, 40
          %vm1559 = vcmp.lt.s32.totalorder %v1539, 40
          %vm1560 = vcmp.lt.s32.totalorder %v1540, 40
          %vm1561 = vcmp.lt.s32.totalorder %v1541, 40
          %vm1562 = vcmp.lt.s32.totalorder %v1542, 40
          %vm1563 = vcmp.lt.s32.totalorder %v1543, 40
          %vm1564 = vmand %vm1544, %vm1554
          %vm1565 = vmand %vm1545, %vm1555
          %vm1566 = vmand %vm1546, %vm1556
          %vm1567 = vmand %vm1547, %vm1557
          %vm1568 = vmand %vm1548, %vm1558
          %vm1569 = vmand %vm1549, %vm1559
          %vm1570 = vmand %vm1550, %vm1560
          %vm1571 = vmand %vm1551, %vm1561
          %vm1572 = vmand %vm1552, %vm1562
          %vm1573 = vmand %vm1553, %vm1563
          %v1574 = vsel %vm1564, %v1348, 0.0
          %v1575 = vsel %vm1565, %v1349, 0.0
          %v1576 = vsel %vm1566, %v1350, 0.0
          %v1577 = vsel %vm1567, %v1351, 0.0
          %v1578 = vsel %vm1568, %v1352, 0.0
          %v1579 = vsel %vm1569, %v1353, 0.0
          %v1580 = vsel %vm1570, %v1354, 0.0
          %v1581 = vsel %vm1571, %v1355, 0.0
          %v1582 = vsel %vm1572, %v1356, 0.0
          %v1583 = vsel %vm1573, %v1357, 0.0
          %1584 = vst [vmem:[#allocation2 + $0x8] sm:$0xff] %v1574
          %1585 = vst [vmem:[#allocation2 + $0x10] sm:$0xff] %v1575
          %1586 = vst [vmem:[#allocation2 + $0x18] sm:$0xff] %v1576
          %1587 = vst [vmem:[#allocation2 + $0x20] sm:$0xff] %v1577
          %1588 = vst [vmem:[#allocation2 + $0x28] sm:$0xff] %v1578
          %1589 = vst [vmem:[#allocation2 + $0x30] sm:$0xff] %v1579
          %1590 = vst [vmem:[#allocation2 + $0x38] sm:$0xff] %v1580
          %1591 = vst [vmem:[#allocation2 + $0x40] sm:$0xff] %v1581
          %1592 = vst [vmem:[#allocation2 + $0x48] sm:$0xff] %v1582
          %1593 = vst [vmem:[#allocation2 + $0x50] sm:$0xff] %v1583
        $region120: #{tpu_custom_call.1} parent=63 // pred_fallthru
          _
        %p1594 = pneg %p661
        // Predicated region
        $region121: #{tpu_custom_call.1} parent=63 // pred_check
          _
        $region122: #{tpu_custom_call.1} parent=63 // pred_check_branch
          %1596 = sbr.rel (%p661) target = $region124
        $region123: #{tpu_custom_call.1} parent=63 // pred_region
          %1597 = vst [vmem:[#allocation2 + $0x8] sm:$0xff] %v1348
          %1598 = vst [vmem:[#allocation2 + $0x10] sm:$0xff] %v1349
          %1599 = vst [vmem:[#allocation2 + $0x18] sm:$0xff] %v1350
          %1600 = vst [vmem:[#allocation2 + $0x20] sm:$0xff] %v1351
          %1601 = vst [vmem:[#allocation2 + $0x28] sm:$0xff] %v1352
          %1602 = vst [vmem:[#allocation2 + $0x30] sm:$0xff] %v1353
          %1603 = vst [vmem:[#allocation2 + $0x38] sm:$0xff] %v1354
          %1604 = vst [vmem:[#allocation2 + $0x40] sm:$0xff] %v1355
          %1605 = vst [vmem:[#allocation2 + $0x48] sm:$0xff] %v1356
          %1606 = vst [vmem:[#allocation2 + $0x50] sm:$0xff] %v1357
        $region124: #{tpu_custom_call.1} parent=63 // pred_fallthru
          _
        %v1607 = vld [vmem:[#allocation2 + $0x6] sm:$0xff]
        %v1608 = vld [vmem:[#allocation2 + $0xe] sm:$0xff]
        %v1609 = vld [vmem:[#allocation2 + $0x16] sm:$0xff]
        %v1610 = vld [vmem:[#allocation2 + $0x1e] sm:$0xff]
        %v1611 = vld [vmem:[#allocation2 + $0x26] sm:$0xff]
        %v1612 = vld [vmem:[#allocation2 + $0x2e] sm:$0xff]
        %v1613 = vld [vmem:[#allocation2 + $0x36] sm:$0xff]
        %v1614 = vld [vmem:[#allocation2 + $0x3e] sm:$0xff]
        %v1615 = vld [vmem:[#allocation2 + $0x46] sm:$0xff]
        %v1616 = vld [vmem:[#allocation2 + $0x4e] sm:$0xff]
        %v1617 = vld [vmem:[#allocation2 + $0x7] sm:$0xff]
        %v1618 = vld [vmem:[#allocation2 + $0xf] sm:$0xff]
        %v1619 = vld [vmem:[#allocation2 + $0x17] sm:$0xff]
        %v1620 = vld [vmem:[#allocation2 + $0x1f] sm:$0xff]
        %v1621 = vld [vmem:[#allocation2 + $0x27] sm:$0xff]
        %v1622 = vld [vmem:[#allocation2 + $0x2f] sm:$0xff]
        %v1623 = vld [vmem:[#allocation2 + $0x37] sm:$0xff]
        %v1624 = vld [vmem:[#allocation2 + $0x3f] sm:$0xff]
        %v1625 = vld [vmem:[#allocation2 + $0x47] sm:$0xff]
        %v1626 = vld [vmem:[#allocation2 + $0x4f] sm:$0xff]
        %v1627 = vld [vmem:[#allocation2 + $0x8] sm:$0xff]
        %v1628 = vld [vmem:[#allocation2 + $0x10] sm:$0xff]
        %v1629 = vld [vmem:[#allocation2 + $0x18] sm:$0xff]
        %v1630 = vld [vmem:[#allocation2 + $0x20] sm:$0xff]
        %v1631 = vld [vmem:[#allocation2 + $0x28] sm:$0xff]
        %v1632 = vld [vmem:[#allocation2 + $0x30] sm:$0xff]
        %v1633 = vld [vmem:[#allocation2 + $0x38] sm:$0xff]
        %v1634 = vld [vmem:[#allocation2 + $0x40] sm:$0xff]
        %v1635 = vld [vmem:[#allocation2 + $0x48] sm:$0xff]
        %v1636 = vld [vmem:[#allocation2 + $0x50] sm:$0xff]
        %v1637 = vld [vmem:[#allocation2 + $0x9] sm:$0xff]
        %v1638 = vld [vmem:[#allocation2 + $0x11] sm:$0xff]
        %v1639 = vld [vmem:[#allocation2 + $0x19] sm:$0xff]
        %v1640 = vld [vmem:[#allocation2 + $0x21] sm:$0xff]
        %v1641 = vld [vmem:[#allocation2 + $0x29] sm:$0xff]
        %v1642 = vld [vmem:[#allocation2 + $0x31] sm:$0xff]
        %v1643 = vld [vmem:[#allocation2 + $0x39] sm:$0xff]
        %v1644 = vld [vmem:[#allocation2 + $0x41] sm:$0xff]
        %v1645 = vld [vmem:[#allocation2 + $0x49] sm:$0xff]
        %v1646 = vld [vmem:[#allocation2 + $0x51] sm:$0xff]
        %v1647 = vld [vmem:[#allocation2 + $0xa] sm:$0xff]
        %v1648 = vld [vmem:[#allocation2 + $0x12] sm:$0xff]
        %v1649 = vld [vmem:[#allocation2 + $0x1a] sm:$0xff]
        %v1650 = vld [vmem:[#allocation2 + $0x22] sm:$0xff]
        %v1651 = vld [vmem:[#allocation2 + $0x2a] sm:$0xff]
        %v1652 = vld [vmem:[#allocation2 + $0x32] sm:$0xff]
        %v1653 = vld [vmem:[#allocation2 + $0x3a] sm:$0xff]
        %v1654 = vld [vmem:[#allocation2 + $0x42] sm:$0xff]
        %v1655 = vld [vmem:[#allocation2 + $0x4a] sm:$0xff]
        %v1656 = vld [vmem:[#allocation2 + $0x52] sm:$0xff]
        %v1658 = vlaneseq
        %v1659 = vshrl.u32 %v1658, 7
        %v1660 = vsub.s32 0, %v1659
        %v1661 = vrot.slane %v1518, %v1660
        %v1662 = vlaneseq
        %v1663 = vshrl.u32 %v1662, 7
        %v1664 = vsub.s32 1, %v1663
        %v1665 = vrot.slane %v1518, %v1664
        %1668 = vmatprep.subr.mxu0 %v1359
        %1669 = vmatpush1.msra.mxu0 %v1358
        %1670 = vmatprep.subr.mxu0 %v1361
        %1671 = vmatpush1.msra.mxu0 %v1360
        %1672 = vmatprep.subr.mxu0 %v1363
        %1673 = vmatpush1.msra.mxu0 %v1362
        %1674 = vmatprep.subr.mxu0 %v1365
        %1675 = vmatpush1.msra.mxu0 %v1364
        %1676 = vmatprep.subr.mxu0 %v1367
        %1677 = vmatpush1.msra.mxu0 %v1366
        %1678 = vmatprep.subr.mxu0 %v1369
        %1679 = vmatpush1.msra.mxu0 %v1368
        %1680 = vmatprep.subr.mxu0 %v1371
        %1681 = vmatpush1.msra.mxu0 %v1370
        %1682 = vmatprep.subr.mxu0 %v1373
        %1683 = vmatpush1.msra.mxu0 %v1372
        %1684 = vmatprep.subr.mxu0 %v1375
        %1685 = vmatpush1.msra.mxu0 %v1374
        %1686 = vmatprep.subr.mxu0 %v1377
        %1687 = vmatpush1.msra.mxu0 %v1376
        %1688 = vmatprep.subr.mxu0 %v1379
        %1689 = vmatpush1.msra.mxu0 %v1378
        %1690 = vmatprep.subr.mxu0 %v1381
        %1691 = vmatpush1.msra.mxu0 %v1380
        %1692 = vmatprep.subr.mxu0 %v1383
        %1693 = vmatpush1.msra.mxu0 %v1382
        %1694 = vmatprep.subr.mxu0 %v1385
        %1695 = vmatpush1.msra.mxu0 %v1384
        %1696 = vmatprep.subr.mxu0 %v1387
        %1697 = vmatpush1.msra.mxu0 %v1386
        %1698 = vmatprep.subr.mxu0 %v1389
        %1699 = vmatpush1.msra.mxu0 %v1388
        %1700 = vmatprep.subr.mxu0 %v1391
        %1701 = vmatpush1.msra.mxu0 %v1390
        %1702 = vmatprep.subr.mxu0 %v1393
        %1703 = vmatpush1.msra.mxu0 %v1392
        %1704 = vmatprep.subr.mxu0 %v1395
        %1705 = vmatpush1.msra.mxu0 %v1394
        %1706 = vmatprep.subr.mxu0 %v1397
        %1707 = vmatpush1.msra.mxu0 %v1396
        %1708 = vmatprep.subr.mxu0 %v1399
        %1709 = vmatpush1.msra.mxu0 %v1398
        %1710 = vmatprep.subr.mxu0 %v1401
        %1711 = vmatpush1.msra.mxu0 %v1400
        %1712 = vmatprep.subr.mxu0 %v1403
        %1713 = vmatpush1.msra.mxu0 %v1402
        %1714 = vmatprep.subr.mxu0 %v1405
        %1715 = vmatpush1.msra.mxu0 %v1404
        %1716 = vmatprep.subr.mxu0 %v1407
        %1717 = vmatpush1.msra.mxu0 %v1406
        %1718 = vmatprep.subr.mxu0 %v1409
        %1719 = vmatpush1.msra.mxu0 %v1408
        %1720 = vmatprep.subr.mxu0 %v1411
        %1721 = vmatpush1.msra.mxu0 %v1410
        %1722 = vmatprep.subr.mxu0 %v1413
        %1723 = vmatpush1.msra.mxu0 %v1412
        %1724 = vmatprep.subr.mxu0 %v1415
        %1725 = vmatpush1.msra.mxu0 %v1414
        %1726 = vmatprep.subr.mxu0 %v1417
        %1727 = vmatpush1.msra.mxu0 %v1416
        %1728 = vmatprep.subr.mxu0 %v1419
        %1729 = vmatpush1.msra.mxu0 %v1418
        %1730 = vmatprep.subr.mxu0 %v1421
        %1731 = vmatpush1.msra.mxu0 %v1420
        %1732 = vmatprep.mubr.f32.mxu0 %v1617
        %1733 = vmatmul.mubr.f32.gmra.mrb[0].mxu0 %v1607
        %v1734 = vpop.f32.mrb[0].mxu0
        %v1735 = vadd.f32 %v1661, %v1734
        %v1736 = vpop.f32.mrb[0].mxu0
        %v1737 = vadd.f32 %v1665, %v1736
        %1738 = vmatprep.mubr.f32.mxu0 %v1618
        %1739 = vmatmul.mubr.f32.gmra.mrb[0].mxu0 %v1608
        %v1740 = vpop.f32.mrb[0].mxu0
        %v1741 = vadd.f32 %v1661, %v1740
        %v1742 = vpop.f32.mrb[0].mxu0
        %v1743 = vadd.f32 %v1665, %v1742
        %1744 = vmatprep.mubr.f32.mxu0 %v1619
        %1745 = vmatmul.mubr.f32.gmra.mrb[0].mxu0 %v1609
        %v1746 = vpop.f32.mrb[0].mxu0
        %v1747 = vadd.f32 %v1661, %v1746
        %v1748 = vpop.f32.mrb[0].mxu0
        %v1749 = vadd.f32 %v1665, %v1748
        %1750 = vmatprep.mubr.f32.mxu0 %v1620
        %1751 = vmatmul.mubr.f32.gmra.mrb[0].mxu0 %v1610
        %v1752 = vpop.f32.mrb[0].mxu0
        %v1753 = vadd.f32 %v1661, %v1752
        %v1754 = vpop.f32.mrb[0].mxu0
        %v1755 = vadd.f32 %v1665, %v1754
        %1756 = vmatprep.mubr.f32.mxu0 %v1621
        %1757 = vmatmul.mubr.f32.gmra.mrb[0].mxu0 %v1611
        %v1758 = vpop.f32.mrb[0].mxu0
        %v1759 = vadd.f32 %v1661, %v1758
        %v1760 = vpop.f32.mrb[0].mxu0
        %v1761 = vadd.f32 %v1665, %v1760
        %1762 = vmatprep.mubr.f32.mxu0 %v1622
        %1763 = vmatmul.mubr.f32.gmra.mrb[0].mxu0 %v1612
        %v1764 = vpop.f32.mrb[0].mxu0
        %v1765 = vadd.f32 %v1661, %v1764
        %v1766 = vpop.f32.mrb[0].mxu0
        %v1767 = vadd.f32 %v1665, %v1766
        %1768 = vmatprep.mubr.f32.mxu0 %v1623
        %1769 = vmatmul.mubr.f32.gmra.mrb[0].mxu0 %v1613
        %v1770 = vpop.f32.mrb[0].mxu0
        %v1771 = vadd.f32 %v1661, %v1770
        %v1772 = vpop.f32.mrb[0].mxu0
        %v1773 = vadd.f32 %v1665, %v1772
        %1774 = vmatprep.mubr.f32.mxu0 %v1624
        %1775 = vmatmul.mubr.f32.gmra.mrb[0].mxu0 %v1614
        %v1776 = vpop.f32.mrb[0].mxu0
        %v1777 = vadd.f32 %v1661, %v1776
        %v1778 = vpop.f32.mrb[0].mxu0
        %v1779 = vadd.f32 %v1665, %v1778
        %1780 = vmatprep.mubr.f32.mxu0 %v1625
        %1781 = vmatmul.mubr.f32.gmra.mrb[0].mxu0 %v1615
        %v1782 = vpop.f32.mrb[0].mxu0
        %v1783 = vadd.f32 %v1661, %v1782
        %v1784 = vpop.f32.mrb[0].mxu0
        %v1785 = vadd.f32 %v1665, %v1784
        %1786 = vmatprep.mubr.f32.mxu0 %v1626
        %1787 = vmatmul.mubr.f32.gmra.mrb[0].mxu0 %v1616
        %v1788 = vpop.f32.mrb[0].mxu0
        %v1789 = vadd.f32 %v1661, %v1788
        %v1790 = vpop.f32.mrb[0].mxu0
        %v1791 = vadd.f32 %v1665, %v1790
        %1792 = vdwg.mxu0
        %1793 = vmatprep.subr.mxu0 %v1423
        %1794 = vmatpush1.msra.mxu0 %v1422
        %1795 = vmatprep.subr.mxu0 %v1425
        %1796 = vmatpush1.msra.mxu0 %v1424
        %1797 = vmatprep.subr.mxu0 %v1427
        %1798 = vmatpush1.msra.mxu0 %v1426
        %1799 = vmatprep.subr.mxu0 %v1429
        %1800 = vmatpush1.msra.mxu0 %v1428
        %1801 = vmatprep.subr.mxu0 %v1431
        %1802 = vmatpush1.msra.mxu0 %v1430
        %1803 = vmatprep.subr.mxu0 %v1433
        %1804 = vmatpush1.msra.mxu0 %v1432
        %1805 = vmatprep.subr.mxu0 %v1435
        %1806 = vmatpush1.msra.mxu0 %v1434
        %1807 = vmatprep.subr.mxu0 %v1437
        %1808 = vmatpush1.msra.mxu0 %v1436
        %1809 = vmatprep.subr.mxu0 %v1439
        %1810 = vmatpush1.msra.mxu0 %v1438
        %1811 = vmatprep.subr.mxu0 %v1441
        %1812 = vmatpush1.msra.mxu0 %v1440
        %1813 = vmatprep.subr.mxu0 %v1443
        %1814 = vmatpush1.msra.mxu0 %v1442
        %1815 = vmatprep.subr.mxu0 %v1445
        %1816 = vmatpush1.msra.mxu0 %v1444
        %1817 = vmatprep.subr.mxu0 %v1447
        %1818 = vmatpush1.msra.mxu0 %v1446
        %1819 = vmatprep.subr.mxu0 %v1449
        %1820 = vmatpush1.msra.mxu0 %v1448
        %1821 = vmatprep.subr.mxu0 %v1451
        %1822 = vmatpush1.msra.mxu0 %v1450
        %1823 = vmatprep.subr.mxu0 %v1453
        %1824 = vmatpush1.msra.mxu0 %v1452
        %1825 = vmatprep.subr.mxu0 %v1455
        %1826 = vmatpush1.msra.mxu0 %v1454
        %1827 = vmatprep.subr.mxu0 %v1457
        %1828 = vmatpush1.msra.mxu0 %v1456
        %1829 = vmatprep.subr.mxu0 %v1459
        %1830 = vmatpush1.msra.mxu0 %v1458
        %1831 = vmatprep.subr.mxu0 %v1461
        %1832 = vmatpush1.msra.mxu0 %v1460
        %1833 = vmatprep.subr.mxu0 %v1463
        %1834 = vmatpush1.msra.mxu0 %v1462
        %1835 = vmatprep.subr.mxu0 %v1465
        %1836 = vmatpush1.msra.mxu0 %v1464
        %1837 = vmatprep.subr.mxu0 %v1467
        %1838 = vmatpush1.msra.mxu0 %v1466
        %1839 = vmatprep.subr.mxu0 %v1469
        %1840 = vmatpush1.msra.mxu0 %v1468
        %1841 = vmatprep.subr.mxu0 %v1471
        %1842 = vmatpush1.msra.mxu0 %v1470
        %1843 = vmatprep.subr.mxu0 %v1473
        %1844 = vmatpush1.msra.mxu0 %v1472
        %1845 = vmatprep.subr.mxu0 %v1475
        %1846 = vmatpush1.msra.mxu0 %v1474
        %1847 = vmatprep.subr.mxu0 %v1477
        %1848 = vmatpush1.msra.mxu0 %v1476
        %1849 = vmatprep.subr.mxu0 %v1479
        %1850 = vmatpush1.msra.mxu0 %v1478
        %1851 = vmatprep.subr.mxu0 %v1481
        %1852 = vmatpush1.msra.mxu0 %v1480
        %1853 = vmatprep.subr.mxu0 %v1483
        %1854 = vmatpush1.msra.mxu0 %v1482
        %1855 = vmatprep.subr.mxu0 %v1485
        %1856 = vmatpush1.msra.mxu0 %v1484
        %1857 = vmatprep.mubr.f32.mxu0 %v1637
        %1858 = vmatmul.mubr.f32.gmra.mrb[0].mxu0 %v1627
        %v1859 = vpop.f32.mrb[0].mxu0
        %v1860 = vadd.f32 %v1735, %v1859
        %v1861 = vpop.f32.mrb[0].mxu0
        %v1862 = vadd.f32 %v1737, %v1861
        %1863 = vmatprep.mubr.f32.mxu0 %v1638
        %1864 = vmatmul.mubr.f32.gmra.mrb[0].mxu0 %v1628
        %v1865 = vpop.f32.mrb[0].mxu0
        %v1866 = vadd.f32 %v1741, %v1865
        %v1867 = vpop.f32.mrb[0].mxu0
        %v1868 = vadd.f32 %v1743, %v1867
        %1869 = vmatprep.mubr.f32.mxu0 %v1639
        %1870 = vmatmul.mubr.f32.gmra.mrb[0].mxu0 %v1629
        %v1871 = vpop.f32.mrb[0].mxu0
        %v1872 = vadd.f32 %v1747, %v1871
        %v1873 = vpop.f32.mrb[0].mxu0
        %v1874 = vadd.f32 %v1749, %v1873
        %1875 = vmatprep.mubr.f32.mxu0 %v1640
        %1876 = vmatmul.mubr.f32.gmra.mrb[0].mxu0 %v1630
        %v1877 = vpop.f32.mrb[0].mxu0
        %v1878 = vadd.f32 %v1753, %v1877
        %v1879 = vpop.f32.mrb[0].mxu0
        %v1880 = vadd.f32 %v1755, %v1879
        %1881 = vmatprep.mubr.f32.mxu0 %v1641
        %1882 = vmatmul.mubr.f32.gmra.mrb[0].mxu0 %v1631
        %v1883 = vpop.f32.mrb[0].mxu0
        %v1884 = vadd.f32 %v1759, %v1883
        %v1885 = vpop.f32.mrb[0].mxu0
        %v1886 = vadd.f32 %v1761, %v1885
        %1887 = vmatprep.mubr.f32.mxu0 %v1642
        %1888 = vmatmul.mubr.f32.gmra.mrb[0].mxu0 %v1632
        %v1889 = vpop.f32.mrb[0].mxu0
        %v1890 = vadd.f32 %v1765, %v1889
        %v1891 = vpop.f32.mrb[0].mxu0
        %v1892 = vadd.f32 %v1767, %v1891
        %1893 = vmatprep.mubr.f32.mxu0 %v1643
        %1894 = vmatmul.mubr.f32.gmra.mrb[0].mxu0 %v1633
        %v1895 = vpop.f32.mrb[0].mxu0
        %v1896 = vadd.f32 %v1771, %v1895
        %v1897 = vpop.f32.mrb[0].mxu0
        %v1898 = vadd.f32 %v1773, %v1897
        %1899 = vmatprep.mubr.f32.mxu0 %v1644
        %1900 = vmatmul.mubr.f32.gmra.mrb[0].mxu0 %v1634
        %v1901 = vpop.f32.mrb[0].mxu0
        %v1902 = vadd.f32 %v1777, %v1901
        %v1903 = vpop.f32.mrb[0].mxu0
        %v1904 = vadd.f32 %v1779, %v1903
        %1905 = vmatprep.mubr.f32.mxu0 %v1645
        %1906 = vmatmul.mubr.f32.gmra.mrb[0].mxu0 %v1635
        %v1907 = vpop.f32.mrb[0].mxu0
        %v1908 = vadd.f32 %v1783, %v1907
        %v1909 = vpop.f32.mrb[0].mxu0
        %v1910 = vadd.f32 %v1785, %v1909
        %1911 = vmatprep.mubr.f32.mxu0 %v1646
        %1912 = vmatmul.mubr.f32.gmra.mrb[0].mxu0 %v1636
        %v1913 = vpop.f32.mrb[0].mxu0
        %v1914 = vadd.f32 %v1789, %v1913
        %v1915 = vpop.f32.mrb[0].mxu0
        %v1916 = vadd.f32 %v1791, %v1915
        %1917 = vdwg.mxu0
        %1918 = vmatprep.subr.mxu0 %v1487
        %1919 = vmatpush1.msra.mxu0 %v1486
        %1920 = vmatprep.subr.mxu0 %v1489
        %1921 = vmatpush1.msra.mxu0 %v1488
        %1922 = vmatprep.subr.mxu0 %v1491
        %1923 = vmatpush1.msra.mxu0 %v1490
        %1924 = vmatprep.subr.mxu0 %v1493
        %1925 = vmatpush1.msra.mxu0 %v1492
        %1926 = vmatprep.subr.mxu0 %v1495
        %1927 = vmatpush1.msra.mxu0 %v1494
        %1928 = vmatprep.subr.mxu0 %v1497
        %1929 = vmatpush1.msra.mxu0 %v1496
        %1930 = vmatprep.subr.mxu0 %v1499
        %1931 = vmatpush1.msra.mxu0 %v1498
        %1932 = vmatprep.subr.mxu0 %v1501
        %1933 = vmatpush1.msra.mxu0 %v1500
        %1934 = vmatprep.subr.mxu0 %v1503
        %1935 = vmatpush1.msra.mxu0 %v1502
        %1936 = vmatprep.subr.mxu0 %v1505
        %1937 = vmatpush1.msra.mxu0 %v1504
        %1938 = vmatprep.subr.mxu0 %v1507
        %1939 = vmatpush1.msra.mxu0 %v1506
        %1940 = vmatprep.subr.mxu0 %v1509
        %1941 = vmatpush1.msra.mxu0 %v1508
        %1942 = vmatprep.subr.mxu0 %v1511
        %1943 = vmatpush1.msra.mxu0 %v1510
        %1944 = vmatprep.subr.mxu0 %v1513
        %1945 = vmatpush1.msra.mxu0 %v1512
        %1946 = vmatprep.subr.mxu0 %v1515
        %1947 = vmatpush1.msra.mxu0 %v1514
        %1948 = vmatprep.subr.mxu0 %v1517
        %1949 = vmatpush1.msra.mxu0 %v1516
        %1950 = vmatprep.subr.mxu0 0.0
        %1951 = vmatpush1.msra.mxu0 0.0
        %1952 = vmatprep.subr.mxu0 0.0
        %1953 = vmatpush1.msra.mxu0 0.0
        %1954 = vmatprep.subr.mxu0 0.0
        %1955 = vmatpush1.msra.mxu0 0.0
        %1956 = vmatprep.subr.mxu0 0.0
        %1957 = vmatpush1.msra.mxu0 0.0
        %1958 = vmatprep.subr.mxu0 0.0
        %1959 = vmatpush1.msra.mxu0 0.0
        %1960 = vmatprep.subr.mxu0 0.0
        %1961 = vmatpush1.msra.mxu0 0.0
        %1962 = vmatprep.subr.mxu0 0.0
        %1963 = vmatpush1.msra.mxu0 0.0
        %1964 = vmatprep.subr.mxu0 0.0
        %1965 = vmatpush1.msra.mxu0 0.0
        %1966 = vmatprep.subr.mxu0 0.0
        %1967 = vmatpush1.msra.mxu0 0.0
        %1968 = vmatprep.subr.mxu0 0.0
        %1969 = vmatpush1.msra.mxu0 0.0
        %1970 = vmatprep.subr.mxu0 0.0
        %1971 = vmatpush1.msra.mxu0 0.0
        %1972 = vmatprep.subr.mxu0 0.0
        %1973 = vmatpush1.msra.mxu0 0.0
        %1974 = vmatprep.subr.mxu0 0.0
        %1975 = vmatpush1.msra.mxu0 0.0
        %1976 = vmatprep.subr.mxu0 0.0
        %1977 = vmatpush1.msra.mxu0 0.0
        %1978 = vmatprep.subr.mxu0 0.0
        %1979 = vmatpush1.msra.mxu0 0.0
        %1980 = vmatprep.subr.mxu0 0.0
        %1981 = vmatpush1.msra.mxu0 0.0
        %1982 = vmatprep.mubr.f32.mxu0 0.0
        %1983 = vmatmul.mubr.f32.gmra.mrb[0].mxu0 %v1647
        %v1984 = vpop.f32.mrb[0].mxu0
        %v1985 = vadd.f32 %v1860, %v1984
        %v1986 = vpop.f32.mrb[0].mxu0
        %v1987 = vadd.f32 %v1862, %v1986
        %1988 = vmatprep.mubr.f32.mxu0 0.0
        %1989 = vmatmul.mubr.f32.gmra.mrb[0].mxu0 %v1648
        %v1990 = vpop.f32.mrb[0].mxu0
        %v1991 = vadd.f32 %v1866, %v1990
        %v1992 = vpop.f32.mrb[0].mxu0
        %v1993 = vadd.f32 %v1868, %v1992
        %1994 = vmatprep.mubr.f32.mxu0 0.0
        %1995 = vmatmul.mubr.f32.gmra.mrb[0].mxu0 %v1649
        %v1996 = vpop.f32.mrb[0].mxu0
        %v1997 = vadd.f32 %v1872, %v1996
        %v1998 = vpop.f32.mrb[0].mxu0
        %v1999 = vadd.f32 %v1874, %v1998
        %2000 = vmatprep.mubr.f32.mxu0 0.0
        %2001 = vmatmul.mubr.f32.gmra.mrb[0].mxu0 %v1650
        %v2002 = vpop.f32.mrb[0].mxu0
        %v2003 = vadd.f32 %v1878, %v2002
        %v2004 = vpop.f32.mrb[0].mxu0
        %v2005 = vadd.f32 %v1880, %v2004
        %2006 = vmatprep.mubr.f32.mxu0 0.0
        %2007 = vmatmul.mubr.f32.gmra.mrb[0].mxu0 %v1651
        %v2008 = vpop.f32.mrb[0].mxu0
        %v2009 = vadd.f32 %v1884, %v2008
        %v2010 = vpop.f32.mrb[0].mxu0
        %v2011 = vadd.f32 %v1886, %v2010
        %2012 = vmatprep.mubr.f32.mxu0 0.0
        %2013 = vmatmul.mubr.f32.gmra.mrb[0].mxu0 %v1652
        %v2014 = vpop.f32.mrb[0].mxu0
        %v2015 = vadd.f32 %v1890, %v2014
        %v2016 = vpop.f32.mrb[0].mxu0
        %v2017 = vadd.f32 %v1892, %v2016
        %2018 = vmatprep.mubr.f32.mxu0 0.0
        %2019 = vmatmul.mubr.f32.gmra.mrb[0].mxu0 %v1653
        %v2020 = vpop.f32.mrb[0].mxu0
        %v2021 = vadd.f32 %v1896, %v2020
        %v2022 = vpop.f32.mrb[0].mxu0
        %v2023 = vadd.f32 %v1898, %v2022
        %2024 = vmatprep.mubr.f32.mxu0 0.0
        %2025 = vmatmul.mubr.f32.gmra.mrb[0].mxu0 %v1654
        %v2026 = vpop.f32.mrb[0].mxu0
        %v2027 = vadd.f32 %v1902, %v2026
        %v2028 = vpop.f32.mrb[0].mxu0
        %v2029 = vadd.f32 %v1904, %v2028
        %2030 = vmatprep.mubr.f32.mxu0 0.0
        %2031 = vmatmul.mubr.f32.gmra.mrb[0].mxu0 %v1655
        %v2032 = vpop.f32.mrb[0].mxu0
        %v2033 = vadd.f32 %v1908, %v2032
        %v2034 = vpop.f32.mrb[0].mxu0
        %v2035 = vadd.f32 %v1910, %v2034
        %2036 = vmatprep.mubr.f32.mxu0 0.0
        %2037 = vmatmul.mubr.f32.gmra.mrb[0].mxu0 %v1656
        %v2038 = vpop.f32.mrb[0].mxu0
        %v2039 = vadd.f32 %v1914, %v2038
        %v2040 = vpop.f32.mrb[0].mxu0
        %v2041 = vadd.f32 %v1916, %v2040
        %2042 = vdwg.mxu0
        %v2043 = vmul.f32 %v1987, 0.5
        %v2044 = vmul.f32 %v1993, 0.5
        %v2045 = vmul.f32 %v1999, 0.5
        %v2046 = vmul.f32 %v2005, 0.5
        %v2047 = vmul.f32 %v2011, 0.5
        %v2048 = vmul.f32 %v2017, 0.5
        %v2049 = vmul.f32 %v2023, 0.5
        %v2050 = vmul.f32 %v2029, 0.5
        %v2051 = vmul.f32 %v2035, 0.5
        %v2052 = vmul.f32 %v2041, 0.5
        %v2053 = vtanh.pop %v2043
        %v2054 = vtanh.pop %v2044
        %v2055 = vtanh.pop %v2045
        %v2056 = vtanh.pop %v2046
        %v2057 = vtanh.pop %v2047
        %v2058 = vtanh.pop %v2048
        %v2059 = vtanh.pop %v2049
        %v2060 = vtanh.pop %v2050
        %v2061 = vtanh.pop %v2051
        %v2062 = vtanh.pop %v2052
        %v2063 = vmul.f32 %v2053, 0.5
        %v2064 = vmul.f32 %v2054, 0.5
        %v2065 = vmul.f32 %v2055, 0.5
        %v2066 = vmul.f32 %v2056, 0.5
        %v2067 = vmul.f32 %v2057, 0.5
        %v2068 = vmul.f32 %v2058, 0.5
        %v2069 = vmul.f32 %v2059, 0.5
        %v2070 = vmul.f32 %v2060, 0.5
        %v2071 = vmul.f32 %v2061, 0.5
        %v2072 = vmul.f32 %v2062, 0.5
        %v2073 = vadd.f32 %v2063, 0.5
        %v2074 = vadd.f32 %v2064, 0.5
        %v2075 = vadd.f32 %v2065, 0.5
        %v2076 = vadd.f32 %v2066, 0.5
        %v2077 = vadd.f32 %v2067, 0.5
        %v2078 = vadd.f32 %v2068, 0.5
        %v2079 = vadd.f32 %v2069, 0.5
        %v2080 = vadd.f32 %v2070, 0.5
        %v2081 = vadd.f32 %v2071, 0.5
        %v2082 = vadd.f32 %v2072, 0.5
        %v2083 = vmul.f32 %v1985, %v2073
        %v2084 = vmul.f32 %v1991, %v2074
        %v2085 = vmul.f32 %v1997, %v2075
        %v2086 = vmul.f32 %v2003, %v2076
        %v2087 = vmul.f32 %v2009, %v2077
        %v2088 = vmul.f32 %v2015, %v2078
        %v2089 = vmul.f32 %v2021, %v2079
        %v2090 = vmul.f32 %v2027, %v2080
        %v2091 = vmul.f32 %v2033, %v2081
        %v2092 = vmul.f32 %v2039, %v2082
        %v2093 = vadd.f32 %v2083, %v1348
        %v2094 = vadd.f32 %v2084, %v1349
        %v2095 = vadd.f32 %v2085, %v1350
        %v2096 = vadd.f32 %v2086, %v1351
        %v2097 = vadd.f32 %v2087, %v1352
        %v2098 = vadd.f32 %v2088, %v1353
        %v2099 = vadd.f32 %v2089, %v1354
        %v2100 = vadd.f32 %v2090, %v1355
        %v2101 = vadd.f32 %v2091, %v1356
        %v2102 = vadd.f32 %v2092, %v1357
        %v2103 = vmul.f32 %v2093, 0.70710677
        %v2104 = vmul.f32 %v2094, 0.70710677
        %v2105 = vmul.f32 %v2095, 0.70710677
        %v2106 = vmul.f32 %v2096, 0.70710677
        %v2107 = vmul.f32 %v2097, 0.70710677
        %v2108 = vmul.f32 %v2098, 0.70710677
        %v2109 = vmul.f32 %v2099, 0.70710677
        %v2110 = vmul.f32 %v2100, 0.70710677
        %v2111 = vmul.f32 %v2101, 0.70710677
        %v2112 = vmul.f32 %v2102, 0.70710677
        %s2113 = scalar_lea.vmem [#allocation15], 1280
        %v2114 = vld [vmem:[%s2113] sm:$0xff]
        %v2115 = vld [vmem:[%s2113 + $0x8] sm:$0xff]
        %v2116 = vld [vmem:[%s2113 + $0x10] sm:$0xff]
        %v2117 = vld [vmem:[%s2113 + $0x18] sm:$0xff]
        %v2118 = vld [vmem:[%s2113 + $0x20] sm:$0xff]
        %v2119 = vld [vmem:[%s2113 + $0x28] sm:$0xff]
        %v2120 = vld [vmem:[%s2113 + $0x30] sm:$0xff]
        %v2121 = vld [vmem:[%s2113 + $0x38] sm:$0xff]
        %v2122 = vld [vmem:[%s2113 + $0x40] sm:$0xff]
        %v2123 = vld [vmem:[%s2113 + $0x48] sm:$0xff]
        %v2124 = vld [vmem:[%s2113 + $0x50] sm:$0xff]
        %v2125 = vld [vmem:[%s2113 + $0x58] sm:$0xff]
        %v2126 = vld [vmem:[%s2113 + $0x60] sm:$0xff]
        %v2127 = vld [vmem:[%s2113 + $0x68] sm:$0xff]
        %v2128 = vld [vmem:[%s2113 + $0x70] sm:$0xff]
        %v2129 = vld [vmem:[%s2113 + $0x78] sm:$0xff]
        %v2130 = vld [vmem:[%s2113 + $0x80] sm:$0xff]
        %v2131 = vld [vmem:[%s2113 + $0x88] sm:$0xff]
        %v2132 = vld [vmem:[%s2113 + $0x90] sm:$0xff]
        %v2133 = vld [vmem:[%s2113 + $0x98] sm:$0xff]
        %v2134 = vld [vmem:[%s2113 + $0xa0] sm:$0xff]
        %v2135 = vld [vmem:[%s2113 + $0xa8] sm:$0xff]
        %v2136 = vld [vmem:[%s2113 + $0xb0] sm:$0xff]
        %v2137 = vld [vmem:[%s2113 + $0xb8] sm:$0xff]
        %v2138 = vld [vmem:[%s2113 + $0xc0] sm:$0xff]
        %v2139 = vld [vmem:[%s2113 + $0xc8] sm:$0xff]
        %v2140 = vld [vmem:[%s2113 + $0xd0] sm:$0xff]
        %v2141 = vld [vmem:[%s2113 + $0xd8] sm:$0xff]
        %v2142 = vld [vmem:[%s2113 + $0xe0] sm:$0xff]
        %v2143 = vld [vmem:[%s2113 + $0xe8] sm:$0xff]
        %v2144 = vld [vmem:[%s2113 + $0xf0] sm:$0xff]
        %v2145 = vld [vmem:[%s2113 + $0xf8] sm:$0xff]
        %v2146 = vld [vmem:[%s2113 + $0x100] sm:$0xff]
        %v2147 = vld [vmem:[%s2113 + $0x108] sm:$0xff]
        %v2148 = vld [vmem:[%s2113 + $0x110] sm:$0xff]
        %v2149 = vld [vmem:[%s2113 + $0x118] sm:$0xff]
        %v2150 = vld [vmem:[%s2113 + $0x120] sm:$0xff]
        %v2151 = vld [vmem:[%s2113 + $0x128] sm:$0xff]
        %v2152 = vld [vmem:[%s2113 + $0x130] sm:$0xff]
        %v2153 = vld [vmem:[%s2113 + $0x138] sm:$0xff]
        %v2154 = vld [vmem:[%s2113 + $0x140] sm:$0xff]
        %v2155 = vld [vmem:[%s2113 + $0x148] sm:$0xff]
        %v2156 = vld [vmem:[%s2113 + $0x150] sm:$0xff]
        %v2157 = vld [vmem:[%s2113 + $0x158] sm:$0xff]
        %v2158 = vld [vmem:[%s2113 + $0x160] sm:$0xff]
        %v2159 = vld [vmem:[%s2113 + $0x168] sm:$0xff]
        %v2160 = vld [vmem:[%s2113 + $0x170] sm:$0xff]
        %v2161 = vld [vmem:[%s2113 + $0x178] sm:$0xff]
        %v2162 = vld [vmem:[%s2113 + $0x180] sm:$0xff]
        %v2163 = vld [vmem:[%s2113 + $0x188] sm:$0xff]
        %v2164 = vld [vmem:[%s2113 + $0x190] sm:$0xff]
        %v2165 = vld [vmem:[%s2113 + $0x198] sm:$0xff]
        %v2166 = vld [vmem:[%s2113 + $0x1a0] sm:$0xff]
        %v2167 = vld [vmem:[%s2113 + $0x1a8] sm:$0xff]
        %v2168 = vld [vmem:[%s2113 + $0x1b0] sm:$0xff]
        %v2169 = vld [vmem:[%s2113 + $0x1b8] sm:$0xff]
        %v2170 = vld [vmem:[%s2113 + $0x1c0] sm:$0xff]
        %v2171 = vld [vmem:[%s2113 + $0x1c8] sm:$0xff]
        %v2172 = vld [vmem:[%s2113 + $0x1d0] sm:$0xff]
        %v2173 = vld [vmem:[%s2113 + $0x1d8] sm:$0xff]
        %v2174 = vld [vmem:[%s2113 + $0x1e0] sm:$0xff]
        %v2175 = vld [vmem:[%s2113 + $0x1e8] sm:$0xff]
        %v2176 = vld [vmem:[%s2113 + $0x1f0] sm:$0xff]
        %v2177 = vld [vmem:[%s2113 + $0x1f8] sm:$0xff]
        %v2178 = vld [vmem:[%s2113 + $0x200] sm:$0xff]
        %v2179 = vld [vmem:[%s2113 + $0x208] sm:$0xff]
        %v2180 = vld [vmem:[%s2113 + $0x210] sm:$0xff]
        %v2181 = vld [vmem:[%s2113 + $0x218] sm:$0xff]
        %v2182 = vld [vmem:[%s2113 + $0x220] sm:$0xff]
        %v2183 = vld [vmem:[%s2113 + $0x228] sm:$0xff]
        %v2184 = vld [vmem:[%s2113 + $0x230] sm:$0xff]
        %v2185 = vld [vmem:[%s2113 + $0x238] sm:$0xff]
        %v2186 = vld [vmem:[%s2113 + $0x240] sm:$0xff]
        %v2187 = vld [vmem:[%s2113 + $0x248] sm:$0xff]
        %v2188 = vld [vmem:[%s2113 + $0x250] sm:$0xff]
        %v2189 = vld [vmem:[%s2113 + $0x258] sm:$0xff]
        %v2190 = vld [vmem:[%s2113 + $0x260] sm:$0xff]
        %v2191 = vld [vmem:[%s2113 + $0x268] sm:$0xff]
        %v2192 = vld [vmem:[%s2113 + $0x270] sm:$0xff]
        %v2193 = vld [vmem:[%s2113 + $0x278] sm:$0xff]
        %v2194 = vld [vmem:[%s2113 + $0x280] sm:$0xff]
        %v2195 = vld [vmem:[%s2113 + $0x288] sm:$0xff]
        %v2196 = vld [vmem:[%s2113 + $0x290] sm:$0xff]
        %v2197 = vld [vmem:[%s2113 + $0x298] sm:$0xff]
        %v2198 = vld [vmem:[%s2113 + $0x2a0] sm:$0xff]
        %v2199 = vld [vmem:[%s2113 + $0x2a8] sm:$0xff]
        %v2200 = vld [vmem:[%s2113 + $0x2b0] sm:$0xff]
        %v2201 = vld [vmem:[%s2113 + $0x2b8] sm:$0xff]
        %v2202 = vld [vmem:[%s2113 + $0x2c0] sm:$0xff]
        %v2203 = vld [vmem:[%s2113 + $0x2c8] sm:$0xff]
        %v2204 = vld [vmem:[%s2113 + $0x2d0] sm:$0xff]
        %v2205 = vld [vmem:[%s2113 + $0x2d8] sm:$0xff]
        %v2206 = vld [vmem:[%s2113 + $0x2e0] sm:$0xff]
        %v2207 = vld [vmem:[%s2113 + $0x2e8] sm:$0xff]
        %v2208 = vld [vmem:[%s2113 + $0x2f0] sm:$0xff]
        %v2209 = vld [vmem:[%s2113 + $0x2f8] sm:$0xff]
        %v2210 = vld [vmem:[%s2113 + $0x300] sm:$0xff]
        %v2211 = vld [vmem:[%s2113 + $0x308] sm:$0xff]
        %v2212 = vld [vmem:[%s2113 + $0x310] sm:$0xff]
        %v2213 = vld [vmem:[%s2113 + $0x318] sm:$0xff]
        %v2214 = vld [vmem:[%s2113 + $0x320] sm:$0xff]
        %v2215 = vld [vmem:[%s2113 + $0x328] sm:$0xff]
        %v2216 = vld [vmem:[%s2113 + $0x330] sm:$0xff]
        %v2217 = vld [vmem:[%s2113 + $0x338] sm:$0xff]
        %v2218 = vld [vmem:[%s2113 + $0x340] sm:$0xff]
        %v2219 = vld [vmem:[%s2113 + $0x348] sm:$0xff]
        %v2220 = vld [vmem:[%s2113 + $0x350] sm:$0xff]
        %v2221 = vld [vmem:[%s2113 + $0x358] sm:$0xff]
        %v2222 = vld [vmem:[%s2113 + $0x360] sm:$0xff]
        %v2223 = vld [vmem:[%s2113 + $0x368] sm:$0xff]
        %v2224 = vld [vmem:[%s2113 + $0x370] sm:$0xff]
        %v2225 = vld [vmem:[%s2113 + $0x378] sm:$0xff]
        %v2226 = vld [vmem:[%s2113 + $0x380] sm:$0xff]
        %v2227 = vld [vmem:[%s2113 + $0x388] sm:$0xff]
        %v2228 = vld [vmem:[%s2113 + $0x390] sm:$0xff]
        %v2229 = vld [vmem:[%s2113 + $0x398] sm:$0xff]
        %v2230 = vld [vmem:[%s2113 + $0x3a0] sm:$0xff]
        %v2231 = vld [vmem:[%s2113 + $0x3a8] sm:$0xff]
        %v2232 = vld [vmem:[%s2113 + $0x3b0] sm:$0xff]
        %v2233 = vld [vmem:[%s2113 + $0x3b8] sm:$0xff]
        %v2234 = vld [vmem:[%s2113 + $0x3c0] sm:$0xff]
        %v2235 = vld [vmem:[%s2113 + $0x3c8] sm:$0xff]
        %v2236 = vld [vmem:[%s2113 + $0x3d0] sm:$0xff]
        %v2237 = vld [vmem:[%s2113 + $0x3d8] sm:$0xff]
        %v2238 = vld [vmem:[%s2113 + $0x3e0] sm:$0xff]
        %v2239 = vld [vmem:[%s2113 + $0x3e8] sm:$0xff]
        %v2240 = vld [vmem:[%s2113 + $0x3f0] sm:$0xff]
        %v2241 = vld [vmem:[%s2113 + $0x3f8] sm:$0xff]
        %v2242 = vld [vmem:[%s2113 + $0x400] sm:$0xff]
        %v2243 = vld [vmem:[%s2113 + $0x408] sm:$0xff]
        %v2244 = vld [vmem:[%s2113 + $0x410] sm:$0xff]
        %v2245 = vld [vmem:[%s2113 + $0x418] sm:$0xff]
        %v2246 = vld [vmem:[%s2113 + $0x420] sm:$0xff]
        %v2247 = vld [vmem:[%s2113 + $0x428] sm:$0xff]
        %v2248 = vld [vmem:[%s2113 + $0x430] sm:$0xff]
        %v2249 = vld [vmem:[%s2113 + $0x438] sm:$0xff]
        %v2250 = vld [vmem:[%s2113 + $0x440] sm:$0xff]
        %v2251 = vld [vmem:[%s2113 + $0x448] sm:$0xff]
        %v2252 = vld [vmem:[%s2113 + $0x450] sm:$0xff]
        %v2253 = vld [vmem:[%s2113 + $0x458] sm:$0xff]
        %v2254 = vld [vmem:[%s2113 + $0x460] sm:$0xff]
        %v2255 = vld [vmem:[%s2113 + $0x468] sm:$0xff]
        %v2256 = vld [vmem:[%s2113 + $0x470] sm:$0xff]
        %v2257 = vld [vmem:[%s2113 + $0x478] sm:$0xff]
        %v2258 = vld [vmem:[%s2113 + $0x480] sm:$0xff]
        %v2259 = vld [vmem:[%s2113 + $0x488] sm:$0xff]
        %v2260 = vld [vmem:[%s2113 + $0x490] sm:$0xff]
        %v2261 = vld [vmem:[%s2113 + $0x498] sm:$0xff]
        %v2262 = vld [vmem:[%s2113 + $0x4a0] sm:$0xff]
        %v2263 = vld [vmem:[%s2113 + $0x4a8] sm:$0xff]
        %v2264 = vld [vmem:[%s2113 + $0x4b0] sm:$0xff]
        %v2265 = vld [vmem:[%s2113 + $0x4b8] sm:$0xff]
        %v2266 = vld [vmem:[%s2113 + $0x4c0] sm:$0xff]
        %v2267 = vld [vmem:[%s2113 + $0x4c8] sm:$0xff]
        %v2268 = vld [vmem:[%s2113 + $0x4d0] sm:$0xff]
        %v2269 = vld [vmem:[%s2113 + $0x4d8] sm:$0xff]
        %v2270 = vld [vmem:[%s2113 + $0x4e0] sm:$0xff]
        %v2271 = vld [vmem:[%s2113 + $0x4e8] sm:$0xff]
        %v2272 = vld [vmem:[%s2113 + $0x4f0] sm:$0xff]
        %v2273 = vld [vmem:[%s2113 + $0x4f8] sm:$0xff]
        %s2274 = scalar_lea.vmem [#allocation17], 2
        %v2275 = vld [vmem:[%s2274] sm:$0x3]
        // Predicated region
        $region125: #{tpu_custom_call.1} parent=63 // pred_check
          %p2276 = pneg %p661
        $region126: #{tpu_custom_call.1} parent=63 // pred_check_branch
          %2278 = sbr.rel (%p2276) target = $region128
        $region127: #{tpu_custom_call.1} parent=63 // pred_region
          %v2279 = vlaneseq
          %v2280 = vshrl.u32 %v2279, 7
          %v2281 = vadd.s32 %v2280, 8
          %v2282 = vadd.s32 %v2280, 16
          %v2283 = vadd.s32 %v2280, 24
          %v2284 = vadd.s32 %v2280, 32
          %v2285 = vadd.s32 %v2280, 40
          %v2286 = vadd.s32 %v2280, 48
          %v2287 = vadd.s32 %v2280, 56
          %v2288 = vadd.s32 %v2280, 64
          %v2289 = vadd.s32 %v2280, 72
          %v2290 = vstv %s657
          %v2291 = vadd.s32 %v2280, %v2290
          %v2292 = vadd.s32 %v2281, %v2290
          %v2293 = vadd.s32 %v2282, %v2290
          %v2294 = vadd.s32 %v2283, %v2290
          %v2295 = vadd.s32 %v2284, %v2290
          %v2296 = vadd.s32 %v2285, %v2290
          %v2297 = vadd.s32 %v2286, %v2290
          %v2298 = vadd.s32 %v2287, %v2290
          %v2299 = vadd.s32 %v2288, %v2290
          %v2300 = vadd.s32 %v2289, %v2290
          %vm2301 = vcmp.ge.s32.totalorder %v2291, 0
          %vm2302 = vcmp.ge.s32.totalorder %v2292, 0
          %vm2303 = vcmp.ge.s32.totalorder %v2293, 0
          %vm2304 = vcmp.ge.s32.totalorder %v2294, 0
          %vm2305 = vcmp.ge.s32.totalorder %v2295, 0
          %vm2306 = vcmp.ge.s32.totalorder %v2296, 0
          %vm2307 = vcmp.ge.s32.totalorder %v2297, 0
          %vm2308 = vcmp.ge.s32.totalorder %v2298, 0
          %vm2309 = vcmp.ge.s32.totalorder %v2299, 0
          %vm2310 = vcmp.ge.s32.totalorder %v2300, 0
          %vm2311 = vcmp.lt.s32.totalorder %v2291, 40
          %vm2312 = vcmp.lt.s32.totalorder %v2292, 40
          %vm2313 = vcmp.lt.s32.totalorder %v2293, 40
          %vm2314 = vcmp.lt.s32.totalorder %v2294, 40
          %vm2315 = vcmp.lt.s32.totalorder %v2295, 40
          %vm2316 = vcmp.lt.s32.totalorder %v2296, 40
          %vm2317 = vcmp.lt.s32.totalorder %v2297, 40
          %vm2318 = vcmp.lt.s32.totalorder %v2298, 40
          %vm2319 = vcmp.lt.s32.totalorder %v2299, 40
          %vm2320 = vcmp.lt.s32.totalorder %v2300, 40
          %vm2321 = vmand %vm2301, %vm2311
          %vm2322 = vmand %vm2302, %vm2312
          %vm2323 = vmand %vm2303, %vm2313
          %vm2324 = vmand %vm2304, %vm2314
          %vm2325 = vmand %vm2305, %vm2315
          %vm2326 = vmand %vm2306, %vm2316
          %vm2327 = vmand %vm2307, %vm2317
          %vm2328 = vmand %vm2308, %vm2318
          %vm2329 = vmand %vm2309, %vm2319
          %vm2330 = vmand %vm2310, %vm2320
          %v2331 = vsel %vm2321, %v2103, 0.0
          %v2332 = vsel %vm2322, %v2104, 0.0
          %v2333 = vsel %vm2323, %v2105, 0.0
          %v2334 = vsel %vm2324, %v2106, 0.0
          %v2335 = vsel %vm2325, %v2107, 0.0
          %v2336 = vsel %vm2326, %v2108, 0.0
          %v2337 = vsel %vm2327, %v2109, 0.0
          %v2338 = vsel %vm2328, %v2110, 0.0
          %v2339 = vsel %vm2329, %v2111, 0.0
          %v2340 = vsel %vm2330, %v2112, 0.0
          %2341 = vst [vmem:[#allocation2 + $0x8] sm:$0xff] %v2331
          %2342 = vst [vmem:[#allocation2 + $0x10] sm:$0xff] %v2332
          %2343 = vst [vmem:[#allocation2 + $0x18] sm:$0xff] %v2333
          %2344 = vst [vmem:[#allocation2 + $0x20] sm:$0xff] %v2334
          %2345 = vst [vmem:[#allocation2 + $0x28] sm:$0xff] %v2335
          %2346 = vst [vmem:[#allocation2 + $0x30] sm:$0xff] %v2336
          %2347 = vst [vmem:[#allocation2 + $0x38] sm:$0xff] %v2337
          %2348 = vst [vmem:[#allocation2 + $0x40] sm:$0xff] %v2338
          %2349 = vst [vmem:[#allocation2 + $0x48] sm:$0xff] %v2339
          %2350 = vst [vmem:[#allocation2 + $0x50] sm:$0xff] %v2340
        $region128: #{tpu_custom_call.1} parent=63 // pred_fallthru
          _
        %p2351 = pneg %p661
        // Predicated region
        $region129: #{tpu_custom_call.1} parent=63 // pred_check
          _
        $region130: #{tpu_custom_call.1} parent=63 // pred_check_branch
          %2353 = sbr.rel (%p661) target = $region132
        $region131: #{tpu_custom_call.1} parent=63 // pred_region
          %2354 = vst [vmem:[#allocation2 + $0x8] sm:$0xff] %v2103
          %2355 = vst [vmem:[#allocation2 + $0x10] sm:$0xff] %v2104
          %2356 = vst [vmem:[#allocation2 + $0x18] sm:$0xff] %v2105
          %2357 = vst [vmem:[#allocation2 + $0x20] sm:$0xff] %v2106
          %2358 = vst [vmem:[#allocation2 + $0x28] sm:$0xff] %v2107
          %2359 = vst [vmem:[#allocation2 + $0x30] sm:$0xff] %v2108
          %2360 = vst [vmem:[#allocation2 + $0x38] sm:$0xff] %v2109
          %2361 = vst [vmem:[#allocation2 + $0x40] sm:$0xff] %v2110
          %2362 = vst [vmem:[#allocation2 + $0x48] sm:$0xff] %v2111
          %2363 = vst [vmem:[#allocation2 + $0x50] sm:$0xff] %v2112
        $region132: #{tpu_custom_call.1} parent=63 // pred_fallthru
          _
        %v2364 = vld [vmem:[#allocation2 + $0x6] sm:$0xff]
        %v2365 = vld [vmem:[#allocation2 + $0xe] sm:$0xff]
        %v2366 = vld [vmem:[#allocation2 + $0x16] sm:$0xff]
        %v2367 = vld [vmem:[#allocation2 + $0x1e] sm:$0xff]
        %v2368 = vld [vmem:[#allocation2 + $0x26] sm:$0xff]
        %v2369 = vld [vmem:[#allocation2 + $0x2e] sm:$0xff]
        %v2370 = vld [vmem:[#allocation2 + $0x36] sm:$0xff]
        %v2371 = vld [vmem:[#allocation2 + $0x3e] sm:$0xff]
        %v2372 = vld [vmem:[#allocation2 + $0x46] sm:$0xff]
        %v2373 = vld [vmem:[#allocation2 + $0x4e] sm:$0xff]
        %v2374 = vld [vmem:[#allocation2 + $0x7] sm:$0xff]
        %v2375 = vld [vmem:[#allocation2 + $0xf] sm:$0xff]
        %v2376 = vld [vmem:[#allocation2 + $0x17] sm:$0xff]
        %v2377 = vld [vmem:[#allocation2 + $0x1f] sm:$0xff]
        %v2378 = vld [vmem:[#allocation2 + $0x27] sm:$0xff]
        %v2379 = vld [vmem:[#allocation2 + $0x2f] sm:$0xff]
        %v2380 = vld [vmem:[#allocation2 + $0x37] sm:$0xff]
        %v2381 = vld [vmem:[#allocation2 + $0x3f] sm:$0xff]
        %v2382 = vld [vmem:[#allocation2 + $0x47] sm:$0xff]
        %v2383 = vld [vmem:[#allocation2 + $0x4f] sm:$0xff]
        %v2384 = vld [vmem:[#allocation2 + $0x8] sm:$0xff]
        %v2385 = vld [vmem:[#allocation2 + $0x10] sm:$0xff]
        %v2386 = vld [vmem:[#allocation2 + $0x18] sm:$0xff]
        %v2387 = vld [vmem:[#allocation2 + $0x20] sm:$0xff]
        %v2388 = vld [vmem:[#allocation2 + $0x28] sm:$0xff]
        %v2389 = vld [vmem:[#allocation2 + $0x30] sm:$0xff]
        %v2390 = vld [vmem:[#allocation2 + $0x38] sm:$0xff]
        %v2391 = vld [vmem:[#allocation2 + $0x40] sm:$0xff]
        %v2392 = vld [vmem:[#allocation2 + $0x48] sm:$0xff]
        %v2393 = vld [vmem:[#allocation2 + $0x50] sm:$0xff]
        %v2394 = vld [vmem:[#allocation2 + $0x9] sm:$0xff]
        %v2395 = vld [vmem:[#allocation2 + $0x11] sm:$0xff]
        %v2396 = vld [vmem:[#allocation2 + $0x19] sm:$0xff]
        %v2397 = vld [vmem:[#allocation2 + $0x21] sm:$0xff]
        %v2398 = vld [vmem:[#allocation2 + $0x29] sm:$0xff]
        %v2399 = vld [vmem:[#allocation2 + $0x31] sm:$0xff]
        %v2400 = vld [vmem:[#allocation2 + $0x39] sm:$0xff]
        %v2401 = vld [vmem:[#allocation2 + $0x41] sm:$0xff]
        %v2402 = vld [vmem:[#allocation2 + $0x49] sm:$0xff]
        %v2403 = vld [vmem:[#allocation2 + $0x51] sm:$0xff]
        %v2404 = vld [vmem:[#allocation2 + $0xa] sm:$0xff]
        %v2405 = vld [vmem:[#allocation2 + $0x12] sm:$0xff]
        %v2406 = vld [vmem:[#allocation2 + $0x1a] sm:$0xff]
        %v2407 = vld [vmem:[#allocation2 + $0x22] sm:$0xff]
        %v2408 = vld [vmem:[#allocation2 + $0x2a] sm:$0xff]
        %v2409 = vld [vmem:[#allocation2 + $0x32] sm:$0xff]
        %v2410 = vld [vmem:[#allocation2 + $0x3a] sm:$0xff]
        %v2411 = vld [vmem:[#allocation2 + $0x42] sm:$0xff]
        %v2412 = vld [vmem:[#allocation2 + $0x4a] sm:$0xff]
        %v2413 = vld [vmem:[#allocation2 + $0x52] sm:$0xff]
        %v2415 = vlaneseq
        %v2416 = vshrl.u32 %v2415, 7
        %v2417 = vsub.s32 0, %v2416
        %v2418 = vrot.slane %v2275, %v2417
        %v2419 = vlaneseq
        %v2420 = vshrl.u32 %v2419, 7
        %v2421 = vsub.s32 1, %v2420
        %v2422 = vrot.slane %v2275, %v2421
        %2425 = vmatprep.subr.mxu0 %v2115
        %2426 = vmatpush1.msra.mxu0 %v2114
        %2427 = vmatprep.subr.mxu0 %v2117
        %2428 = vmatpush1.msra.mxu0 %v2116
        %2429 = vmatprep.subr.mxu0 %v2119
        %2430 = vmatpush1.msra.mxu0 %v2118
        %2431 = vmatprep.subr.mxu0 %v2121
        %2432 = vmatpush1.msra.mxu0 %v2120
        %2433 = vmatprep.subr.mxu0 %v2123
        %2434 = vmatpush1.msra.mxu0 %v2122
        %2435 = vmatprep.subr.mxu0 %v2125
        %2436 = vmatpush1.msra.mxu0 %v2124
        %2437 = vmatprep.subr.mxu0 %v2127
        %2438 = vmatpush1.msra.mxu0 %v2126
        %2439 = vmatprep.subr.mxu0 %v2129
        %2440 = vmatpush1.msra.mxu0 %v2128
        %2441 = vmatprep.subr.mxu0 %v2131
        %2442 = vmatpush1.msra.mxu0 %v2130
        %2443 = vmatprep.subr.mxu0 %v2133
        %2444 = vmatpush1.msra.mxu0 %v2132
        %2445 = vmatprep.subr.mxu0 %v2135
        %2446 = vmatpush1.msra.mxu0 %v2134
        %2447 = vmatprep.subr.mxu0 %v2137
        %2448 = vmatpush1.msra.mxu0 %v2136
        %2449 = vmatprep.subr.mxu0 %v2139
        %2450 = vmatpush1.msra.mxu0 %v2138
        %2451 = vmatprep.subr.mxu0 %v2141
        %2452 = vmatpush1.msra.mxu0 %v2140
        %2453 = vmatprep.subr.mxu0 %v2143
        %2454 = vmatpush1.msra.mxu0 %v2142
        %2455 = vmatprep.subr.mxu0 %v2145
        %2456 = vmatpush1.msra.mxu0 %v2144
        %2457 = vmatprep.subr.mxu0 %v2147
        %2458 = vmatpush1.msra.mxu0 %v2146
        %2459 = vmatprep.subr.mxu0 %v2149
        %2460 = vmatpush1.msra.mxu0 %v2148
        %2461 = vmatprep.subr.mxu0 %v2151
        %2462 = vmatpush1.msra.mxu0 %v2150
        %2463 = vmatprep.subr.mxu0 %v2153
        %2464 = vmatpush1.msra.mxu0 %v2152
        %2465 = vmatprep.subr.mxu0 %v2155
        %2466 = vmatpush1.msra.mxu0 %v2154
        %2467 = vmatprep.subr.mxu0 %v2157
        %2468 = vmatpush1.msra.mxu0 %v2156
        %2469 = vmatprep.subr.mxu0 %v2159
        %2470 = vmatpush1.msra.mxu0 %v2158
        %2471 = vmatprep.subr.mxu0 %v2161
        %2472 = vmatpush1.msra.mxu0 %v2160
        %2473 = vmatprep.subr.mxu0 %v2163
        %2474 = vmatpush1.msra.mxu0 %v2162
        %2475 = vmatprep.subr.mxu0 %v2165
        %2476 = vmatpush1.msra.mxu0 %v2164
        %2477 = vmatprep.subr.mxu0 %v2167
        %2478 = vmatpush1.msra.mxu0 %v2166
        %2479 = vmatprep.subr.mxu0 %v2169
        %2480 = vmatpush1.msra.mxu0 %v2168
        %2481 = vmatprep.subr.mxu0 %v2171
        %2482 = vmatpush1.msra.mxu0 %v2170
        %2483 = vmatprep.subr.mxu0 %v2173
        %2484 = vmatpush1.msra.mxu0 %v2172
        %2485 = vmatprep.subr.mxu0 %v2175
        %2486 = vmatpush1.msra.mxu0 %v2174
        %2487 = vmatprep.subr.mxu0 %v2177
        %2488 = vmatpush1.msra.mxu0 %v2176
        %2489 = vmatprep.mubr.f32.mxu0 %v2374
        %2490 = vmatmul.mubr.f32.gmra.mrb[0].mxu0 %v2364
        %v2491 = vpop.f32.mrb[0].mxu0
        %v2492 = vadd.f32 %v2418, %v2491
        %v2493 = vpop.f32.mrb[0].mxu0
        %v2494 = vadd.f32 %v2422, %v2493
        %2495 = vmatprep.mubr.f32.mxu0 %v2375
        %2496 = vmatmul.mubr.f32.gmra.mrb[0].mxu0 %v2365
        %v2497 = vpop.f32.mrb[0].mxu0
        %v2498 = vadd.f32 %v2418, %v2497
        %v2499 = vpop.f32.mrb[0].mxu0
        %v2500 = vadd.f32 %v2422, %v2499
        %2501 = vmatprep.mubr.f32.mxu0 %v2376
        %2502 = vmatmul.mubr.f32.gmra.mrb[0].mxu0 %v2366
        %v2503 = vpop.f32.mrb[0].mxu0
        %v2504 = vadd.f32 %v2418, %v2503
        %v2505 = vpop.f32.mrb[0].mxu0
        %v2506 = vadd.f32 %v2422, %v2505
        %2507 = vmatprep.mubr.f32.mxu0 %v2377
        %2508 = vmatmul.mubr.f32.gmra.mrb[0].mxu0 %v2367
        %v2509 = vpop.f32.mrb[0].mxu0
        %v2510 = vadd.f32 %v2418, %v2509
        %v2511 = vpop.f32.mrb[0].mxu0
        %v2512 = vadd.f32 %v2422, %v2511
        %2513 = vmatprep.mubr.f32.mxu0 %v2378
        %2514 = vmatmul.mubr.f32.gmra.mrb[0].mxu0 %v2368
        %v2515 = vpop.f32.mrb[0].mxu0
        %v2516 = vadd.f32 %v2418, %v2515
        %v2517 = vpop.f32.mrb[0].mxu0
        %v2518 = vadd.f32 %v2422, %v2517
        %2519 = vmatprep.mubr.f32.mxu0 %v2379
        %2520 = vmatmul.mubr.f32.gmra.mrb[0].mxu0 %v2369
        %v2521 = vpop.f32.mrb[0].mxu0
        %v2522 = vadd.f32 %v2418, %v2521
        %v2523 = vpop.f32.mrb[0].mxu0
        %v2524 = vadd.f32 %v2422, %v2523
        %2525 = vmatprep.mubr.f32.mxu0 %v2380
        %2526 = vmatmul.mubr.f32.gmra.mrb[0].mxu0 %v2370
        %v2527 = vpop.f32.mrb[0].mxu0
        %v2528 = vadd.f32 %v2418, %v2527
        %v2529 = vpop.f32.mrb[0].mxu0
        %v2530 = vadd.f32 %v2422, %v2529
        %2531 = vmatprep.mubr.f32.mxu0 %v2381
        %2532 = vmatmul.mubr.f32.gmra.mrb[0].mxu0 %v2371
        %v2533 = vpop.f32.mrb[0].mxu0
        %v2534 = vadd.f32 %v2418, %v2533
        %v2535 = vpop.f32.mrb[0].mxu0
        %v2536 = vadd.f32 %v2422, %v2535
        %2537 = vmatprep.mubr.f32.mxu0 %v2382
        %2538 = vmatmul.mubr.f32.gmra.mrb[0].mxu0 %v2372
        %v2539 = vpop.f32.mrb[0].mxu0
        %v2540 = vadd.f32 %v2418, %v2539
        %v2541 = vpop.f32.mrb[0].mxu0
        %v2542 = vadd.f32 %v2422, %v2541
        %2543 = vmatprep.mubr.f32.mxu0 %v2383
        %2544 = vmatmul.mubr.f32.gmra.mrb[0].mxu0 %v2373
        %v2545 = vpop.f32.mrb[0].mxu0
        %v2546 = vadd.f32 %v2418, %v2545
        %v2547 = vpop.f32.mrb[0].mxu0
        %v2548 = vadd.f32 %v2422, %v2547
        %2549 = vdwg.mxu0
        %2550 = vmatprep.subr.mxu0 %v2179
        %2551 = vmatpush1.msra.mxu0 %v2178
        %2552 = vmatprep.subr.mxu0 %v2181
        %2553 = vmatpush1.msra.mxu0 %v2180
        %2554 = vmatprep.subr.mxu0 %v2183
        %2555 = vmatpush1.msra.mxu0 %v2182
        %2556 = vmatprep.subr.mxu0 %v2185
        %2557 = vmatpush1.msra.mxu0 %v2184
        %2558 = vmatprep.subr.mxu0 %v2187
        %2559 = vmatpush1.msra.mxu0 %v2186
        %2560 = vmatprep.subr.mxu0 %v2189
        %2561 = vmatpush1.msra.mxu0 %v2188
        %2562 = vmatprep.subr.mxu0 %v2191
        %2563 = vmatpush1.msra.mxu0 %v2190
        %2564 = vmatprep.subr.mxu0 %v2193
        %2565 = vmatpush1.msra.mxu0 %v2192
        %2566 = vmatprep.subr.mxu0 %v2195
        %2567 = vmatpush1.msra.mxu0 %v2194
        %2568 = vmatprep.subr.mxu0 %v2197
        %2569 = vmatpush1.msra.mxu0 %v2196
        %2570 = vmatprep.subr.mxu0 %v2199
        %2571 = vmatpush1.msra.mxu0 %v2198
        %2572 = vmatprep.subr.mxu0 %v2201
        %2573 = vmatpush1.msra.mxu0 %v2200
        %2574 = vmatprep.subr.mxu0 %v2203
        %2575 = vmatpush1.msra.mxu0 %v2202
        %2576 = vmatprep.subr.mxu0 %v2205
        %2577 = vmatpush1.msra.mxu0 %v2204
        %2578 = vmatprep.subr.mxu0 %v2207
        %2579 = vmatpush1.msra.mxu0 %v2206
        %2580 = vmatprep.subr.mxu0 %v2209
        %2581 = vmatpush1.msra.mxu0 %v2208
        %2582 = vmatprep.subr.mxu0 %v2211
        %2583 = vmatpush1.msra.mxu0 %v2210
        %2584 = vmatprep.subr.mxu0 %v2213
        %2585 = vmatpush1.msra.mxu0 %v2212
        %2586 = vmatprep.subr.mxu0 %v2215
        %2587 = vmatpush1.msra.mxu0 %v2214
        %2588 = vmatprep.subr.mxu0 %v2217
        %2589 = vmatpush1.msra.mxu0 %v2216
        %2590 = vmatprep.subr.mxu0 %v2219
        %2591 = vmatpush1.msra.mxu0 %v2218
        %2592 = vmatprep.subr.mxu0 %v2221
        %2593 = vmatpush1.msra.mxu0 %v2220
        %2594 = vmatprep.subr.mxu0 %v2223
        %2595 = vmatpush1.msra.mxu0 %v2222
        %2596 = vmatprep.subr.mxu0 %v2225
        %2597 = vmatpush1.msra.mxu0 %v2224
        %2598 = vmatprep.subr.mxu0 %v2227
        %2599 = vmatpush1.msra.mxu0 %v2226
        %2600 = vmatprep.subr.mxu0 %v2229
        %2601 = vmatpush1.msra.mxu0 %v2228
        %2602 = vmatprep.subr.mxu0 %v2231
        %2603 = vmatpush1.msra.mxu0 %v2230
        %2604 = vmatprep.subr.mxu0 %v2233
        %2605 = vmatpush1.msra.mxu0 %v2232
        %2606 = vmatprep.subr.mxu0 %v2235
        %2607 = vmatpush1.msra.mxu0 %v2234
        %2608 = vmatprep.subr.mxu0 %v2237
        %2609 = vmatpush1.msra.mxu0 %v2236
        %2610 = vmatprep.subr.mxu0 %v2239
        %2611 = vmatpush1.msra.mxu0 %v2238
        %2612 = vmatprep.subr.mxu0 %v2241
        %2613 = vmatpush1.msra.mxu0 %v2240
        %2614 = vmatprep.mubr.f32.mxu0 %v2394
        %2615 = vmatmul.mubr.f32.gmra.mrb[0].mxu0 %v2384
        %v2616 = vpop.f32.mrb[0].mxu0
        %v2617 = vadd.f32 %v2492, %v2616
        %v2618 = vpop.f32.mrb[0].mxu0
        %v2619 = vadd.f32 %v2494, %v2618
        %2620 = vmatprep.mubr.f32.mxu0 %v2395
        %2621 = vmatmul.mubr.f32.gmra.mrb[0].mxu0 %v2385
        %v2622 = vpop.f32.mrb[0].mxu0
        %v2623 = vadd.f32 %v2498, %v2622
        %v2624 = vpop.f32.mrb[0].mxu0
        %v2625 = vadd.f32 %v2500, %v2624
        %2626 = vmatprep.mubr.f32.mxu0 %v2396
        %2627 = vmatmul.mubr.f32.gmra.mrb[0].mxu0 %v2386
        %v2628 = vpop.f32.mrb[0].mxu0
        %v2629 = vadd.f32 %v2504, %v2628
        %v2630 = vpop.f32.mrb[0].mxu0
        %v2631 = vadd.f32 %v2506, %v2630
        %2632 = vmatprep.mubr.f32.mxu0 %v2397
        %2633 = vmatmul.mubr.f32.gmra.mrb[0].mxu0 %v2387
        %v2634 = vpop.f32.mrb[0].mxu0
        %v2635 = vadd.f32 %v2510, %v2634
        %v2636 = vpop.f32.mrb[0].mxu0
        %v2637 = vadd.f32 %v2512, %v2636
        %2638 = vmatprep.mubr.f32.mxu0 %v2398
        %2639 = vmatmul.mubr.f32.gmra.mrb[0].mxu0 %v2388
        %v2640 = vpop.f32.mrb[0].mxu0
        %v2641 = vadd.f32 %v2516, %v2640
        %v2642 = vpop.f32.mrb[0].mxu0
        %v2643 = vadd.f32 %v2518, %v2642
        %2644 = vmatprep.mubr.f32.mxu0 %v2399
        %2645 = vmatmul.mubr.f32.gmra.mrb[0].mxu0 %v2389
        %v2646 = vpop.f32.mrb[0].mxu0
        %v2647 = vadd.f32 %v2522, %v2646
        %v2648 = vpop.f32.mrb[0].mxu0
        %v2649 = vadd.f32 %v2524, %v2648
        %2650 = vmatprep.mubr.f32.mxu0 %v2400
        %2651 = vmatmul.mubr.f32.gmra.mrb[0].mxu0 %v2390
        %v2652 = vpop.f32.mrb[0].mxu0
        %v2653 = vadd.f32 %v2528, %v2652
        %v2654 = vpop.f32.mrb[0].mxu0
        %v2655 = vadd.f32 %v2530, %v2654
        %2656 = vmatprep.mubr.f32.mxu0 %v2401
        %2657 = vmatmul.mubr.f32.gmra.mrb[0].mxu0 %v2391
        %v2658 = vpop.f32.mrb[0].mxu0
        %v2659 = vadd.f32 %v2534, %v2658
        %v2660 = vpop.f32.mrb[0].mxu0
        %v2661 = vadd.f32 %v2536, %v2660
        %2662 = vmatprep.mubr.f32.mxu0 %v2402
        %2663 = vmatmul.mubr.f32.gmra.mrb[0].mxu0 %v2392
        %v2664 = vpop.f32.mrb[0].mxu0
        %v2665 = vadd.f32 %v2540, %v2664
        %v2666 = vpop.f32.mrb[0].mxu0
        %v2667 = vadd.f32 %v2542, %v2666
        %2668 = vmatprep.mubr.f32.mxu0 %v2403
        %2669 = vmatmul.mubr.f32.gmra.mrb[0].mxu0 %v2393
        %v2670 = vpop.f32.mrb[0].mxu0
        %v2671 = vadd.f32 %v2546, %v2670
        %v2672 = vpop.f32.mrb[0].mxu0
        %v2673 = vadd.f32 %v2548, %v2672
        %2674 = vdwg.mxu0
        %2675 = vmatprep.subr.mxu0 %v2243
        %2676 = vmatpush1.msra.mxu0 %v2242
        %2677 = vmatprep.subr.mxu0 %v2245
        %2678 = vmatpush1.msra.mxu0 %v2244
        %2679 = vmatprep.subr.mxu0 %v2247
        %2680 = vmatpush1.msra.mxu0 %v2246
        %2681 = vmatprep.subr.mxu0 %v2249
        %2682 = vmatpush1.msra.mxu0 %v2248
        %2683 = vmatprep.subr.mxu0 %v2251
        %2684 = vmatpush1.msra.mxu0 %v2250
        %2685 = vmatprep.subr.mxu0 %v2253
        %2686 = vmatpush1.msra.mxu0 %v2252
        %2687 = vmatprep.subr.mxu0 %v2255
        %2688 = vmatpush1.msra.mxu0 %v2254
        %2689 = vmatprep.subr.mxu0 %v2257
        %2690 = vmatpush1.msra.mxu0 %v2256
        %2691 = vmatprep.subr.mxu0 %v2259
        %2692 = vmatpush1.msra.mxu0 %v2258
        %2693 = vmatprep.subr.mxu0 %v2261
        %2694 = vmatpush1.msra.mxu0 %v2260
        %2695 = vmatprep.subr.mxu0 %v2263
        %2696 = vmatpush1.msra.mxu0 %v2262
        %2697 = vmatprep.subr.mxu0 %v2265
        %2698 = vmatpush1.msra.mxu0 %v2264
        %2699 = vmatprep.subr.mxu0 %v2267
        %2700 = vmatpush1.msra.mxu0 %v2266
        %2701 = vmatprep.subr.mxu0 %v2269
        %2702 = vmatpush1.msra.mxu0 %v2268
        %2703 = vmatprep.subr.mxu0 %v2271
        %2704 = vmatpush1.msra.mxu0 %v2270
        %2705 = vmatprep.subr.mxu0 %v2273
        %2706 = vmatpush1.msra.mxu0 %v2272
        %2707 = vmatprep.subr.mxu0 0.0
        %2708 = vmatpush1.msra.mxu0 0.0
        %2709 = vmatprep.subr.mxu0 0.0
        %2710 = vmatpush1.msra.mxu0 0.0
        %2711 = vmatprep.subr.mxu0 0.0
        %2712 = vmatpush1.msra.mxu0 0.0
        %2713 = vmatprep.subr.mxu0 0.0
        %2714 = vmatpush1.msra.mxu0 0.0
        %2715 = vmatprep.subr.mxu0 0.0
        %2716 = vmatpush1.msra.mxu0 0.0
        %2717 = vmatprep.subr.mxu0 0.0
        %2718 = vmatpush1.msra.mxu0 0.0
        %2719 = vmatprep.subr.mxu0 0.0
        %2720 = vmatpush1.msra.mxu0 0.0
        %2721 = vmatprep.subr.mxu0 0.0
        %2722 = vmatpush1.msra.mxu0 0.0
        %2723 = vmatprep.subr.mxu0 0.0
        %2724 = vmatpush1.msra.mxu0 0.0
        %2725 = vmatprep.subr.mxu0 0.0
        %2726 = vmatpush1.msra.mxu0 0.0
        %2727 = vmatprep.subr.mxu0 0.0
        %2728 = vmatpush1.msra.mxu0 0.0
        %2729 = vmatprep.subr.mxu0 0.0
        %2730 = vmatpush1.msra.mxu0 0.0
        %2731 = vmatprep.subr.mxu0 0.0
        %2732 = vmatpush1.msra.mxu0 0.0
        %2733 = vmatprep.subr.mxu0 0.0
        %2734 = vmatpush1.msra.mxu0 0.0
        %2735 = vmatprep.subr.mxu0 0.0
        %2736 = vmatpush1.msra.mxu0 0.0
        %2737 = vmatprep.subr.mxu0 0.0
        %2738 = vmatpush1.msra.mxu0 0.0
        %2739 = vmatprep.mubr.f32.mxu0 0.0
        %2740 = vmatmul.mubr.f32.gmra.mrb[0].mxu0 %v2404
        %v2741 = vpop.f32.mrb[0].mxu0
        %v2742 = vadd.f32 %v2617, %v2741
        %v2743 = vpop.f32.mrb[0].mxu0
        %v2744 = vadd.f32 %v2619, %v2743
        %2745 = vmatprep.mubr.f32.mxu0 0.0
        %2746 = vmatmul.mubr.f32.gmra.mrb[0].mxu0 %v2405
        %v2747 = vpop.f32.mrb[0].mxu0
        %v2748 = vadd.f32 %v2623, %v2747
        %v2749 = vpop.f32.mrb[0].mxu0
        %v2750 = vadd.f32 %v2625, %v2749
        %2751 = vmatprep.mubr.f32.mxu0 0.0
        %2752 = vmatmul.mubr.f32.gmra.mrb[0].mxu0 %v2406
        %v2753 = vpop.f32.mrb[0].mxu0
        %v2754 = vadd.f32 %v2629, %v2753
        %v2755 = vpop.f32.mrb[0].mxu0
        %v2756 = vadd.f32 %v2631, %v2755
        %2757 = vmatprep.mubr.f32.mxu0 0.0
        %2758 = vmatmul.mubr.f32.gmra.mrb[0].mxu0 %v2407
        %v2759 = vpop.f32.mrb[0].mxu0
        %v2760 = vadd.f32 %v2635, %v2759
        %v2761 = vpop.f32.mrb[0].mxu0
        %v2762 = vadd.f32 %v2637, %v2761
        %2763 = vmatprep.mubr.f32.mxu0 0.0
        %2764 = vmatmul.mubr.f32.gmra.mrb[0].mxu0 %v2408
        %v2765 = vpop.f32.mrb[0].mxu0
        %v2766 = vadd.f32 %v2641, %v2765
        %v2767 = vpop.f32.mrb[0].mxu0
        %v2768 = vadd.f32 %v2643, %v2767
        %2769 = vmatprep.mubr.f32.mxu0 0.0
        %2770 = vmatmul.mubr.f32.gmra.mrb[0].mxu0 %v2409
        %v2771 = vpop.f32.mrb[0].mxu0
        %v2772 = vadd.f32 %v2647, %v2771
        %v2773 = vpop.f32.mrb[0].mxu0
        %v2774 = vadd.f32 %v2649, %v2773
        %2775 = vmatprep.mubr.f32.mxu0 0.0
        %2776 = vmatmul.mubr.f32.gmra.mrb[0].mxu0 %v2410
        %v2777 = vpop.f32.mrb[0].mxu0
        %v2778 = vadd.f32 %v2653, %v2777
        %v2779 = vpop.f32.mrb[0].mxu0
        %v2780 = vadd.f32 %v2655, %v2779
        %2781 = vmatprep.mubr.f32.mxu0 0.0
        %2782 = vmatmul.mubr.f32.gmra.mrb[0].mxu0 %v2411
        %v2783 = vpop.f32.mrb[0].mxu0
        %v2784 = vadd.f32 %v2659, %v2783
        %v2785 = vpop.f32.mrb[0].mxu0
        %v2786 = vadd.f32 %v2661, %v2785
        %2787 = vmatprep.mubr.f32.mxu0 0.0
        %2788 = vmatmul.mubr.f32.gmra.mrb[0].mxu0 %v2412
        %v2789 = vpop.f32.mrb[0].mxu0
        %v2790 = vadd.f32 %v2665, %v2789
        %v2791 = vpop.f32.mrb[0].mxu0
        %v2792 = vadd.f32 %v2667, %v2791
        %2793 = vmatprep.mubr.f32.mxu0 0.0
        %2794 = vmatmul.mubr.f32.gmra.mrb[0].mxu0 %v2413
        %v2795 = vpop.f32.mrb[0].mxu0
        %v2796 = vadd.f32 %v2671, %v2795
        %v2797 = vpop.f32.mrb[0].mxu0
        %v2798 = vadd.f32 %v2673, %v2797
        %2799 = vdwg.mxu0
        %v2800 = vmul.f32 %v2744, 0.5
        %v2801 = vmul.f32 %v2750, 0.5
        %v2802 = vmul.f32 %v2756, 0.5
        %v2803 = vmul.f32 %v2762, 0.5
        %v2804 = vmul.f32 %v2768, 0.5
        %v2805 = vmul.f32 %v2774, 0.5
        %v2806 = vmul.f32 %v2780, 0.5
        %v2807 = vmul.f32 %v2786, 0.5
        %v2808 = vmul.f32 %v2792, 0.5
        %v2809 = vmul.f32 %v2798, 0.5
        %v2810 = vtanh.pop %v2800
        %v2811 = vtanh.pop %v2801
        %v2812 = vtanh.pop %v2802
        %v2813 = vtanh.pop %v2803
        %v2814 = vtanh.pop %v2804
        %v2815 = vtanh.pop %v2805
        %v2816 = vtanh.pop %v2806
        %v2817 = vtanh.pop %v2807
        %v2818 = vtanh.pop %v2808
        %v2819 = vtanh.pop %v2809
        %v2820 = vmul.f32 %v2810, 0.5
        %v2821 = vmul.f32 %v2811, 0.5
        %v2822 = vmul.f32 %v2812, 0.5
        %v2823 = vmul.f32 %v2813, 0.5
        %v2824 = vmul.f32 %v2814, 0.5
        %v2825 = vmul.f32 %v2815, 0.5
        %v2826 = vmul.f32 %v2816, 0.5
        %v2827 = vmul.f32 %v2817, 0.5
        %v2828 = vmul.f32 %v2818, 0.5
        %v2829 = vmul.f32 %v2819, 0.5
        %v2830 = vadd.f32 %v2820, 0.5
        %v2831 = vadd.f32 %v2821, 0.5
        %v2832 = vadd.f32 %v2822, 0.5
        %v2833 = vadd.f32 %v2823, 0.5
        %v2834 = vadd.f32 %v2824, 0.5
        %v2835 = vadd.f32 %v2825, 0.5
        %v2836 = vadd.f32 %v2826, 0.5
        %v2837 = vadd.f32 %v2827, 0.5
        %v2838 = vadd.f32 %v2828, 0.5
        %v2839 = vadd.f32 %v2829, 0.5
        %v2840 = vmul.f32 %v2742, %v2830
        %v2841 = vmul.f32 %v2748, %v2831
        %v2842 = vmul.f32 %v2754, %v2832
        %v2843 = vmul.f32 %v2760, %v2833
        %v2844 = vmul.f32 %v2766, %v2834
        %v2845 = vmul.f32 %v2772, %v2835
        %v2846 = vmul.f32 %v2778, %v2836
        %v2847 = vmul.f32 %v2784, %v2837
        %v2848 = vmul.f32 %v2790, %v2838
        %v2849 = vmul.f32 %v2796, %v2839
        %v2850 = vadd.f32 %v2840, %v2103
        %v2851 = vadd.f32 %v2841, %v2104
        %v2852 = vadd.f32 %v2842, %v2105
        %v2853 = vadd.f32 %v2843, %v2106
        %v2854 = vadd.f32 %v2844, %v2107
        %v2855 = vadd.f32 %v2845, %v2108
        %v2856 = vadd.f32 %v2846, %v2109
        %v2857 = vadd.f32 %v2847, %v2110
        %v2858 = vadd.f32 %v2848, %v2111
        %v2859 = vadd.f32 %v2849, %v2112
        %v2860 = vmul.f32 %v2850, 0.70710677
        %v2861 = vmul.f32 %v2851, 0.70710677
        %v2862 = vmul.f32 %v2852, 0.70710677
        %v2863 = vmul.f32 %v2853, 0.70710677
        %v2864 = vmul.f32 %v2854, 0.70710677
        %v2865 = vmul.f32 %v2855, 0.70710677
        %v2866 = vmul.f32 %v2856, 0.70710677
        %v2867 = vmul.f32 %v2857, 0.70710677
        %v2868 = vmul.f32 %v2858, 0.70710677
        %v2869 = vmul.f32 %v2859, 0.70710677
        %s2870 = scalar_lea.vmem [#allocation15], 2560
        %v2871 = vld [vmem:[%s2870] sm:$0xff]
        %v2872 = vld [vmem:[%s2870 + $0x8] sm:$0xff]
        %v2873 = vld [vmem:[%s2870 + $0x10] sm:$0xff]
        %v2874 = vld [vmem:[%s2870 + $0x18] sm:$0xff]
        %v2875 = vld [vmem:[%s2870 + $0x20] sm:$0xff]
        %v2876 = vld [vmem:[%s2870 + $0x28] sm:$0xff]
        %v2877 = vld [vmem:[%s2870 + $0x30] sm:$0xff]
        %v2878 = vld [vmem:[%s2870 + $0x38] sm:$0xff]
        %v2879 = vld [vmem:[%s2870 + $0x40] sm:$0xff]
        %v2880 = vld [vmem:[%s2870 + $0x48] sm:$0xff]
        %v2881 = vld [vmem:[%s2870 + $0x50] sm:$0xff]
        %v2882 = vld [vmem:[%s2870 + $0x58] sm:$0xff]
        %v2883 = vld [vmem:[%s2870 + $0x60] sm:$0xff]
        %v2884 = vld [vmem:[%s2870 + $0x68] sm:$0xff]
        %v2885 = vld [vmem:[%s2870 + $0x70] sm:$0xff]
        %v2886 = vld [vmem:[%s2870 + $0x78] sm:$0xff]
        %v2887 = vld [vmem:[%s2870 + $0x80] sm:$0xff]
        %v2888 = vld [vmem:[%s2870 + $0x88] sm:$0xff]
        %v2889 = vld [vmem:[%s2870 + $0x90] sm:$0xff]
        %v2890 = vld [vmem:[%s2870 + $0x98] sm:$0xff]
        %v2891 = vld [vmem:[%s2870 + $0xa0] sm:$0xff]
        %v2892 = vld [vmem:[%s2870 + $0xa8] sm:$0xff]
        %v2893 = vld [vmem:[%s2870 + $0xb0] sm:$0xff]
        %v2894 = vld [vmem:[%s2870 + $0xb8] sm:$0xff]
        %v2895 = vld [vmem:[%s2870 + $0xc0] sm:$0xff]
        %v2896 = vld [vmem:[%s2870 + $0xc8] sm:$0xff]
        %v2897 = vld [vmem:[%s2870 + $0xd0] sm:$0xff]
        %v2898 = vld [vmem:[%s2870 + $0xd8] sm:$0xff]
        %v2899 = vld [vmem:[%s2870 + $0xe0] sm:$0xff]
        %v2900 = vld [vmem:[%s2870 + $0xe8] sm:$0xff]
        %v2901 = vld [vmem:[%s2870 + $0xf0] sm:$0xff]
        %v2902 = vld [vmem:[%s2870 + $0xf8] sm:$0xff]
        %v2903 = vld [vmem:[%s2870 + $0x100] sm:$0xff]
        %v2904 = vld [vmem:[%s2870 + $0x108] sm:$0xff]
        %v2905 = vld [vmem:[%s2870 + $0x110] sm:$0xff]
        %v2906 = vld [vmem:[%s2870 + $0x118] sm:$0xff]
        %v2907 = vld [vmem:[%s2870 + $0x120] sm:$0xff]
        %v2908 = vld [vmem:[%s2870 + $0x128] sm:$0xff]
        %v2909 = vld [vmem:[%s2870 + $0x130] sm:$0xff]
        %v2910 = vld [vmem:[%s2870 + $0x138] sm:$0xff]
        %v2911 = vld [vmem:[%s2870 + $0x140] sm:$0xff]
        %v2912 = vld [vmem:[%s2870 + $0x148] sm:$0xff]
        %v2913 = vld [vmem:[%s2870 + $0x150] sm:$0xff]
        %v2914 = vld [vmem:[%s2870 + $0x158] sm:$0xff]
        %v2915 = vld [vmem:[%s2870 + $0x160] sm:$0xff]
        %v2916 = vld [vmem:[%s2870 + $0x168] sm:$0xff]
        %v2917 = vld [vmem:[%s2870 + $0x170] sm:$0xff]
        %v2918 = vld [vmem:[%s2870 + $0x178] sm:$0xff]
        %v2919 = vld [vmem:[%s2870 + $0x180] sm:$0xff]
        %v2920 = vld [vmem:[%s2870 + $0x188] sm:$0xff]
        %v2921 = vld [vmem:[%s2870 + $0x190] sm:$0xff]
        %v2922 = vld [vmem:[%s2870 + $0x198] sm:$0xff]
        %v2923 = vld [vmem:[%s2870 + $0x1a0] sm:$0xff]
        %v2924 = vld [vmem:[%s2870 + $0x1a8] sm:$0xff]
        %v2925 = vld [vmem:[%s2870 + $0x1b0] sm:$0xff]
        %v2926 = vld [vmem:[%s2870 + $0x1b8] sm:$0xff]
        %v2927 = vld [vmem:[%s2870 + $0x1c0] sm:$0xff]
        %v2928 = vld [vmem:[%s2870 + $0x1c8] sm:$0xff]
        %v2929 = vld [vmem:[%s2870 + $0x1d0] sm:$0xff]
        %v2930 = vld [vmem:[%s2870 + $0x1d8] sm:$0xff]
        %v2931 = vld [vmem:[%s2870 + $0x1e0] sm:$0xff]
        %v2932 = vld [vmem:[%s2870 + $0x1e8] sm:$0xff]
        %v2933 = vld [vmem:[%s2870 + $0x1f0] sm:$0xff]
        %v2934 = vld [vmem:[%s2870 + $0x1f8] sm:$0xff]
        %v2935 = vld [vmem:[%s2870 + $0x200] sm:$0xff]
        %v2936 = vld [vmem:[%s2870 + $0x208] sm:$0xff]
        %v2937 = vld [vmem:[%s2870 + $0x210] sm:$0xff]
        %v2938 = vld [vmem:[%s2870 + $0x218] sm:$0xff]
        %v2939 = vld [vmem:[%s2870 + $0x220] sm:$0xff]
        %v2940 = vld [vmem:[%s2870 + $0x228] sm:$0xff]
        %v2941 = vld [vmem:[%s2870 + $0x230] sm:$0xff]
        %v2942 = vld [vmem:[%s2870 + $0x238] sm:$0xff]
        %v2943 = vld [vmem:[%s2870 + $0x240] sm:$0xff]
        %v2944 = vld [vmem:[%s2870 + $0x248] sm:$0xff]
        %v2945 = vld [vmem:[%s2870 + $0x250] sm:$0xff]
        %v2946 = vld [vmem:[%s2870 + $0x258] sm:$0xff]
        %v2947 = vld [vmem:[%s2870 + $0x260] sm:$0xff]
        %v2948 = vld [vmem:[%s2870 + $0x268] sm:$0xff]
        %v2949 = vld [vmem:[%s2870 + $0x270] sm:$0xff]
        %v2950 = vld [vmem:[%s2870 + $0x278] sm:$0xff]
        %v2951 = vld [vmem:[%s2870 + $0x280] sm:$0xff]
        %v2952 = vld [vmem:[%s2870 + $0x288] sm:$0xff]
        %v2953 = vld [vmem:[%s2870 + $0x290] sm:$0xff]
        %v2954 = vld [vmem:[%s2870 + $0x298] sm:$0xff]
        %v2955 = vld [vmem:[%s2870 + $0x2a0] sm:$0xff]
        %v2956 = vld [vmem:[%s2870 + $0x2a8] sm:$0xff]
        %v2957 = vld [vmem:[%s2870 + $0x2b0] sm:$0xff]
        %v2958 = vld [vmem:[%s2870 + $0x2b8] sm:$0xff]
        %v2959 = vld [vmem:[%s2870 + $0x2c0] sm:$0xff]
        %v2960 = vld [vmem:[%s2870 + $0x2c8] sm:$0xff]
        %v2961 = vld [vmem:[%s2870 + $0x2d0] sm:$0xff]
        %v2962 = vld [vmem:[%s2870 + $0x2d8] sm:$0xff]
        %v2963 = vld [vmem:[%s2870 + $0x2e0] sm:$0xff]
        %v2964 = vld [vmem:[%s2870 + $0x2e8] sm:$0xff]
        %v2965 = vld [vmem:[%s2870 + $0x2f0] sm:$0xff]
        %v2966 = vld [vmem:[%s2870 + $0x2f8] sm:$0xff]
        %v2967 = vld [vmem:[%s2870 + $0x300] sm:$0xff]
        %v2968 = vld [vmem:[%s2870 + $0x308] sm:$0xff]
        %v2969 = vld [vmem:[%s2870 + $0x310] sm:$0xff]
        %v2970 = vld [vmem:[%s2870 + $0x318] sm:$0xff]
        %v2971 = vld [vmem:[%s2870 + $0x320] sm:$0xff]
        %v2972 = vld [vmem:[%s2870 + $0x328] sm:$0xff]
        %v2973 = vld [vmem:[%s2870 + $0x330] sm:$0xff]
        %v2974 = vld [vmem:[%s2870 + $0x338] sm:$0xff]
        %v2975 = vld [vmem:[%s2870 + $0x340] sm:$0xff]
        %v2976 = vld [vmem:[%s2870 + $0x348] sm:$0xff]
        %v2977 = vld [vmem:[%s2870 + $0x350] sm:$0xff]
        %v2978 = vld [vmem:[%s2870 + $0x358] sm:$0xff]
        %v2979 = vld [vmem:[%s2870 + $0x360] sm:$0xff]
        %v2980 = vld [vmem:[%s2870 + $0x368] sm:$0xff]
        %v2981 = vld [vmem:[%s2870 + $0x370] sm:$0xff]
        %v2982 = vld [vmem:[%s2870 + $0x378] sm:$0xff]
        %v2983 = vld [vmem:[%s2870 + $0x380] sm:$0xff]
        %v2984 = vld [vmem:[%s2870 + $0x388] sm:$0xff]
        %v2985 = vld [vmem:[%s2870 + $0x390] sm:$0xff]
        %v2986 = vld [vmem:[%s2870 + $0x398] sm:$0xff]
        %v2987 = vld [vmem:[%s2870 + $0x3a0] sm:$0xff]
        %v2988 = vld [vmem:[%s2870 + $0x3a8] sm:$0xff]
        %v2989 = vld [vmem:[%s2870 + $0x3b0] sm:$0xff]
        %v2990 = vld [vmem:[%s2870 + $0x3b8] sm:$0xff]
        %v2991 = vld [vmem:[%s2870 + $0x3c0] sm:$0xff]
        %v2992 = vld [vmem:[%s2870 + $0x3c8] sm:$0xff]
        %v2993 = vld [vmem:[%s2870 + $0x3d0] sm:$0xff]
        %v2994 = vld [vmem:[%s2870 + $0x3d8] sm:$0xff]
        %v2995 = vld [vmem:[%s2870 + $0x3e0] sm:$0xff]
        %v2996 = vld [vmem:[%s2870 + $0x3e8] sm:$0xff]
        %v2997 = vld [vmem:[%s2870 + $0x3f0] sm:$0xff]
        %v2998 = vld [vmem:[%s2870 + $0x3f8] sm:$0xff]
        %v2999 = vld [vmem:[%s2870 + $0x400] sm:$0xff]
        %v3000 = vld [vmem:[%s2870 + $0x408] sm:$0xff]
        %v3001 = vld [vmem:[%s2870 + $0x410] sm:$0xff]
        %v3002 = vld [vmem:[%s2870 + $0x418] sm:$0xff]
        %v3003 = vld [vmem:[%s2870 + $0x420] sm:$0xff]
        %v3004 = vld [vmem:[%s2870 + $0x428] sm:$0xff]
        %v3005 = vld [vmem:[%s2870 + $0x430] sm:$0xff]
        %v3006 = vld [vmem:[%s2870 + $0x438] sm:$0xff]
        %v3007 = vld [vmem:[%s2870 + $0x440] sm:$0xff]
        %v3008 = vld [vmem:[%s2870 + $0x448] sm:$0xff]
        %v3009 = vld [vmem:[%s2870 + $0x450] sm:$0xff]
        %v3010 = vld [vmem:[%s2870 + $0x458] sm:$0xff]
        %v3011 = vld [vmem:[%s2870 + $0x460] sm:$0xff]
        %v3012 = vld [vmem:[%s2870 + $0x468] sm:$0xff]
        %v3013 = vld [vmem:[%s2870 + $0x470] sm:$0xff]
        %v3014 = vld [vmem:[%s2870 + $0x478] sm:$0xff]
        %v3015 = vld [vmem:[%s2870 + $0x480] sm:$0xff]
        %v3016 = vld [vmem:[%s2870 + $0x488] sm:$0xff]
        %v3017 = vld [vmem:[%s2870 + $0x490] sm:$0xff]
        %v3018 = vld [vmem:[%s2870 + $0x498] sm:$0xff]
        %v3019 = vld [vmem:[%s2870 + $0x4a0] sm:$0xff]
        %v3020 = vld [vmem:[%s2870 + $0x4a8] sm:$0xff]
        %v3021 = vld [vmem:[%s2870 + $0x4b0] sm:$0xff]
        %v3022 = vld [vmem:[%s2870 + $0x4b8] sm:$0xff]
        %v3023 = vld [vmem:[%s2870 + $0x4c0] sm:$0xff]
        %v3024 = vld [vmem:[%s2870 + $0x4c8] sm:$0xff]
        %v3025 = vld [vmem:[%s2870 + $0x4d0] sm:$0xff]
        %v3026 = vld [vmem:[%s2870 + $0x4d8] sm:$0xff]
        %v3027 = vld [vmem:[%s2870 + $0x4e0] sm:$0xff]
        %v3028 = vld [vmem:[%s2870 + $0x4e8] sm:$0xff]
        %v3029 = vld [vmem:[%s2870 + $0x4f0] sm:$0xff]
        %v3030 = vld [vmem:[%s2870 + $0x4f8] sm:$0xff]
        %s3031 = scalar_lea.vmem [#allocation17], 4
        %v3032 = vld [vmem:[%s3031] sm:$0x3]
        // Predicated region
        $region133: #{tpu_custom_call.1} parent=63 // pred_check
          %p3033 = pneg %p661
        $region134: #{tpu_custom_call.1} parent=63 // pred_check_branch
          %3035 = sbr.rel (%p3033) target = $region136
        $region135: #{tpu_custom_call.1} parent=63 // pred_region
          %v3036 = vlaneseq
          %v3037 = vshrl.u32 %v3036, 7
          %v3038 = vadd.s32 %v3037, 8
          %v3039 = vadd.s32 %v3037, 16
          %v3040 = vadd.s32 %v3037, 24
          %v3041 = vadd.s32 %v3037, 32
          %v3042 = vadd.s32 %v3037, 40
          %v3043 = vadd.s32 %v3037, 48
          %v3044 = vadd.s32 %v3037, 56
          %v3045 = vadd.s32 %v3037, 64
          %v3046 = vadd.s32 %v3037, 72
          %v3047 = vstv %s657
          %v3048 = vadd.s32 %v3037, %v3047
          %v3049 = vadd.s32 %v3038, %v3047
          %v3050 = vadd.s32 %v3039, %v3047
          %v3051 = vadd.s32 %v3040, %v3047
          %v3052 = vadd.s32 %v3041, %v3047
          %v3053 = vadd.s32 %v3042, %v3047
          %v3054 = vadd.s32 %v3043, %v3047
          %v3055 = vadd.s32 %v3044, %v3047
          %v3056 = vadd.s32 %v3045, %v3047
          %v3057 = vadd.s32 %v3046, %v3047
          %vm3058 = vcmp.ge.s32.totalorder %v3048, 0
          %vm3059 = vcmp.ge.s32.totalorder %v3049, 0
          %vm3060 = vcmp.ge.s32.totalorder %v3050, 0
          %vm3061 = vcmp.ge.s32.totalorder %v3051, 0
          %vm3062 = vcmp.ge.s32.totalorder %v3052, 0
          %vm3063 = vcmp.ge.s32.totalorder %v3053, 0
          %vm3064 = vcmp.ge.s32.totalorder %v3054, 0
          %vm3065 = vcmp.ge.s32.totalorder %v3055, 0
          %vm3066 = vcmp.ge.s32.totalorder %v3056, 0
          %vm3067 = vcmp.ge.s32.totalorder %v3057, 0
          %vm3068 = vcmp.lt.s32.totalorder %v3048, 40
          %vm3069 = vcmp.lt.s32.totalorder %v3049, 40
          %vm3070 = vcmp.lt.s32.totalorder %v3050, 40
          %vm3071 = vcmp.lt.s32.totalorder %v3051, 40
          %vm3072 = vcmp.lt.s32.totalorder %v3052, 40
          %vm3073 = vcmp.lt.s32.totalorder %v3053, 40
          %vm3074 = vcmp.lt.s32.totalorder %v3054, 40
          %vm3075 = vcmp.lt.s32.totalorder %v3055, 40
          %vm3076 = vcmp.lt.s32.totalorder %v3056, 40
          %vm3077 = vcmp.lt.s32.totalorder %v3057, 40
          %vm3078 = vmand %vm3058, %vm3068
          %vm3079 = vmand %vm3059, %vm3069
          %vm3080 = vmand %vm3060, %vm3070
          %vm3081 = vmand %vm3061, %vm3071
          %vm3082 = vmand %vm3062, %vm3072
          %vm3083 = vmand %vm3063, %vm3073
          %vm3084 = vmand %vm3064, %vm3074
          %vm3085 = vmand %vm3065, %vm3075
          %vm3086 = vmand %vm3066, %vm3076
          %vm3087 = vmand %vm3067, %vm3077
          %v3088 = vsel %vm3078, %v2860, 0.0
          %v3089 = vsel %vm3079, %v2861, 0.0
          %v3090 = vsel %vm3080, %v2862, 0.0
          %v3091 = vsel %vm3081, %v2863, 0.0
          %v3092 = vsel %vm3082, %v2864, 0.0
          %v3093 = vsel %vm3083, %v2865, 0.0
          %v3094 = vsel %vm3084, %v2866, 0.0
          %v3095 = vsel %vm3085, %v2867, 0.0
          %v3096 = vsel %vm3086, %v2868, 0.0
          %v3097 = vsel %vm3087, %v2869, 0.0
          %3098 = vst [vmem:[#allocation2 + $0x8] sm:$0xff] %v3088
          %3099 = vst [vmem:[#allocation2 + $0x10] sm:$0xff] %v3089
          %3100 = vst [vmem:[#allocation2 + $0x18] sm:$0xff] %v3090
          %3101 = vst [vmem:[#allocation2 + $0x20] sm:$0xff] %v3091
          %3102 = vst [vmem:[#allocation2 + $0x28] sm:$0xff] %v3092
          %3103 = vst [vmem:[#allocation2 + $0x30] sm:$0xff] %v3093
          %3104 = vst [vmem:[#allocation2 + $0x38] sm:$0xff] %v3094
          %3105 = vst [vmem:[#allocation2 + $0x40] sm:$0xff] %v3095
          %3106 = vst [vmem:[#allocation2 + $0x48] sm:$0xff] %v3096
          %3107 = vst [vmem:[#allocation2 + $0x50] sm:$0xff] %v3097
        $region136: #{tpu_custom_call.1} parent=63 // pred_fallthru
          _
        %p3108 = pneg %p661
        // Predicated region
        $region137: #{tpu_custom_call.1} parent=63 // pred_check
          _
        $region138: #{tpu_custom_call.1} parent=63 // pred_check_branch
          %3110 = sbr.rel (%p661) target = $region140
        $region139: #{tpu_custom_call.1} parent=63 // pred_region
          %3111 = vst [vmem:[#allocation2 + $0x8] sm:$0xff] %v2860
          %3112 = vst [vmem:[#allocation2 + $0x10] sm:$0xff] %v2861
          %3113 = vst [vmem:[#allocation2 + $0x18] sm:$0xff] %v2862
          %3114 = vst [vmem:[#allocation2 + $0x20] sm:$0xff] %v2863
          %3115 = vst [vmem:[#allocation2 + $0x28] sm:$0xff] %v2864
          %3116 = vst [vmem:[#allocation2 + $0x30] sm:$0xff] %v2865
          %3117 = vst [vmem:[#allocation2 + $0x38] sm:$0xff] %v2866
          %3118 = vst [vmem:[#allocation2 + $0x40] sm:$0xff] %v2867
          %3119 = vst [vmem:[#allocation2 + $0x48] sm:$0xff] %v2868
          %3120 = vst [vmem:[#allocation2 + $0x50] sm:$0xff] %v2869
        $region140: #{tpu_custom_call.1} parent=63 // pred_fallthru
          _
        %v3121 = vld [vmem:[#allocation2 + $0x6] sm:$0xff]
        %v3122 = vld [vmem:[#allocation2 + $0xe] sm:$0xff]
        %v3123 = vld [vmem:[#allocation2 + $0x16] sm:$0xff]
        %v3124 = vld [vmem:[#allocation2 + $0x1e] sm:$0xff]
        %v3125 = vld [vmem:[#allocation2 + $0x26] sm:$0xff]
        %v3126 = vld [vmem:[#allocation2 + $0x2e] sm:$0xff]
        %v3127 = vld [vmem:[#allocation2 + $0x36] sm:$0xff]
        %v3128 = vld [vmem:[#allocation2 + $0x3e] sm:$0xff]
        %v3129 = vld [vmem:[#allocation2 + $0x46] sm:$0xff]
        %v3130 = vld [vmem:[#allocation2 + $0x4e] sm:$0xff]
        %v3131 = vld [vmem:[#allocation2 + $0x7] sm:$0xff]
        %v3132 = vld [vmem:[#allocation2 + $0xf] sm:$0xff]
        %v3133 = vld [vmem:[#allocation2 + $0x17] sm:$0xff]
        %v3134 = vld [vmem:[#allocation2 + $0x1f] sm:$0xff]
        %v3135 = vld [vmem:[#allocation2 + $0x27] sm:$0xff]
        %v3136 = vld [vmem:[#allocation2 + $0x2f] sm:$0xff]
        %v3137 = vld [vmem:[#allocation2 + $0x37] sm:$0xff]
        %v3138 = vld [vmem:[#allocation2 + $0x3f] sm:$0xff]
        %v3139 = vld [vmem:[#allocation2 + $0x47] sm:$0xff]
        %v3140 = vld [vmem:[#allocation2 + $0x4f] sm:$0xff]
        %v3141 = vld [vmem:[#allocation2 + $0x8] sm:$0xff]
        %v3142 = vld [vmem:[#allocation2 + $0x10] sm:$0xff]
        %v3143 = vld [vmem:[#allocation2 + $0x18] sm:$0xff]
        %v3144 = vld [vmem:[#allocation2 + $0x20] sm:$0xff]
        %v3145 = vld [vmem:[#allocation2 + $0x28] sm:$0xff]
        %v3146 = vld [vmem:[#allocation2 + $0x30] sm:$0xff]
        %v3147 = vld [vmem:[#allocation2 + $0x38] sm:$0xff]
        %v3148 = vld [vmem:[#allocation2 + $0x40] sm:$0xff]
        %v3149 = vld [vmem:[#allocation2 + $0x48] sm:$0xff]
        %v3150 = vld [vmem:[#allocation2 + $0x50] sm:$0xff]
        %v3151 = vld [vmem:[#allocation2 + $0x9] sm:$0xff]
        %v3152 = vld [vmem:[#allocation2 + $0x11] sm:$0xff]
        %v3153 = vld [vmem:[#allocation2 + $0x19] sm:$0xff]
        %v3154 = vld [vmem:[#allocation2 + $0x21] sm:$0xff]
        %v3155 = vld [vmem:[#allocation2 + $0x29] sm:$0xff]
        %v3156 = vld [vmem:[#allocation2 + $0x31] sm:$0xff]
        %v3157 = vld [vmem:[#allocation2 + $0x39] sm:$0xff]
        %v3158 = vld [vmem:[#allocation2 + $0x41] sm:$0xff]
        %v3159 = vld [vmem:[#allocation2 + $0x49] sm:$0xff]
        %v3160 = vld [vmem:[#allocation2 + $0x51] sm:$0xff]
        %v3161 = vld [vmem:[#allocation2 + $0xa] sm:$0xff]
        %v3162 = vld [vmem:[#allocation2 + $0x12] sm:$0xff]
        %v3163 = vld [vmem:[#allocation2 + $0x1a] sm:$0xff]
        %v3164 = vld [vmem:[#allocation2 + $0x22] sm:$0xff]
        %v3165 = vld [vmem:[#allocation2 + $0x2a] sm:$0xff]
        %v3166 = vld [vmem:[#allocation2 + $0x32] sm:$0xff]
        %v3167 = vld [vmem:[#allocation2 + $0x3a] sm:$0xff]
        %v3168 = vld [vmem:[#allocation2 + $0x42] sm:$0xff]
        %v3169 = vld [vmem:[#allocation2 + $0x4a] sm:$0xff]
        %v3170 = vld [vmem:[#allocation2 + $0x52] sm:$0xff]
        %v3172 = vlaneseq
        %v3173 = vshrl.u32 %v3172, 7
        %v3174 = vsub.s32 0, %v3173
        %v3175 = vrot.slane %v3032, %v3174
        %v3176 = vlaneseq
        %v3177 = vshrl.u32 %v3176, 7
        %v3178 = vsub.s32 1, %v3177
        %v3179 = vrot.slane %v3032, %v3178
        %3182 = vmatprep.subr.mxu0 %v2872
        %3183 = vmatpush1.msra.mxu0 %v2871
        %3184 = vmatprep.subr.mxu0 %v2874
        %3185 = vmatpush1.msra.mxu0 %v2873
        %3186 = vmatprep.subr.mxu0 %v2876
        %3187 = vmatpush1.msra.mxu0 %v2875
        %3188 = vmatprep.subr.mxu0 %v2878
        %3189 = vmatpush1.msra.mxu0 %v2877
        %3190 = vmatprep.subr.mxu0 %v2880
        %3191 = vmatpush1.msra.mxu0 %v2879
        %3192 = vmatprep.subr.mxu0 %v2882
        %3193 = vmatpush1.msra.mxu0 %v2881
        %3194 = vmatprep.subr.mxu0 %v2884
        %3195 = vmatpush1.msra.mxu0 %v2883
        %3196 = vmatprep.subr.mxu0 %v2886
        %3197 = vmatpush1.msra.mxu0 %v2885
        %3198 = vmatprep.subr.mxu0 %v2888
        %3199 = vmatpush1.msra.mxu0 %v2887
        %3200 = vmatprep.subr.mxu0 %v2890
        %3201 = vmatpush1.msra.mxu0 %v2889
        %3202 = vmatprep.subr.mxu0 %v2892
        %3203 = vmatpush1.msra.mxu0 %v2891
        %3204 = vmatprep.subr.mxu0 %v2894
        %3205 = vmatpush1.msra.mxu0 %v2893
        %3206 = vmatprep.subr.mxu0 %v2896
        %3207 = vmatpush1.msra.mxu0 %v2895
        %3208 = vmatprep.subr.mxu0 %v2898
        %3209 = vmatpush1.msra.mxu0 %v2897
        %3210 = vmatprep.subr.mxu0 %v2900
        %3211 = vmatpush1.msra.mxu0 %v2899
        %3212 = vmatprep.subr.mxu0 %v2902
        %3213 = vmatpush1.msra.mxu0 %v2901
        %3214 = vmatprep.subr.mxu0 %v2904
        %3215 = vmatpush1.msra.mxu0 %v2903
        %3216 = vmatprep.subr.mxu0 %v2906
        %3217 = vmatpush1.msra.mxu0 %v2905
        %3218 = vmatprep.subr.mxu0 %v2908
        %3219 = vmatpush1.msra.mxu0 %v2907
        %3220 = vmatprep.subr.mxu0 %v2910
        %3221 = vmatpush1.msra.mxu0 %v2909
        %3222 = vmatprep.subr.mxu0 %v2912
        %3223 = vmatpush1.msra.mxu0 %v2911
        %3224 = vmatprep.subr.mxu0 %v2914
        %3225 = vmatpush1.msra.mxu0 %v2913
        %3226 = vmatprep.subr.mxu0 %v2916
        %3227 = vmatpush1.msra.mxu0 %v2915
        %3228 = vmatprep.subr.mxu0 %v2918
        %3229 = vmatpush1.msra.mxu0 %v2917
        %3230 = vmatprep.subr.mxu0 %v2920
        %3231 = vmatpush1.msra.mxu0 %v2919
        %3232 = vmatprep.subr.mxu0 %v2922
        %3233 = vmatpush1.msra.mxu0 %v2921
        %3234 = vmatprep.subr.mxu0 %v2924
        %3235 = vmatpush1.msra.mxu0 %v2923
        %3236 = vmatprep.subr.mxu0 %v2926
        %3237 = vmatpush1.msra.mxu0 %v2925
        %3238 = vmatprep.subr.mxu0 %v2928
        %3239 = vmatpush1.msra.mxu0 %v2927
        %3240 = vmatprep.subr.mxu0 %v2930
        %3241 = vmatpush1.msra.mxu0 %v2929
        %3242 = vmatprep.subr.mxu0 %v2932
        %3243 = vmatpush1.msra.mxu0 %v2931
        %3244 = vmatprep.subr.mxu0 %v2934
        %3245 = vmatpush1.msra.mxu0 %v2933
        %3246 = vmatprep.mubr.f32.mxu0 %v3131
        %3247 = vmatmul.mubr.f32.gmra.mrb[0].mxu0 %v3121
        %v3248 = vpop.f32.mrb[0].mxu0
        %v3249 = vadd.f32 %v3175, %v3248
        %v3250 = vpop.f32.mrb[0].mxu0
        %v3251 = vadd.f32 %v3179, %v3250
        %3252 = vmatprep.mubr.f32.mxu0 %v3132
        %3253 = vmatmul.mubr.f32.gmra.mrb[0].mxu0 %v3122
        %v3254 = vpop.f32.mrb[0].mxu0
        %v3255 = vadd.f32 %v3175, %v3254
        %v3256 = vpop.f32.mrb[0].mxu0
        %v3257 = vadd.f32 %v3179, %v3256
        %3258 = vmatprep.mubr.f32.mxu0 %v3133
        %3259 = vmatmul.mubr.f32.gmra.mrb[0].mxu0 %v3123
        %v3260 = vpop.f32.mrb[0].mxu0
        %v3261 = vadd.f32 %v3175, %v3260
        %v3262 = vpop.f32.mrb[0].mxu0
        %v3263 = vadd.f32 %v3179, %v3262
        %3264 = vmatprep.mubr.f32.mxu0 %v3134
        %3265 = vmatmul.mubr.f32.gmra.mrb[0].mxu0 %v3124
        %v3266 = vpop.f32.mrb[0].mxu0
        %v3267 = vadd.f32 %v3175, %v3266
        %v3268 = vpop.f32.mrb[0].mxu0
        %v3269 = vadd.f32 %v3179, %v3268
        %3270 = vmatprep.mubr.f32.mxu0 %v3135
        %3271 = vmatmul.mubr.f32.gmra.mrb[0].mxu0 %v3125
        %v3272 = vpop.f32.mrb[0].mxu0
        %v3273 = vadd.f32 %v3175, %v3272
        %v3274 = vpop.f32.mrb[0].mxu0
        %v3275 = vadd.f32 %v3179, %v3274
        %3276 = vmatprep.mubr.f32.mxu0 %v3136
        %3277 = vmatmul.mubr.f32.gmra.mrb[0].mxu0 %v3126
        %v3278 = vpop.f32.mrb[0].mxu0
        %v3279 = vadd.f32 %v3175, %v3278
        %v3280 = vpop.f32.mrb[0].mxu0
        %v3281 = vadd.f32 %v3179, %v3280
        %3282 = vmatprep.mubr.f32.mxu0 %v3137
        %3283 = vmatmul.mubr.f32.gmra.mrb[0].mxu0 %v3127
        %v3284 = vpop.f32.mrb[0].mxu0
        %v3285 = vadd.f32 %v3175, %v3284
        %v3286 = vpop.f32.mrb[0].mxu0
        %v3287 = vadd.f32 %v3179, %v3286
        %3288 = vmatprep.mubr.f32.mxu0 %v3138
        %3289 = vmatmul.mubr.f32.gmra.mrb[0].mxu0 %v3128
        %v3290 = vpop.f32.mrb[0].mxu0
        %v3291 = vadd.f32 %v3175, %v3290
        %v3292 = vpop.f32.mrb[0].mxu0
        %v3293 = vadd.f32 %v3179, %v3292
        %3294 = vmatprep.mubr.f32.mxu0 %v3139
        %3295 = vmatmul.mubr.f32.gmra.mrb[0].mxu0 %v3129
        %v3296 = vpop.f32.mrb[0].mxu0
        %v3297 = vadd.f32 %v3175, %v3296
        %v3298 = vpop.f32.mrb[0].mxu0
        %v3299 = vadd.f32 %v3179, %v3298
        %3300 = vmatprep.mubr.f32.mxu0 %v3140
        %3301 = vmatmul.mubr.f32.gmra.mrb[0].mxu0 %v3130
        %v3302 = vpop.f32.mrb[0].mxu0
        %v3303 = vadd.f32 %v3175, %v3302
        %v3304 = vpop.f32.mrb[0].mxu0
        %v3305 = vadd.f32 %v3179, %v3304
        %3306 = vdwg.mxu0
        %3307 = vmatprep.subr.mxu0 %v2936
        %3308 = vmatpush1.msra.mxu0 %v2935
        %3309 = vmatprep.subr.mxu0 %v2938
        %3310 = vmatpush1.msra.mxu0 %v2937
        %3311 = vmatprep.subr.mxu0 %v2940
        %3312 = vmatpush1.msra.mxu0 %v2939
        %3313 = vmatprep.subr.mxu0 %v2942
        %3314 = vmatpush1.msra.mxu0 %v2941
        %3315 = vmatprep.subr.mxu0 %v2944
        %3316 = vmatpush1.msra.mxu0 %v2943
        %3317 = vmatprep.subr.mxu0 %v2946
        %3318 = vmatpush1.msra.mxu0 %v2945
        %3319 = vmatprep.subr.mxu0 %v2948
        %3320 = vmatpush1.msra.mxu0 %v2947
        %3321 = vmatprep.subr.mxu0 %v2950
        %3322 = vmatpush1.msra.mxu0 %v2949
        %3323 = vmatprep.subr.mxu0 %v2952
        %3324 = vmatpush1.msra.mxu0 %v2951
        %3325 = vmatprep.subr.mxu0 %v2954
        %3326 = vmatpush1.msra.mxu0 %v2953
        %3327 = vmatprep.subr.mxu0 %v2956
        %3328 = vmatpush1.msra.mxu0 %v2955
        %3329 = vmatprep.subr.mxu0 %v2958
        %3330 = vmatpush1.msra.mxu0 %v2957
        %3331 = vmatprep.subr.mxu0 %v2960
        %3332 = vmatpush1.msra.mxu0 %v2959
        %3333 = vmatprep.subr.mxu0 %v2962
        %3334 = vmatpush1.msra.mxu0 %v2961
        %3335 = vmatprep.subr.mxu0 %v2964
        %3336 = vmatpush1.msra.mxu0 %v2963
        %3337 = vmatprep.subr.mxu0 %v2966
        %3338 = vmatpush1.msra.mxu0 %v2965
        %3339 = vmatprep.subr.mxu0 %v2968
        %3340 = vmatpush1.msra.mxu0 %v2967
        %3341 = vmatprep.subr.mxu0 %v2970
        %3342 = vmatpush1.msra.mxu0 %v2969
        %3343 = vmatprep.subr.mxu0 %v2972
        %3344 = vmatpush1.msra.mxu0 %v2971
        %3345 = vmatprep.subr.mxu0 %v2974
        %3346 = vmatpush1.msra.mxu0 %v2973
        %3347 = vmatprep.subr.mxu0 %v2976
        %3348 = vmatpush1.msra.mxu0 %v2975
        %3349 = vmatprep.subr.mxu0 %v2978
        %3350 = vmatpush1.msra.mxu0 %v2977
        %3351 = vmatprep.subr.mxu0 %v2980
        %3352 = vmatpush1.msra.mxu0 %v2979
        %3353 = vmatprep.subr.mxu0 %v2982
        %3354 = vmatpush1.msra.mxu0 %v2981
        %3355 = vmatprep.subr.mxu0 %v2984
        %3356 = vmatpush1.msra.mxu0 %v2983
        %3357 = vmatprep.subr.mxu0 %v2986
        %3358 = vmatpush1.msra.mxu0 %v2985
        %3359 = vmatprep.subr.mxu0 %v2988
        %3360 = vmatpush1.msra.mxu0 %v2987
        %3361 = vmatprep.subr.mxu0 %v2990
        %3362 = vmatpush1.msra.mxu0 %v2989
        %3363 = vmatprep.subr.mxu0 %v2992
        %3364 = vmatpush1.msra.mxu0 %v2991
        %3365 = vmatprep.subr.mxu0 %v2994
        %3366 = vmatpush1.msra.mxu0 %v2993
        %3367 = vmatprep.subr.mxu0 %v2996
        %3368 = vmatpush1.msra.mxu0 %v2995
        %3369 = vmatprep.subr.mxu0 %v2998
        %3370 = vmatpush1.msra.mxu0 %v2997
        %3371 = vmatprep.mubr.f32.mxu0 %v3151
        %3372 = vmatmul.mubr.f32.gmra.mrb[0].mxu0 %v3141
        %v3373 = vpop.f32.mrb[0].mxu0
        %v3374 = vadd.f32 %v3249, %v3373
        %v3375 = vpop.f32.mrb[0].mxu0
        %v3376 = vadd.f32 %v3251, %v3375
        %3377 = vmatprep.mubr.f32.mxu0 %v3152
        %3378 = vmatmul.mubr.f32.gmra.mrb[0].mxu0 %v3142
        %v3379 = vpop.f32.mrb[0].mxu0
        %v3380 = vadd.f32 %v3255, %v3379
        %v3381 = vpop.f32.mrb[0].mxu0
        %v3382 = vadd.f32 %v3257, %v3381
        %3383 = vmatprep.mubr.f32.mxu0 %v3153
        %3384 = vmatmul.mubr.f32.gmra.mrb[0].mxu0 %v3143
        %v3385 = vpop.f32.mrb[0].mxu0
        %v3386 = vadd.f32 %v3261, %v3385
        %v3387 = vpop.f32.mrb[0].mxu0
        %v3388 = vadd.f32 %v3263, %v3387
        %3389 = vmatprep.mubr.f32.mxu0 %v3154
        %3390 = vmatmul.mubr.f32.gmra.mrb[0].mxu0 %v3144
        %v3391 = vpop.f32.mrb[0].mxu0
        %v3392 = vadd.f32 %v3267, %v3391
        %v3393 = vpop.f32.mrb[0].mxu0
        %v3394 = vadd.f32 %v3269, %v3393
        %3395 = vmatprep.mubr.f32.mxu0 %v3155
        %3396 = vmatmul.mubr.f32.gmra.mrb[0].mxu0 %v3145
        %v3397 = vpop.f32.mrb[0].mxu0
        %v3398 = vadd.f32 %v3273, %v3397
        %v3399 = vpop.f32.mrb[0].mxu0
        %v3400 = vadd.f32 %v3275, %v3399
        %3401 = vmatprep.mubr.f32.mxu0 %v3156
        %3402 = vmatmul.mubr.f32.gmra.mrb[0].mxu0 %v3146
        %v3403 = vpop.f32.mrb[0].mxu0
        %v3404 = vadd.f32 %v3279, %v3403
        %v3405 = vpop.f32.mrb[0].mxu0
        %v3406 = vadd.f32 %v3281, %v3405
        %3407 = vmatprep.mubr.f32.mxu0 %v3157
        %3408 = vmatmul.mubr.f32.gmra.mrb[0].mxu0 %v3147
        %v3409 = vpop.f32.mrb[0].mxu0
        %v3410 = vadd.f32 %v3285, %v3409
        %v3411 = vpop.f32.mrb[0].mxu0
        %v3412 = vadd.f32 %v3287, %v3411
        %3413 = vmatprep.mubr.f32.mxu0 %v3158
        %3414 = vmatmul.mubr.f32.gmra.mrb[0].mxu0 %v3148
        %v3415 = vpop.f32.mrb[0].mxu0
        %v3416 = vadd.f32 %v3291, %v3415
        %v3417 = vpop.f32.mrb[0].mxu0
        %v3418 = vadd.f32 %v3293, %v3417
        %3419 = vmatprep.mubr.f32.mxu0 %v3159
        %3420 = vmatmul.mubr.f32.gmra.mrb[0].mxu0 %v3149
        %v3421 = vpop.f32.mrb[0].mxu0
        %v3422 = vadd.f32 %v3297, %v3421
        %v3423 = vpop.f32.mrb[0].mxu0
        %v3424 = vadd.f32 %v3299, %v3423
        %3425 = vmatprep.mubr.f32.mxu0 %v3160
        %3426 = vmatmul.mubr.f32.gmra.mrb[0].mxu0 %v3150
        %v3427 = vpop.f32.mrb[0].mxu0
        %v3428 = vadd.f32 %v3303, %v3427
        %v3429 = vpop.f32.mrb[0].mxu0
        %v3430 = vadd.f32 %v3305, %v3429
        %3431 = vdwg.mxu0
        %3432 = vmatprep.subr.mxu0 %v3000
        %3433 = vmatpush1.msra.mxu0 %v2999
        %3434 = vmatprep.subr.mxu0 %v3002
        %3435 = vmatpush1.msra.mxu0 %v3001
        %3436 = vmatprep.subr.mxu0 %v3004
        %3437 = vmatpush1.msra.mxu0 %v3003
        %3438 = vmatprep.subr.mxu0 %v3006
        %3439 = vmatpush1.msra.mxu0 %v3005
        %3440 = vmatprep.subr.mxu0 %v3008
        %3441 = vmatpush1.msra.mxu0 %v3007
        %3442 = vmatprep.subr.mxu0 %v3010
        %3443 = vmatpush1.msra.mxu0 %v3009
        %3444 = vmatprep.subr.mxu0 %v3012
        %3445 = vmatpush1.msra.mxu0 %v3011
        %3446 = vmatprep.subr.mxu0 %v3014
        %3447 = vmatpush1.msra.mxu0 %v3013
        %3448 = vmatprep.subr.mxu0 %v3016
        %3449 = vmatpush1.msra.mxu0 %v3015
        %3450 = vmatprep.subr.mxu0 %v3018
        %3451 = vmatpush1.msra.mxu0 %v3017
        %3452 = vmatprep.subr.mxu0 %v3020
        %3453 = vmatpush1.msra.mxu0 %v3019
        %3454 = vmatprep.subr.mxu0 %v3022
        %3455 = vmatpush1.msra.mxu0 %v3021
        %3456 = vmatprep.subr.mxu0 %v3024
        %3457 = vmatpush1.msra.mxu0 %v3023
        %3458 = vmatprep.subr.mxu0 %v3026
        %3459 = vmatpush1.msra.mxu0 %v3025
        %3460 = vmatprep.subr.mxu0 %v3028
        %3461 = vmatpush1.msra.mxu0 %v3027
        %3462 = vmatprep.subr.mxu0 %v3030
        %3463 = vmatpush1.msra.mxu0 %v3029
        %3464 = vmatprep.subr.mxu0 0.0
        %3465 = vmatpush1.msra.mxu0 0.0
        %3466 = vmatprep.subr.mxu0 0.0
        %3467 = vmatpush1.msra.mxu0 0.0
        %3468 = vmatprep.subr.mxu0 0.0
        %3469 = vmatpush1.msra.mxu0 0.0
        %3470 = vmatprep.subr.mxu0 0.0
        %3471 = vmatpush1.msra.mxu0 0.0
        %3472 = vmatprep.subr.mxu0 0.0
        %3473 = vmatpush1.msra.mxu0 0.0
        %3474 = vmatprep.subr.mxu0 0.0
        %3475 = vmatpush1.msra.mxu0 0.0
        %3476 = vmatprep.subr.mxu0 0.0
        %3477 = vmatpush1.msra.mxu0 0.0
        %3478 = vmatprep.subr.mxu0 0.0
        %3479 = vmatpush1.msra.mxu0 0.0
        %3480 = vmatprep.subr.mxu0 0.0
        %3481 = vmatpush1.msra.mxu0 0.0
        %3482 = vmatprep.subr.mxu0 0.0
        %3483 = vmatpush1.msra.mxu0 0.0
        %3484 = vmatprep.subr.mxu0 0.0
        %3485 = vmatpush1.msra.mxu0 0.0
        %3486 = vmatprep.subr.mxu0 0.0
        %3487 = vmatpush1.msra.mxu0 0.0
        %3488 = vmatprep.subr.mxu0 0.0
        %3489 = vmatpush1.msra.mxu0 0.0
        %3490 = vmatprep.subr.mxu0 0.0
        %3491 = vmatpush1.msra.mxu0 0.0
        %3492 = vmatprep.subr.mxu0 0.0
        %3493 = vmatpush1.msra.mxu0 0.0
        %3494 = vmatprep.subr.mxu0 0.0
        %3495 = vmatpush1.msra.mxu0 0.0
        %3496 = vmatprep.mubr.f32.mxu0 0.0
        %3497 = vmatmul.mubr.f32.gmra.mrb[0].mxu0 %v3161
        %v3498 = vpop.f32.mrb[0].mxu0
        %v3499 = vadd.f32 %v3374, %v3498
        %v3500 = vpop.f32.mrb[0].mxu0
        %v3501 = vadd.f32 %v3376, %v3500
        %3502 = vmatprep.mubr.f32.mxu0 0.0
        %3503 = vmatmul.mubr.f32.gmra.mrb[0].mxu0 %v3162
        %v3504 = vpop.f32.mrb[0].mxu0
        %v3505 = vadd.f32 %v3380, %v3504
        %v3506 = vpop.f32.mrb[0].mxu0
        %v3507 = vadd.f32 %v3382, %v3506
        %3508 = vmatprep.mubr.f32.mxu0 0.0
        %3509 = vmatmul.mubr.f32.gmra.mrb[0].mxu0 %v3163
        %v3510 = vpop.f32.mrb[0].mxu0
        %v3511 = vadd.f32 %v3386, %v3510
        %v3512 = vpop.f32.mrb[0].mxu0
        %v3513 = vadd.f32 %v3388, %v3512
        %3514 = vmatprep.mubr.f32.mxu0 0.0
        %3515 = vmatmul.mubr.f32.gmra.mrb[0].mxu0 %v3164
        %v3516 = vpop.f32.mrb[0].mxu0
        %v3517 = vadd.f32 %v3392, %v3516
        %v3518 = vpop.f32.mrb[0].mxu0
        %v3519 = vadd.f32 %v3394, %v3518
        %3520 = vmatprep.mubr.f32.mxu0 0.0
        %3521 = vmatmul.mubr.f32.gmra.mrb[0].mxu0 %v3165
        %v3522 = vpop.f32.mrb[0].mxu0
        %v3523 = vadd.f32 %v3398, %v3522
        %v3524 = vpop.f32.mrb[0].mxu0
        %v3525 = vadd.f32 %v3400, %v3524
        %3526 = vmatprep.mubr.f32.mxu0 0.0
        %3527 = vmatmul.mubr.f32.gmra.mrb[0].mxu0 %v3166
        %v3528 = vpop.f32.mrb[0].mxu0
        %v3529 = vadd.f32 %v3404, %v3528
        %v3530 = vpop.f32.mrb[0].mxu0
        %v3531 = vadd.f32 %v3406, %v3530
        %3532 = vmatprep.mubr.f32.mxu0 0.0
        %3533 = vmatmul.mubr.f32.gmra.mrb[0].mxu0 %v3167
        %v3534 = vpop.f32.mrb[0].mxu0
        %v3535 = vadd.f32 %v3410, %v3534
        %v3536 = vpop.f32.mrb[0].mxu0
        %v3537 = vadd.f32 %v3412, %v3536
        %3538 = vmatprep.mubr.f32.mxu0 0.0
        %3539 = vmatmul.mubr.f32.gmra.mrb[0].mxu0 %v3168
        %v3540 = vpop.f32.mrb[0].mxu0
        %v3541 = vadd.f32 %v3416, %v3540
        %v3542 = vpop.f32.mrb[0].mxu0
        %v3543 = vadd.f32 %v3418, %v3542
        %3544 = vmatprep.mubr.f32.mxu0 0.0
        %3545 = vmatmul.mubr.f32.gmra.mrb[0].mxu0 %v3169
        %v3546 = vpop.f32.mrb[0].mxu0
        %v3547 = vadd.f32 %v3422, %v3546
        %v3548 = vpop.f32.mrb[0].mxu0
        %v3549 = vadd.f32 %v3424, %v3548
        %3550 = vmatprep.mubr.f32.mxu0 0.0
        %3551 = vmatmul.mubr.f32.gmra.mrb[0].mxu0 %v3170
        %v3552 = vpop.f32.mrb[0].mxu0
        %v3553 = vadd.f32 %v3428, %v3552
        %v3554 = vpop.f32.mrb[0].mxu0
        %v3555 = vadd.f32 %v3430, %v3554
        %3556 = vdwg.mxu0
        %v3557 = vmul.f32 %v3501, 0.5
        %v3558 = vmul.f32 %v3507, 0.5
        %v3559 = vmul.f32 %v3513, 0.5
        %v3560 = vmul.f32 %v3519, 0.5
        %v3561 = vmul.f32 %v3525, 0.5
        %v3562 = vmul.f32 %v3531, 0.5
        %v3563 = vmul.f32 %v3537, 0.5
        %v3564 = vmul.f32 %v3543, 0.5
        %v3565 = vmul.f32 %v3549, 0.5
        %v3566 = vmul.f32 %v3555, 0.5
        %v3567 = vtanh.pop %v3557
        %v3568 = vtanh.pop %v3558
        %v3569 = vtanh.pop %v3559
        %v3570 = vtanh.pop %v3560
        %v3571 = vtanh.pop %v3561
        %v3572 = vtanh.pop %v3562
        %v3573 = vtanh.pop %v3563
        %v3574 = vtanh.pop %v3564
        %v3575 = vtanh.pop %v3565
        %v3576 = vtanh.pop %v3566
        %v3577 = vmul.f32 %v3567, 0.5
        %v3578 = vmul.f32 %v3568, 0.5
        %v3579 = vmul.f32 %v3569, 0.5
        %v3580 = vmul.f32 %v3570, 0.5
        %v3581 = vmul.f32 %v3571, 0.5
        %v3582 = vmul.f32 %v3572, 0.5
        %v3583 = vmul.f32 %v3573, 0.5
        %v3584 = vmul.f32 %v3574, 0.5
        %v3585 = vmul.f32 %v3575, 0.5
        %v3586 = vmul.f32 %v3576, 0.5
        %v3587 = vadd.f32 %v3577, 0.5
        %v3588 = vadd.f32 %v3578, 0.5
        %v3589 = vadd.f32 %v3579, 0.5
        %v3590 = vadd.f32 %v3580, 0.5
        %v3591 = vadd.f32 %v3581, 0.5
        %v3592 = vadd.f32 %v3582, 0.5
        %v3593 = vadd.f32 %v3583, 0.5
        %v3594 = vadd.f32 %v3584, 0.5
        %v3595 = vadd.f32 %v3585, 0.5
        %v3596 = vadd.f32 %v3586, 0.5
        %v3597 = vmul.f32 %v3499, %v3587
        %v3598 = vmul.f32 %v3505, %v3588
        %v3599 = vmul.f32 %v3511, %v3589
        %v3600 = vmul.f32 %v3517, %v3590
        %v3601 = vmul.f32 %v3523, %v3591
        %v3602 = vmul.f32 %v3529, %v3592
        %v3603 = vmul.f32 %v3535, %v3593
        %v3604 = vmul.f32 %v3541, %v3594
        %v3605 = vmul.f32 %v3547, %v3595
        %v3606 = vmul.f32 %v3553, %v3596
        %v3607 = vadd.f32 %v3597, %v2860
        %v3608 = vadd.f32 %v3598, %v2861
        %v3609 = vadd.f32 %v3599, %v2862
        %v3610 = vadd.f32 %v3600, %v2863
        %v3611 = vadd.f32 %v3601, %v2864
        %v3612 = vadd.f32 %v3602, %v2865
        %v3613 = vadd.f32 %v3603, %v2866
        %v3614 = vadd.f32 %v3604, %v2867
        %v3615 = vadd.f32 %v3605, %v2868
        %v3616 = vadd.f32 %v3606, %v2869
        %v3617 = vmul.f32 %v3607, 0.70710677
        %v3618 = vmul.f32 %v3608, 0.70710677
        %v3619 = vmul.f32 %v3609, 0.70710677
        %v3620 = vmul.f32 %v3610, 0.70710677
        %v3621 = vmul.f32 %v3611, 0.70710677
        %v3622 = vmul.f32 %v3612, 0.70710677
        %v3623 = vmul.f32 %v3613, 0.70710677
        %v3624 = vmul.f32 %v3614, 0.70710677
        %v3625 = vmul.f32 %v3615, 0.70710677
        %v3626 = vmul.f32 %v3616, 0.70710677
        %s3627 = scalar_lea.vmem [#allocation15], 3840
        %v3628 = vld [vmem:[%s3627] sm:$0xff]
        %v3629 = vld [vmem:[%s3627 + $0x8] sm:$0xff]
        %v3630 = vld [vmem:[%s3627 + $0x10] sm:$0xff]
        %v3631 = vld [vmem:[%s3627 + $0x18] sm:$0xff]
        %v3632 = vld [vmem:[%s3627 + $0x20] sm:$0xff]
        %v3633 = vld [vmem:[%s3627 + $0x28] sm:$0xff]
        %v3634 = vld [vmem:[%s3627 + $0x30] sm:$0xff]
        %v3635 = vld [vmem:[%s3627 + $0x38] sm:$0xff]
        %v3636 = vld [vmem:[%s3627 + $0x40] sm:$0xff]
        %v3637 = vld [vmem:[%s3627 + $0x48] sm:$0xff]
        %v3638 = vld [vmem:[%s3627 + $0x50] sm:$0xff]
        %v3639 = vld [vmem:[%s3627 + $0x58] sm:$0xff]
        %v3640 = vld [vmem:[%s3627 + $0x60] sm:$0xff]
        %v3641 = vld [vmem:[%s3627 + $0x68] sm:$0xff]
        %v3642 = vld [vmem:[%s3627 + $0x70] sm:$0xff]
        %v3643 = vld [vmem:[%s3627 + $0x78] sm:$0xff]
        %v3644 = vld [vmem:[%s3627 + $0x80] sm:$0xff]
        %v3645 = vld [vmem:[%s3627 + $0x88] sm:$0xff]
        %v3646 = vld [vmem:[%s3627 + $0x90] sm:$0xff]
        %v3647 = vld [vmem:[%s3627 + $0x98] sm:$0xff]
        %v3648 = vld [vmem:[%s3627 + $0xa0] sm:$0xff]
        %v3649 = vld [vmem:[%s3627 + $0xa8] sm:$0xff]
        %v3650 = vld [vmem:[%s3627 + $0xb0] sm:$0xff]
        %v3651 = vld [vmem:[%s3627 + $0xb8] sm:$0xff]
        %v3652 = vld [vmem:[%s3627 + $0xc0] sm:$0xff]
        %v3653 = vld [vmem:[%s3627 + $0xc8] sm:$0xff]
        %v3654 = vld [vmem:[%s3627 + $0xd0] sm:$0xff]
        %v3655 = vld [vmem:[%s3627 + $0xd8] sm:$0xff]
        %v3656 = vld [vmem:[%s3627 + $0xe0] sm:$0xff]
        %v3657 = vld [vmem:[%s3627 + $0xe8] sm:$0xff]
        %v3658 = vld [vmem:[%s3627 + $0xf0] sm:$0xff]
        %v3659 = vld [vmem:[%s3627 + $0xf8] sm:$0xff]
        %v3660 = vld [vmem:[%s3627 + $0x100] sm:$0xff]
        %v3661 = vld [vmem:[%s3627 + $0x108] sm:$0xff]
        %v3662 = vld [vmem:[%s3627 + $0x110] sm:$0xff]
        %v3663 = vld [vmem:[%s3627 + $0x118] sm:$0xff]
        %v3664 = vld [vmem:[%s3627 + $0x120] sm:$0xff]
        %v3665 = vld [vmem:[%s3627 + $0x128] sm:$0xff]
        %v3666 = vld [vmem:[%s3627 + $0x130] sm:$0xff]
        %v3667 = vld [vmem:[%s3627 + $0x138] sm:$0xff]
        %v3668 = vld [vmem:[%s3627 + $0x140] sm:$0xff]
        %v3669 = vld [vmem:[%s3627 + $0x148] sm:$0xff]
        %v3670 = vld [vmem:[%s3627 + $0x150] sm:$0xff]
        %v3671 = vld [vmem:[%s3627 + $0x158] sm:$0xff]
        %v3672 = vld [vmem:[%s3627 + $0x160] sm:$0xff]
        %v3673 = vld [vmem:[%s3627 + $0x168] sm:$0xff]
        %v3674 = vld [vmem:[%s3627 + $0x170] sm:$0xff]
        %v3675 = vld [vmem:[%s3627 + $0x178] sm:$0xff]
        %v3676 = vld [vmem:[%s3627 + $0x180] sm:$0xff]
        %v3677 = vld [vmem:[%s3627 + $0x188] sm:$0xff]
        %v3678 = vld [vmem:[%s3627 + $0x190] sm:$0xff]
        %v3679 = vld [vmem:[%s3627 + $0x198] sm:$0xff]
        %v3680 = vld [vmem:[%s3627 + $0x1a0] sm:$0xff]
        %v3681 = vld [vmem:[%s3627 + $0x1a8] sm:$0xff]
        %v3682 = vld [vmem:[%s3627 + $0x1b0] sm:$0xff]
        %v3683 = vld [vmem:[%s3627 + $0x1b8] sm:$0xff]
        %v3684 = vld [vmem:[%s3627 + $0x1c0] sm:$0xff]
        %v3685 = vld [vmem:[%s3627 + $0x1c8] sm:$0xff]
        %v3686 = vld [vmem:[%s3627 + $0x1d0] sm:$0xff]
        %v3687 = vld [vmem:[%s3627 + $0x1d8] sm:$0xff]
        %v3688 = vld [vmem:[%s3627 + $0x1e0] sm:$0xff]
        %v3689 = vld [vmem:[%s3627 + $0x1e8] sm:$0xff]
        %v3690 = vld [vmem:[%s3627 + $0x1f0] sm:$0xff]
        %v3691 = vld [vmem:[%s3627 + $0x1f8] sm:$0xff]
        %v3692 = vld [vmem:[%s3627 + $0x200] sm:$0xff]
        %v3693 = vld [vmem:[%s3627 + $0x208] sm:$0xff]
        %v3694 = vld [vmem:[%s3627 + $0x210] sm:$0xff]
        %v3695 = vld [vmem:[%s3627 + $0x218] sm:$0xff]
        %v3696 = vld [vmem:[%s3627 + $0x220] sm:$0xff]
        %v3697 = vld [vmem:[%s3627 + $0x228] sm:$0xff]
        %v3698 = vld [vmem:[%s3627 + $0x230] sm:$0xff]
        %v3699 = vld [vmem:[%s3627 + $0x238] sm:$0xff]
        %v3700 = vld [vmem:[%s3627 + $0x240] sm:$0xff]
        %v3701 = vld [vmem:[%s3627 + $0x248] sm:$0xff]
        %v3702 = vld [vmem:[%s3627 + $0x250] sm:$0xff]
        %v3703 = vld [vmem:[%s3627 + $0x258] sm:$0xff]
        %v3704 = vld [vmem:[%s3627 + $0x260] sm:$0xff]
        %v3705 = vld [vmem:[%s3627 + $0x268] sm:$0xff]
        %v3706 = vld [vmem:[%s3627 + $0x270] sm:$0xff]
        %v3707 = vld [vmem:[%s3627 + $0x278] sm:$0xff]
        %v3708 = vld [vmem:[%s3627 + $0x280] sm:$0xff]
        %v3709 = vld [vmem:[%s3627 + $0x288] sm:$0xff]
        %v3710 = vld [vmem:[%s3627 + $0x290] sm:$0xff]
        %v3711 = vld [vmem:[%s3627 + $0x298] sm:$0xff]
        %v3712 = vld [vmem:[%s3627 + $0x2a0] sm:$0xff]
        %v3713 = vld [vmem:[%s3627 + $0x2a8] sm:$0xff]
        %v3714 = vld [vmem:[%s3627 + $0x2b0] sm:$0xff]
        %v3715 = vld [vmem:[%s3627 + $0x2b8] sm:$0xff]
        %v3716 = vld [vmem:[%s3627 + $0x2c0] sm:$0xff]
        %v3717 = vld [vmem:[%s3627 + $0x2c8] sm:$0xff]
        %v3718 = vld [vmem:[%s3627 + $0x2d0] sm:$0xff]
        %v3719 = vld [vmem:[%s3627 + $0x2d8] sm:$0xff]
        %v3720 = vld [vmem:[%s3627 + $0x2e0] sm:$0xff]
        %v3721 = vld [vmem:[%s3627 + $0x2e8] sm:$0xff]
        %v3722 = vld [vmem:[%s3627 + $0x2f0] sm:$0xff]
        %v3723 = vld [vmem:[%s3627 + $0x2f8] sm:$0xff]
        %v3724 = vld [vmem:[%s3627 + $0x300] sm:$0xff]
        %v3725 = vld [vmem:[%s3627 + $0x308] sm:$0xff]
        %v3726 = vld [vmem:[%s3627 + $0x310] sm:$0xff]
        %v3727 = vld [vmem:[%s3627 + $0x318] sm:$0xff]
        %v3728 = vld [vmem:[%s3627 + $0x320] sm:$0xff]
        %v3729 = vld [vmem:[%s3627 + $0x328] sm:$0xff]
        %v3730 = vld [vmem:[%s3627 + $0x330] sm:$0xff]
        %v3731 = vld [vmem:[%s3627 + $0x338] sm:$0xff]
        %v3732 = vld [vmem:[%s3627 + $0x340] sm:$0xff]
        %v3733 = vld [vmem:[%s3627 + $0x348] sm:$0xff]
        %v3734 = vld [vmem:[%s3627 + $0x350] sm:$0xff]
        %v3735 = vld [vmem:[%s3627 + $0x358] sm:$0xff]
        %v3736 = vld [vmem:[%s3627 + $0x360] sm:$0xff]
        %v3737 = vld [vmem:[%s3627 + $0x368] sm:$0xff]
        %v3738 = vld [vmem:[%s3627 + $0x370] sm:$0xff]
        %v3739 = vld [vmem:[%s3627 + $0x378] sm:$0xff]
        %v3740 = vld [vmem:[%s3627 + $0x380] sm:$0xff]
        %v3741 = vld [vmem:[%s3627 + $0x388] sm:$0xff]
        %v3742 = vld [vmem:[%s3627 + $0x390] sm:$0xff]
        %v3743 = vld [vmem:[%s3627 + $0x398] sm:$0xff]
        %v3744 = vld [vmem:[%s3627 + $0x3a0] sm:$0xff]
        %v3745 = vld [vmem:[%s3627 + $0x3a8] sm:$0xff]
        %v3746 = vld [vmem:[%s3627 + $0x3b0] sm:$0xff]
        %v3747 = vld [vmem:[%s3627 + $0x3b8] sm:$0xff]
        %v3748 = vld [vmem:[%s3627 + $0x3c0] sm:$0xff]
        %v3749 = vld [vmem:[%s3627 + $0x3c8] sm:$0xff]
        %v3750 = vld [vmem:[%s3627 + $0x3d0] sm:$0xff]
        %v3751 = vld [vmem:[%s3627 + $0x3d8] sm:$0xff]
        %v3752 = vld [vmem:[%s3627 + $0x3e0] sm:$0xff]
        %v3753 = vld [vmem:[%s3627 + $0x3e8] sm:$0xff]
        %v3754 = vld [vmem:[%s3627 + $0x3f0] sm:$0xff]
        %v3755 = vld [vmem:[%s3627 + $0x3f8] sm:$0xff]
        %v3756 = vld [vmem:[%s3627 + $0x400] sm:$0xff]
        %v3757 = vld [vmem:[%s3627 + $0x408] sm:$0xff]
        %v3758 = vld [vmem:[%s3627 + $0x410] sm:$0xff]
        %v3759 = vld [vmem:[%s3627 + $0x418] sm:$0xff]
        %v3760 = vld [vmem:[%s3627 + $0x420] sm:$0xff]
        %v3761 = vld [vmem:[%s3627 + $0x428] sm:$0xff]
        %v3762 = vld [vmem:[%s3627 + $0x430] sm:$0xff]
        %v3763 = vld [vmem:[%s3627 + $0x438] sm:$0xff]
        %v3764 = vld [vmem:[%s3627 + $0x440] sm:$0xff]
        %v3765 = vld [vmem:[%s3627 + $0x448] sm:$0xff]
        %v3766 = vld [vmem:[%s3627 + $0x450] sm:$0xff]
        %v3767 = vld [vmem:[%s3627 + $0x458] sm:$0xff]
        %v3768 = vld [vmem:[%s3627 + $0x460] sm:$0xff]
        %v3769 = vld [vmem:[%s3627 + $0x468] sm:$0xff]
        %v3770 = vld [vmem:[%s3627 + $0x470] sm:$0xff]
        %v3771 = vld [vmem:[%s3627 + $0x478] sm:$0xff]
        %v3772 = vld [vmem:[%s3627 + $0x480] sm:$0xff]
        %v3773 = vld [vmem:[%s3627 + $0x488] sm:$0xff]
        %v3774 = vld [vmem:[%s3627 + $0x490] sm:$0xff]
        %v3775 = vld [vmem:[%s3627 + $0x498] sm:$0xff]
        %v3776 = vld [vmem:[%s3627 + $0x4a0] sm:$0xff]
        %v3777 = vld [vmem:[%s3627 + $0x4a8] sm:$0xff]
        %v3778 = vld [vmem:[%s3627 + $0x4b0] sm:$0xff]
        %v3779 = vld [vmem:[%s3627 + $0x4b8] sm:$0xff]
        %v3780 = vld [vmem:[%s3627 + $0x4c0] sm:$0xff]
        %v3781 = vld [vmem:[%s3627 + $0x4c8] sm:$0xff]
        %v3782 = vld [vmem:[%s3627 + $0x4d0] sm:$0xff]
        %v3783 = vld [vmem:[%s3627 + $0x4d8] sm:$0xff]
        %v3784 = vld [vmem:[%s3627 + $0x4e0] sm:$0xff]
        %v3785 = vld [vmem:[%s3627 + $0x4e8] sm:$0xff]
        %v3786 = vld [vmem:[%s3627 + $0x4f0] sm:$0xff]
        %v3787 = vld [vmem:[%s3627 + $0x4f8] sm:$0xff]
        %s3788 = scalar_lea.vmem [#allocation17], 6
        %v3789 = vld [vmem:[%s3788] sm:$0x3]
        // Predicated region
        $region141: #{tpu_custom_call.1} parent=63 // pred_check
          %p3790 = pneg %p661
        $region142: #{tpu_custom_call.1} parent=63 // pred_check_branch
          %3792 = sbr.rel (%p3790) target = $region144
        $region143: #{tpu_custom_call.1} parent=63 // pred_region
          %v3793 = vlaneseq
          %v3794 = vshrl.u32 %v3793, 7
          %v3795 = vadd.s32 %v3794, 8
          %v3796 = vadd.s32 %v3794, 16
          %v3797 = vadd.s32 %v3794, 24
          %v3798 = vadd.s32 %v3794, 32
          %v3799 = vadd.s32 %v3794, 40
          %v3800 = vadd.s32 %v3794, 48
          %v3801 = vadd.s32 %v3794, 56
          %v3802 = vadd.s32 %v3794, 64
          %v3803 = vadd.s32 %v3794, 72
          %v3804 = vstv %s657
          %v3805 = vadd.s32 %v3794, %v3804
          %v3806 = vadd.s32 %v3795, %v3804
          %v3807 = vadd.s32 %v3796, %v3804
          %v3808 = vadd.s32 %v3797, %v3804
          %v3809 = vadd.s32 %v3798, %v3804
          %v3810 = vadd.s32 %v3799, %v3804
          %v3811 = vadd.s32 %v3800, %v3804
          %v3812 = vadd.s32 %v3801, %v3804
          %v3813 = vadd.s32 %v3802, %v3804
          %v3814 = vadd.s32 %v3803, %v3804
          %vm3815 = vcmp.ge.s32.totalorder %v3805, 0
          %vm3816 = vcmp.ge.s32.totalorder %v3806, 0
          %vm3817 = vcmp.ge.s32.totalorder %v3807, 0
          %vm3818 = vcmp.ge.s32.totalorder %v3808, 0
          %vm3819 = vcmp.ge.s32.totalorder %v3809, 0
          %vm3820 = vcmp.ge.s32.totalorder %v3810, 0
          %vm3821 = vcmp.ge.s32.totalorder %v3811, 0
          %vm3822 = vcmp.ge.s32.totalorder %v3812, 0
          %vm3823 = vcmp.ge.s32.totalorder %v3813, 0
          %vm3824 = vcmp.ge.s32.totalorder %v3814, 0
          %vm3825 = vcmp.lt.s32.totalorder %v3805, 40
          %vm3826 = vcmp.lt.s32.totalorder %v3806, 40
          %vm3827 = vcmp.lt.s32.totalorder %v3807, 40
          %vm3828 = vcmp.lt.s32.totalorder %v3808, 40
          %vm3829 = vcmp.lt.s32.totalorder %v3809, 40
          %vm3830 = vcmp.lt.s32.totalorder %v3810, 40
          %vm3831 = vcmp.lt.s32.totalorder %v3811, 40
          %vm3832 = vcmp.lt.s32.totalorder %v3812, 40
          %vm3833 = vcmp.lt.s32.totalorder %v3813, 40
          %vm3834 = vcmp.lt.s32.totalorder %v3814, 40
          %vm3835 = vmand %vm3815, %vm3825
          %vm3836 = vmand %vm3816, %vm3826
          %vm3837 = vmand %vm3817, %vm3827
          %vm3838 = vmand %vm3818, %vm3828
          %vm3839 = vmand %vm3819, %vm3829
          %vm3840 = vmand %vm3820, %vm3830
          %vm3841 = vmand %vm3821, %vm3831
          %vm3842 = vmand %vm3822, %vm3832
          %vm3843 = vmand %vm3823, %vm3833
          %vm3844 = vmand %vm3824, %vm3834
          %v3845 = vsel %vm3835, %v3617, 0.0
          %v3846 = vsel %vm3836, %v3618, 0.0
          %v3847 = vsel %vm3837, %v3619, 0.0
          %v3848 = vsel %vm3838, %v3620, 0.0
          %v3849 = vsel %vm3839, %v3621, 0.0
          %v3850 = vsel %vm3840, %v3622, 0.0
          %v3851 = vsel %vm3841, %v3623, 0.0
          %v3852 = vsel %vm3842, %v3624, 0.0
          %v3853 = vsel %vm3843, %v3625, 0.0
          %v3854 = vsel %vm3844, %v3626, 0.0
          %3855 = vst [vmem:[#allocation2 + $0x8] sm:$0xff] %v3845
          %3856 = vst [vmem:[#allocation2 + $0x10] sm:$0xff] %v3846
          %3857 = vst [vmem:[#allocation2 + $0x18] sm:$0xff] %v3847
          %3858 = vst [vmem:[#allocation2 + $0x20] sm:$0xff] %v3848
          %3859 = vst [vmem:[#allocation2 + $0x28] sm:$0xff] %v3849
          %3860 = vst [vmem:[#allocation2 + $0x30] sm:$0xff] %v3850
          %3861 = vst [vmem:[#allocation2 + $0x38] sm:$0xff] %v3851
          %3862 = vst [vmem:[#allocation2 + $0x40] sm:$0xff] %v3852
          %3863 = vst [vmem:[#allocation2 + $0x48] sm:$0xff] %v3853
          %3864 = vst [vmem:[#allocation2 + $0x50] sm:$0xff] %v3854
        $region144: #{tpu_custom_call.1} parent=63 // pred_fallthru
          _
        %p3865 = pneg %p661
        // Predicated region
        $region145: #{tpu_custom_call.1} parent=63 // pred_check
          _
        $region146: #{tpu_custom_call.1} parent=63 // pred_check_branch
          %3867 = sbr.rel (%p661) target = $region148
        $region147: #{tpu_custom_call.1} parent=63 // pred_region
          %3868 = vst [vmem:[#allocation2 + $0x8] sm:$0xff] %v3617
          %3869 = vst [vmem:[#allocation2 + $0x10] sm:$0xff] %v3618
          %3870 = vst [vmem:[#allocation2 + $0x18] sm:$0xff] %v3619
          %3871 = vst [vmem:[#allocation2 + $0x20] sm:$0xff] %v3620
          %3872 = vst [vmem:[#allocation2 + $0x28] sm:$0xff] %v3621
          %3873 = vst [vmem:[#allocation2 + $0x30] sm:$0xff] %v3622
          %3874 = vst [vmem:[#allocation2 + $0x38] sm:$0xff] %v3623
          %3875 = vst [vmem:[#allocation2 + $0x40] sm:$0xff] %v3624
          %3876 = vst [vmem:[#allocation2 + $0x48] sm:$0xff] %v3625
          %3877 = vst [vmem:[#allocation2 + $0x50] sm:$0xff] %v3626
        $region148: #{tpu_custom_call.1} parent=63 // pred_fallthru
          _
        %v3878 = vld [vmem:[#allocation2 + $0x6] sm:$0xff]
        %v3879 = vld [vmem:[#allocation2 + $0xe] sm:$0xff]
        %v3880 = vld [vmem:[#allocation2 + $0x16] sm:$0xff]
        %v3881 = vld [vmem:[#allocation2 + $0x1e] sm:$0xff]
        %v3882 = vld [vmem:[#allocation2 + $0x26] sm:$0xff]
        %v3883 = vld [vmem:[#allocation2 + $0x2e] sm:$0xff]
        %v3884 = vld [vmem:[#allocation2 + $0x36] sm:$0xff]
        %v3885 = vld [vmem:[#allocation2 + $0x3e] sm:$0xff]
        %v3886 = vld [vmem:[#allocation2 + $0x46] sm:$0xff]
        %v3887 = vld [vmem:[#allocation2 + $0x4e] sm:$0xff]
        %v3888 = vld [vmem:[#allocation2 + $0x7] sm:$0xff]
        %v3889 = vld [vmem:[#allocation2 + $0xf] sm:$0xff]
        %v3890 = vld [vmem:[#allocation2 + $0x17] sm:$0xff]
        %v3891 = vld [vmem:[#allocation2 + $0x1f] sm:$0xff]
        %v3892 = vld [vmem:[#allocation2 + $0x27] sm:$0xff]
        %v3893 = vld [vmem:[#allocation2 + $0x2f] sm:$0xff]
        %v3894 = vld [vmem:[#allocation2 + $0x37] sm:$0xff]
        %v3895 = vld [vmem:[#allocation2 + $0x3f] sm:$0xff]
        %v3896 = vld [vmem:[#allocation2 + $0x47] sm:$0xff]
        %v3897 = vld [vmem:[#allocation2 + $0x4f] sm:$0xff]
        %v3898 = vld [vmem:[#allocation2 + $0x8] sm:$0xff]
        %v3899 = vld [vmem:[#allocation2 + $0x10] sm:$0xff]
        %v3900 = vld [vmem:[#allocation2 + $0x18] sm:$0xff]
        %v3901 = vld [vmem:[#allocation2 + $0x20] sm:$0xff]
        %v3902 = vld [vmem:[#allocation2 + $0x28] sm:$0xff]
        %v3903 = vld [vmem:[#allocation2 + $0x30] sm:$0xff]
        %v3904 = vld [vmem:[#allocation2 + $0x38] sm:$0xff]
        %v3905 = vld [vmem:[#allocation2 + $0x40] sm:$0xff]
        %v3906 = vld [vmem:[#allocation2 + $0x48] sm:$0xff]
        %v3907 = vld [vmem:[#allocation2 + $0x50] sm:$0xff]
        %v3908 = vld [vmem:[#allocation2 + $0x9] sm:$0xff]
        %v3909 = vld [vmem:[#allocation2 + $0x11] sm:$0xff]
        %v3910 = vld [vmem:[#allocation2 + $0x19] sm:$0xff]
        %v3911 = vld [vmem:[#allocation2 + $0x21] sm:$0xff]
        %v3912 = vld [vmem:[#allocation2 + $0x29] sm:$0xff]
        %v3913 = vld [vmem:[#allocation2 + $0x31] sm:$0xff]
        %v3914 = vld [vmem:[#allocation2 + $0x39] sm:$0xff]
        %v3915 = vld [vmem:[#allocation2 + $0x41] sm:$0xff]
        %v3916 = vld [vmem:[#allocation2 + $0x49] sm:$0xff]
        %v3917 = vld [vmem:[#allocation2 + $0x51] sm:$0xff]
        %v3918 = vld [vmem:[#allocation2 + $0xa] sm:$0xff]
        %v3919 = vld [vmem:[#allocation2 + $0x12] sm:$0xff]
        %v3920 = vld [vmem:[#allocation2 + $0x1a] sm:$0xff]
        %v3921 = vld [vmem:[#allocation2 + $0x22] sm:$0xff]
        %v3922 = vld [vmem:[#allocation2 + $0x2a] sm:$0xff]
        %v3923 = vld [vmem:[#allocation2 + $0x32] sm:$0xff]
        %v3924 = vld [vmem:[#allocation2 + $0x3a] sm:$0xff]
        %v3925 = vld [vmem:[#allocation2 + $0x42] sm:$0xff]
        %v3926 = vld [vmem:[#allocation2 + $0x4a] sm:$0xff]
        %v3927 = vld [vmem:[#allocation2 + $0x52] sm:$0xff]
        %v3929 = vlaneseq
        %v3930 = vshrl.u32 %v3929, 7
        %v3931 = vsub.s32 0, %v3930
        %v3932 = vrot.slane %v3789, %v3931
        %v3933 = vlaneseq
        %v3934 = vshrl.u32 %v3933, 7
        %v3935 = vsub.s32 1, %v3934
        %v3936 = vrot.slane %v3789, %v3935
        %3939 = vmatprep.subr.mxu0 %v3629
        %3940 = vmatpush1.msra.mxu0 %v3628
        %3941 = vmatprep.subr.mxu0 %v3631
        %3942 = vmatpush1.msra.mxu0 %v3630
        %3943 = vmatprep.subr.mxu0 %v3633
        %3944 = vmatpush1.msra.mxu0 %v3632
        %3945 = vmatprep.subr.mxu0 %v3635
        %3946 = vmatpush1.msra.mxu0 %v3634
        %3947 = vmatprep.subr.mxu0 %v3637
        %3948 = vmatpush1.msra.mxu0 %v3636
        %3949 = vmatprep.subr.mxu0 %v3639
        %3950 = vmatpush1.msra.mxu0 %v3638
        %3951 = vmatprep.subr.mxu0 %v3641
        %3952 = vmatpush1.msra.mxu0 %v3640
        %3953 = vmatprep.subr.mxu0 %v3643
        %3954 = vmatpush1.msra.mxu0 %v3642
        %3955 = vmatprep.subr.mxu0 %v3645
        %3956 = vmatpush1.msra.mxu0 %v3644
        %3957 = vmatprep.subr.mxu0 %v3647
        %3958 = vmatpush1.msra.mxu0 %v3646
        %3959 = vmatprep.subr.mxu0 %v3649
        %3960 = vmatpush1.msra.mxu0 %v3648
        %3961 = vmatprep.subr.mxu0 %v3651
        %3962 = vmatpush1.msra.mxu0 %v3650
        %3963 = vmatprep.subr.mxu0 %v3653
        %3964 = vmatpush1.msra.mxu0 %v3652
        %3965 = vmatprep.subr.mxu0 %v3655
        %3966 = vmatpush1.msra.mxu0 %v3654
        %3967 = vmatprep.subr.mxu0 %v3657
        %3968 = vmatpush1.msra.mxu0 %v3656
        %3969 = vmatprep.subr.mxu0 %v3659
        %3970 = vmatpush1.msra.mxu0 %v3658
        %3971 = vmatprep.subr.mxu0 %v3661
        %3972 = vmatpush1.msra.mxu0 %v3660
        %3973 = vmatprep.subr.mxu0 %v3663
        %3974 = vmatpush1.msra.mxu0 %v3662
        %3975 = vmatprep.subr.mxu0 %v3665
        %3976 = vmatpush1.msra.mxu0 %v3664
        %3977 = vmatprep.subr.mxu0 %v3667
        %3978 = vmatpush1.msra.mxu0 %v3666
        %3979 = vmatprep.subr.mxu0 %v3669
        %3980 = vmatpush1.msra.mxu0 %v3668
        %3981 = vmatprep.subr.mxu0 %v3671
        %3982 = vmatpush1.msra.mxu0 %v3670
        %3983 = vmatprep.subr.mxu0 %v3673
        %3984 = vmatpush1.msra.mxu0 %v3672
        %3985 = vmatprep.subr.mxu0 %v3675
        %3986 = vmatpush1.msra.mxu0 %v3674
        %3987 = vmatprep.subr.mxu0 %v3677
        %3988 = vmatpush1.msra.mxu0 %v3676
        %3989 = vmatprep.subr.mxu0 %v3679
        %3990 = vmatpush1.msra.mxu0 %v3678
        %3991 = vmatprep.subr.mxu0 %v3681
        %3992 = vmatpush1.msra.mxu0 %v3680
        %3993 = vmatprep.subr.mxu0 %v3683
        %3994 = vmatpush1.msra.mxu0 %v3682
        %3995 = vmatprep.subr.mxu0 %v3685
        %3996 = vmatpush1.msra.mxu0 %v3684
        %3997 = vmatprep.subr.mxu0 %v3687
        %3998 = vmatpush1.msra.mxu0 %v3686
        %3999 = vmatprep.subr.mxu0 %v3689
        %4000 = vmatpush1.msra.mxu0 %v3688
        %4001 = vmatprep.subr.mxu0 %v3691
        %4002 = vmatpush1.msra.mxu0 %v3690
        %4003 = vmatprep.mubr.f32.mxu0 %v3888
        %4004 = vmatmul.mubr.f32.gmra.mrb[0].mxu0 %v3878
        %v4005 = vpop.f32.mrb[0].mxu0
        %v4006 = vpop.f32.mrb[0].mxu0
        %4007 = vmatprep.mubr.f32.mxu0 %v3889
        %4008 = vmatmul.mubr.f32.gmra.mrb[0].mxu0 %v3879
        %v4009 = vpop.f32.mrb[0].mxu0
        %v4010 = vpop.f32.mrb[0].mxu0
        %4011 = vmatprep.mubr.f32.mxu0 %v3890
        %4012 = vmatmul.mubr.f32.gmra.mrb[0].mxu0 %v3880
        %v4013 = vpop.f32.mrb[0].mxu0
        %v4014 = vadd.f32 %v3932, %v4013
        %v4015 = vpop.f32.mrb[0].mxu0
        %v4016 = vadd.f32 %v3936, %v4015
        %4017 = vmatprep.mubr.f32.mxu0 %v3891
        %4018 = vmatmul.mubr.f32.gmra.mrb[0].mxu0 %v3881
        %v4019 = vpop.f32.mrb[0].mxu0
        %v4020 = vadd.f32 %v3932, %v4019
        %v4021 = vpop.f32.mrb[0].mxu0
        %v4022 = vadd.f32 %v3936, %v4021
        %4023 = vmatprep.mubr.f32.mxu0 %v3892
        %4024 = vmatmul.mubr.f32.gmra.mrb[0].mxu0 %v3882
        %v4025 = vpop.f32.mrb[0].mxu0
        %v4026 = vadd.f32 %v3932, %v4025
        %v4027 = vpop.f32.mrb[0].mxu0
        %v4028 = vadd.f32 %v3936, %v4027
        %4029 = vmatprep.mubr.f32.mxu0 %v3893
        %4030 = vmatmul.mubr.f32.gmra.mrb[0].mxu0 %v3883
        %v4031 = vpop.f32.mrb[0].mxu0
        %v4032 = vadd.f32 %v3932, %v4031
        %v4033 = vpop.f32.mrb[0].mxu0
        %v4034 = vadd.f32 %v3936, %v4033
        %4035 = vmatprep.mubr.f32.mxu0 %v3894
        %4036 = vmatmul.mubr.f32.gmra.mrb[0].mxu0 %v3884
        %v4037 = vpop.f32.mrb[0].mxu0
        %v4038 = vadd.f32 %v3932, %v4037
        %v4039 = vpop.f32.mrb[0].mxu0
        %v4040 = vadd.f32 %v3936, %v4039
        %4041 = vmatprep.mubr.f32.mxu0 %v3895
        %4042 = vmatmul.mubr.f32.gmra.mrb[0].mxu0 %v3885
        %v4043 = vpop.f32.mrb[0].mxu0
        %v4044 = vadd.f32 %v3932, %v4043
        %v4045 = vpop.f32.mrb[0].mxu0
        %v4046 = vadd.f32 %v3936, %v4045
        %4047 = vmatprep.mubr.f32.mxu0 %v3896
        %4048 = vmatmul.mubr.f32.gmra.mrb[0].mxu0 %v3886
        %v4049 = vpop.f32.mrb[0].mxu0
        %v4050 = vpop.f32.mrb[0].mxu0
        %4051 = vmatprep.mubr.f32.mxu0 %v3897
        %4052 = vmatmul.mubr.f32.gmra.mrb[0].mxu0 %v3887
        %v4053 = vpop.f32.mrb[0].mxu0
        %v4054 = vpop.f32.mrb[0].mxu0
        %4055 = vdwg.mxu0
        %4056 = vmatprep.subr.mxu0 %v3693
        %4057 = vmatpush1.msra.mxu0 %v3692
        %4058 = vmatprep.subr.mxu0 %v3695
        %4059 = vmatpush1.msra.mxu0 %v3694
        %4060 = vmatprep.subr.mxu0 %v3697
        %4061 = vmatpush1.msra.mxu0 %v3696
        %4062 = vmatprep.subr.mxu0 %v3699
        %4063 = vmatpush1.msra.mxu0 %v3698
        %4064 = vmatprep.subr.mxu0 %v3701
        %4065 = vmatpush1.msra.mxu0 %v3700
        %4066 = vmatprep.subr.mxu0 %v3703
        %4067 = vmatpush1.msra.mxu0 %v3702
        %4068 = vmatprep.subr.mxu0 %v3705
        %4069 = vmatpush1.msra.mxu0 %v3704
        %4070 = vmatprep.subr.mxu0 %v3707
        %4071 = vmatpush1.msra.mxu0 %v3706
        %4072 = vmatprep.subr.mxu0 %v3709
        %4073 = vmatpush1.msra.mxu0 %v3708
        %4074 = vmatprep.subr.mxu0 %v3711
        %4075 = vmatpush1.msra.mxu0 %v3710
        %4076 = vmatprep.subr.mxu0 %v3713
        %4077 = vmatpush1.msra.mxu0 %v3712
        %4078 = vmatprep.subr.mxu0 %v3715
        %4079 = vmatpush1.msra.mxu0 %v3714
        %4080 = vmatprep.subr.mxu0 %v3717
        %4081 = vmatpush1.msra.mxu0 %v3716
        %4082 = vmatprep.subr.mxu0 %v3719
        %4083 = vmatpush1.msra.mxu0 %v3718
        %4084 = vmatprep.subr.mxu0 %v3721
        %4085 = vmatpush1.msra.mxu0 %v3720
        %4086 = vmatprep.subr.mxu0 %v3723
        %4087 = vmatpush1.msra.mxu0 %v3722
        %4088 = vmatprep.subr.mxu0 %v3725
        %4089 = vmatpush1.msra.mxu0 %v3724
        %4090 = vmatprep.subr.mxu0 %v3727
        %4091 = vmatpush1.msra.mxu0 %v3726
        %4092 = vmatprep.subr.mxu0 %v3729
        %4093 = vmatpush1.msra.mxu0 %v3728
        %4094 = vmatprep.subr.mxu0 %v3731
        %4095 = vmatpush1.msra.mxu0 %v3730
        %4096 = vmatprep.subr.mxu0 %v3733
        %4097 = vmatpush1.msra.mxu0 %v3732
        %4098 = vmatprep.subr.mxu0 %v3735
        %4099 = vmatpush1.msra.mxu0 %v3734
        %4100 = vmatprep.subr.mxu0 %v3737
        %4101 = vmatpush1.msra.mxu0 %v3736
        %4102 = vmatprep.subr.mxu0 %v3739
        %4103 = vmatpush1.msra.mxu0 %v3738
        %4104 = vmatprep.subr.mxu0 %v3741
        %4105 = vmatpush1.msra.mxu0 %v3740
        %4106 = vmatprep.subr.mxu0 %v3743
        %4107 = vmatpush1.msra.mxu0 %v3742
        %4108 = vmatprep.subr.mxu0 %v3745
        %4109 = vmatpush1.msra.mxu0 %v3744
        %4110 = vmatprep.subr.mxu0 %v3747
        %4111 = vmatpush1.msra.mxu0 %v3746
        %4112 = vmatprep.subr.mxu0 %v3749
        %4113 = vmatpush1.msra.mxu0 %v3748
        %4114 = vmatprep.subr.mxu0 %v3751
        %4115 = vmatpush1.msra.mxu0 %v3750
        %4116 = vmatprep.subr.mxu0 %v3753
        %4117 = vmatpush1.msra.mxu0 %v3752
        %4118 = vmatprep.subr.mxu0 %v3755
        %4119 = vmatpush1.msra.mxu0 %v3754
        %4120 = vmatprep.mubr.f32.mxu0 %v3908
        %4121 = vmatmul.mubr.f32.gmra.mrb[0].mxu0 %v3898
        %v4122 = vpop.f32.mrb[0].mxu0
        %v4123 = vpop.f32.mrb[0].mxu0
        %4124 = vmatprep.mubr.f32.mxu0 %v3909
        %4125 = vmatmul.mubr.f32.gmra.mrb[0].mxu0 %v3899
        %v4126 = vpop.f32.mrb[0].mxu0
        %v4127 = vpop.f32.mrb[0].mxu0
        %4128 = vmatprep.mubr.f32.mxu0 %v3910
        %4129 = vmatmul.mubr.f32.gmra.mrb[0].mxu0 %v3900
        %v4130 = vpop.f32.mrb[0].mxu0
        %v4131 = vadd.f32 %v4014, %v4130
        %v4132 = vpop.f32.mrb[0].mxu0
        %v4133 = vadd.f32 %v4016, %v4132
        %4134 = vmatprep.mubr.f32.mxu0 %v3911
        %4135 = vmatmul.mubr.f32.gmra.mrb[0].mxu0 %v3901
        %v4136 = vpop.f32.mrb[0].mxu0
        %v4137 = vadd.f32 %v4020, %v4136
        %v4138 = vpop.f32.mrb[0].mxu0
        %v4139 = vadd.f32 %v4022, %v4138
        %4140 = vmatprep.mubr.f32.mxu0 %v3912
        %4141 = vmatmul.mubr.f32.gmra.mrb[0].mxu0 %v3902
        %v4142 = vpop.f32.mrb[0].mxu0
        %v4143 = vadd.f32 %v4026, %v4142
        %v4144 = vpop.f32.mrb[0].mxu0
        %v4145 = vadd.f32 %v4028, %v4144
        %4146 = vmatprep.mubr.f32.mxu0 %v3913
        %4147 = vmatmul.mubr.f32.gmra.mrb[0].mxu0 %v3903
        %v4148 = vpop.f32.mrb[0].mxu0
        %v4149 = vadd.f32 %v4032, %v4148
        %v4150 = vpop.f32.mrb[0].mxu0
        %v4151 = vadd.f32 %v4034, %v4150
        %4152 = vmatprep.mubr.f32.mxu0 %v3914
        %4153 = vmatmul.mubr.f32.gmra.mrb[0].mxu0 %v3904
        %v4154 = vpop.f32.mrb[0].mxu0
        %v4155 = vadd.f32 %v4038, %v4154
        %v4156 = vpop.f32.mrb[0].mxu0
        %v4157 = vadd.f32 %v4040, %v4156
        %4158 = vmatprep.mubr.f32.mxu0 %v3915
        %4159 = vmatmul.mubr.f32.gmra.mrb[0].mxu0 %v3905
        %v4160 = vpop.f32.mrb[0].mxu0
        %v4161 = vadd.f32 %v4044, %v4160
        %v4162 = vpop.f32.mrb[0].mxu0
        %v4163 = vadd.f32 %v4046, %v4162
        %4164 = vmatprep.mubr.f32.mxu0 %v3916
        %4165 = vmatmul.mubr.f32.gmra.mrb[0].mxu0 %v3906
        %v4166 = vpop.f32.mrb[0].mxu0
        %v4167 = vpop.f32.mrb[0].mxu0
        %4168 = vmatprep.mubr.f32.mxu0 %v3917
        %4169 = vmatmul.mubr.f32.gmra.mrb[0].mxu0 %v3907
        %v4170 = vpop.f32.mrb[0].mxu0
        %v4171 = vpop.f32.mrb[0].mxu0
        %4172 = vdwg.mxu0
        %4173 = vmatprep.subr.mxu0 %v3757
        %4174 = vmatpush1.msra.mxu0 %v3756
        %4175 = vmatprep.subr.mxu0 %v3759
        %4176 = vmatpush1.msra.mxu0 %v3758
        %4177 = vmatprep.subr.mxu0 %v3761
        %4178 = vmatpush1.msra.mxu0 %v3760
        %4179 = vmatprep.subr.mxu0 %v3763
        %4180 = vmatpush1.msra.mxu0 %v3762
        %4181 = vmatprep.subr.mxu0 %v3765
        %4182 = vmatpush1.msra.mxu0 %v3764
        %4183 = vmatprep.subr.mxu0 %v3767
        %4184 = vmatpush1.msra.mxu0 %v3766
        %4185 = vmatprep.subr.mxu0 %v3769
        %4186 = vmatpush1.msra.mxu0 %v3768
        %4187 = vmatprep.subr.mxu0 %v3771
        %4188 = vmatpush1.msra.mxu0 %v3770
        %4189 = vmatprep.subr.mxu0 %v3773
        %4190 = vmatpush1.msra.mxu0 %v3772
        %4191 = vmatprep.subr.mxu0 %v3775
        %4192 = vmatpush1.msra.mxu0 %v3774
        %4193 = vmatprep.subr.mxu0 %v3777
        %4194 = vmatpush1.msra.mxu0 %v3776
        %4195 = vmatprep.subr.mxu0 %v3779
        %4196 = vmatpush1.msra.mxu0 %v3778
        %4197 = vmatprep.subr.mxu0 %v3781
        %4198 = vmatpush1.msra.mxu0 %v3780
        %4199 = vmatprep.subr.mxu0 %v3783
        %4200 = vmatpush1.msra.mxu0 %v3782
        %4201 = vmatprep.subr.mxu0 %v3785
        %4202 = vmatpush1.msra.mxu0 %v3784
        %4203 = vmatprep.subr.mxu0 %v3787
        %4204 = vmatpush1.msra.mxu0 %v3786
        %4205 = vmatprep.subr.mxu0 0.0
        %4206 = vmatpush1.msra.mxu0 0.0
        %4207 = vmatprep.subr.mxu0 0.0
        %4208 = vmatpush1.msra.mxu0 0.0
        %4209 = vmatprep.subr.mxu0 0.0
        %4210 = vmatpush1.msra.mxu0 0.0
        %4211 = vmatprep.subr.mxu0 0.0
        %4212 = vmatpush1.msra.mxu0 0.0
        %4213 = vmatprep.subr.mxu0 0.0
        %4214 = vmatpush1.msra.mxu0 0.0
        %4215 = vmatprep.subr.mxu0 0.0
        %4216 = vmatpush1.msra.mxu0 0.0
        %4217 = vmatprep.subr.mxu0 0.0
        %4218 = vmatpush1.msra.mxu0 0.0
        %4219 = vmatprep.subr.mxu0 0.0
        %4220 = vmatpush1.msra.mxu0 0.0
        %4221 = vmatprep.subr.mxu0 0.0
        %4222 = vmatpush1.msra.mxu0 0.0
        %4223 = vmatprep.subr.mxu0 0.0
        %4224 = vmatpush1.msra.mxu0 0.0
        %4225 = vmatprep.subr.mxu0 0.0
        %4226 = vmatpush1.msra.mxu0 0.0
        %4227 = vmatprep.subr.mxu0 0.0
        %4228 = vmatpush1.msra.mxu0 0.0
        %4229 = vmatprep.subr.mxu0 0.0
        %4230 = vmatpush1.msra.mxu0 0.0
        %4231 = vmatprep.subr.mxu0 0.0
        %4232 = vmatpush1.msra.mxu0 0.0
        %4233 = vmatprep.subr.mxu0 0.0
        %4234 = vmatpush1.msra.mxu0 0.0
        %4235 = vmatprep.subr.mxu0 0.0
        %4236 = vmatpush1.msra.mxu0 0.0
        %4237 = vmatprep.mubr.f32.mxu0 0.0
        %4238 = vmatmul.mubr.f32.gmra.mrb[0].mxu0 %v3918
        %v4239 = vpop.f32.mrb[0].mxu0
        %v4240 = vpop.f32.mrb[0].mxu0
        %4241 = vmatprep.mubr.f32.mxu0 0.0
        %4242 = vmatmul.mubr.f32.gmra.mrb[0].mxu0 %v3919
        %v4243 = vpop.f32.mrb[0].mxu0
        %v4244 = vpop.f32.mrb[0].mxu0
        %4245 = vmatprep.mubr.f32.mxu0 0.0
        %4246 = vmatmul.mubr.f32.gmra.mrb[0].mxu0 %v3920
        %v4247 = vpop.f32.mrb[0].mxu0
        %v4248 = vadd.f32 %v4131, %v4247
        %v4249 = vpop.f32.mrb[0].mxu0
        %v4250 = vadd.f32 %v4133, %v4249
        %4251 = vmatprep.mubr.f32.mxu0 0.0
        %4252 = vmatmul.mubr.f32.gmra.mrb[0].mxu0 %v3921
        %v4253 = vpop.f32.mrb[0].mxu0
        %v4254 = vadd.f32 %v4137, %v4253
        %v4255 = vpop.f32.mrb[0].mxu0
        %v4256 = vadd.f32 %v4139, %v4255
        %4257 = vmatprep.mubr.f32.mxu0 0.0
        %4258 = vmatmul.mubr.f32.gmra.mrb[0].mxu0 %v3922
        %v4259 = vpop.f32.mrb[0].mxu0
        %v4260 = vadd.f32 %v4143, %v4259
        %v4261 = vpop.f32.mrb[0].mxu0
        %v4262 = vadd.f32 %v4145, %v4261
        %4263 = vmatprep.mubr.f32.mxu0 0.0
        %4264 = vmatmul.mubr.f32.gmra.mrb[0].mxu0 %v3923
        %v4265 = vpop.f32.mrb[0].mxu0
        %v4266 = vadd.f32 %v4149, %v4265
        %v4267 = vpop.f32.mrb[0].mxu0
        %v4268 = vadd.f32 %v4151, %v4267
        %4269 = vmatprep.mubr.f32.mxu0 0.0
        %4270 = vmatmul.mubr.f32.gmra.mrb[0].mxu0 %v3924
        %v4271 = vpop.f32.mrb[0].mxu0
        %v4272 = vadd.f32 %v4155, %v4271
        %v4273 = vpop.f32.mrb[0].mxu0
        %v4274 = vadd.f32 %v4157, %v4273
        %4275 = vmatprep.mubr.f32.mxu0 0.0
        %4276 = vmatmul.mubr.f32.gmra.mrb[0].mxu0 %v3925
        %v4277 = vpop.f32.mrb[0].mxu0
        %v4278 = vadd.f32 %v4161, %v4277
        %v4279 = vpop.f32.mrb[0].mxu0
        %v4280 = vadd.f32 %v4163, %v4279
        %4281 = vmatprep.mubr.f32.mxu0 0.0
        %4282 = vmatmul.mubr.f32.gmra.mrb[0].mxu0 %v3926
        %v4283 = vpop.f32.mrb[0].mxu0
        %v4284 = vpop.f32.mrb[0].mxu0
        %4285 = vmatprep.mubr.f32.mxu0 0.0
        %4286 = vmatmul.mubr.f32.gmra.mrb[0].mxu0 %v3927
        %v4287 = vpop.f32.mrb[0].mxu0
        %v4288 = vpop.f32.mrb[0].mxu0
        %4289 = vdwg.mxu0
        %v4290 = vmul.f32 %v4250, 0.5
        %v4291 = vmul.f32 %v4256, 0.5
        %v4292 = vmul.f32 %v4262, 0.5
        %v4293 = vmul.f32 %v4268, 0.5
        %v4294 = vmul.f32 %v4274, 0.5
        %v4295 = vmul.f32 %v4280, 0.5
        %v4296 = vtanh.pop %v4290
        %v4297 = vtanh.pop %v4291
        %v4298 = vtanh.pop %v4292
        %v4299 = vtanh.pop %v4293
        %v4300 = vtanh.pop %v4294
        %v4301 = vtanh.pop %v4295
        %v4302 = vmul.f32 %v4296, 0.5
        %v4303 = vmul.f32 %v4297, 0.5
        %v4304 = vmul.f32 %v4298, 0.5
        %v4305 = vmul.f32 %v4299, 0.5
        %v4306 = vmul.f32 %v4300, 0.5
        %v4307 = vmul.f32 %v4301, 0.5
        %v4308 = vadd.f32 %v4302, 0.5
        %v4309 = vadd.f32 %v4303, 0.5
        %v4310 = vadd.f32 %v4304, 0.5
        %v4311 = vadd.f32 %v4305, 0.5
        %v4312 = vadd.f32 %v4306, 0.5
        %v4313 = vadd.f32 %v4307, 0.5
        %v4314 = vmul.f32 %v4248, %v4308
        %v4315 = vmul.f32 %v4254, %v4309
        %v4316 = vmul.f32 %v4260, %v4310
        %v4317 = vmul.f32 %v4266, %v4311
        %v4318 = vmul.f32 %v4272, %v4312
        %v4319 = vmul.f32 %v4278, %v4313
        %v4320 = vadd.f32 %v4314, %v3619
        %v4321 = vadd.f32 %v4315, %v3620
        %v4322 = vadd.f32 %v4316, %v3621
        %v4323 = vadd.f32 %v4317, %v3622
        %v4324 = vadd.f32 %v4318, %v3623
        %v4325 = vadd.f32 %v4319, %v3624
        %v4326 = vmul.f32 %v4320, 0.70710677
        %v4327 = vmul.f32 %v4321, 0.70710677
        %v4328 = vmul.f32 %v4322, 0.70710677
        %v4329 = vmul.f32 %v4323, 0.70710677
        %v4330 = vmul.f32 %v4324, 0.70710677
        %v4331 = vmul.f32 %v4325, 0.70710677
        %v4332 = vld [vmem:[#allocation18] sm:$0xff]
        %v4333 = vld [vmem:[#allocation18 + $0x8] sm:$0xff]
        %v4334 = vld [vmem:[#allocation18 + $0x10] sm:$0xff]
        %v4335 = vld [vmem:[#allocation18 + $0x18] sm:$0xff]
        %v4336 = vld [vmem:[#allocation18 + $0x20] sm:$0xff]
        %v4337 = vld [vmem:[#allocation18 + $0x28] sm:$0xff]
        %v4338 = vld [vmem:[#allocation18 + $0x30] sm:$0xff]
        %v4339 = vld [vmem:[#allocation18 + $0x38] sm:$0xff]
        %v4340 = vld [vmem:[#allocation18 + $0x40] sm:$0xff]
        %v4341 = vld [vmem:[#allocation18 + $0x48] sm:$0xff]
        %v4342 = vld [vmem:[#allocation18 + $0x50] sm:$0xff]
        %v4343 = vld [vmem:[#allocation18 + $0x58] sm:$0xff]
        %v4344 = vld [vmem:[#allocation18 + $0x60] sm:$0xff]
        %v4345 = vld [vmem:[#allocation18 + $0x68] sm:$0xff]
        %v4346 = vld [vmem:[#allocation18 + $0x70] sm:$0xff]
        %v4347 = vld [vmem:[#allocation18 + $0x78] sm:$0xff]
        %v4348 = vld [vmem:[#allocation20] sm:$0x1]
        %v4350 = vlaneseq
        %v4351 = vshrl.u32 %v4350, 7
        %v4352 = vsub.s32 0, %v4351
        %v4353 = vrot.slane %v4348, %v4352
        %4355 = vmatprep.subr.mxu0 0.0
        %4356 = vmatpush1.msra.mxu0 %v4332
        %4357 = vmatprep.subr.mxu0 0.0
        %4358 = vmatpush1.msra.mxu0 %v4333
        %4359 = vmatprep.subr.mxu0 0.0
        %4360 = vmatpush1.msra.mxu0 %v4334
        %4361 = vmatprep.subr.mxu0 0.0
        %4362 = vmatpush1.msra.mxu0 %v4335
        %4363 = vmatprep.subr.mxu0 0.0
        %4364 = vmatpush1.msra.mxu0 %v4336
        %4365 = vmatprep.subr.mxu0 0.0
        %4366 = vmatpush1.msra.mxu0 %v4337
        %4367 = vmatprep.subr.mxu0 0.0
        %4368 = vmatpush1.msra.mxu0 %v4338
        %4369 = vmatprep.subr.mxu0 0.0
        %4370 = vmatpush1.msra.mxu0 %v4339
        %4371 = vmatprep.subr.mxu0 0.0
        %4372 = vmatpush1.msra.mxu0 %v4340
        %4373 = vmatprep.subr.mxu0 0.0
        %4374 = vmatpush1.msra.mxu0 %v4341
        %4375 = vmatprep.subr.mxu0 0.0
        %4376 = vmatpush1.msra.mxu0 %v4342
        %4377 = vmatprep.subr.mxu0 0.0
        %4378 = vmatpush1.msra.mxu0 %v4343
        %4379 = vmatprep.subr.mxu0 0.0
        %4380 = vmatpush1.msra.mxu0 %v4344
        %4381 = vmatprep.subr.mxu0 0.0
        %4382 = vmatpush1.msra.mxu0 %v4345
        %4383 = vmatprep.subr.mxu0 0.0
        %4384 = vmatpush1.msra.mxu0 %v4346
        %4385 = vmatprep.subr.mxu0 0.0
        %4386 = vmatpush1.msra.mxu0 %v4347
        %4387 = vmatprep.subr.mxu0 0.0
        %4388 = vmatpush1.msra.mxu0 0.0
        %4389 = vmatprep.subr.mxu0 0.0
        %4390 = vmatpush1.msra.mxu0 0.0
        %4391 = vmatprep.subr.mxu0 0.0
        %4392 = vmatpush1.msra.mxu0 0.0
        %4393 = vmatprep.subr.mxu0 0.0
        %4394 = vmatpush1.msra.mxu0 0.0
        %4395 = vmatprep.subr.mxu0 0.0
        %4396 = vmatpush1.msra.mxu0 0.0
        %4397 = vmatprep.subr.mxu0 0.0
        %4398 = vmatpush1.msra.mxu0 0.0
        %4399 = vmatprep.subr.mxu0 0.0
        %4400 = vmatpush1.msra.mxu0 0.0
        %4401 = vmatprep.subr.mxu0 0.0
        %4402 = vmatpush1.msra.mxu0 0.0
        %4403 = vmatprep.subr.mxu0 0.0
        %4404 = vmatpush1.msra.mxu0 0.0
        %4405 = vmatprep.subr.mxu0 0.0
        %4406 = vmatpush1.msra.mxu0 0.0
        %4407 = vmatprep.subr.mxu0 0.0
        %4408 = vmatpush1.msra.mxu0 0.0
        %4409 = vmatprep.subr.mxu0 0.0
        %4410 = vmatpush1.msra.mxu0 0.0
        %4411 = vmatprep.subr.mxu0 0.0
        %4412 = vmatpush1.msra.mxu0 0.0
        %4413 = vmatprep.subr.mxu0 0.0
        %4414 = vmatpush1.msra.mxu0 0.0
        %4415 = vmatprep.subr.mxu0 0.0
        %4416 = vmatpush1.msra.mxu0 0.0
        %4417 = vmatprep.subr.mxu0 0.0
        %4418 = vmatpush1.msra.mxu0 0.0
        %4419 = vmatprep.mubr.f32.mxu0 0.0
        %4420 = vmatmul.mubr.f32.gmra.mrb[0].mxu0 %v4326
        %v4421 = vpop.f32.mrb[0].mxu0
        %v4422 = vadd.f32 %v4353, %v4421
        %v4423 = vpop.f32.mrb[0].mxu0
        %4424 = vmatprep.mubr.f32.mxu0 0.0
        %4425 = vmatmul.mubr.f32.gmra.mrb[0].mxu0 %v4327
        %v4426 = vpop.f32.mrb[0].mxu0
        %v4427 = vadd.f32 %v4353, %v4426
        %v4428 = vpop.f32.mrb[0].mxu0
        %4429 = vmatprep.mubr.f32.mxu0 0.0
        %4430 = vmatmul.mubr.f32.gmra.mrb[0].mxu0 %v4328
        %v4431 = vpop.f32.mrb[0].mxu0
        %v4432 = vadd.f32 %v4353, %v4431
        %v4433 = vpop.f32.mrb[0].mxu0
        %4434 = vmatprep.mubr.f32.mxu0 0.0
        %4435 = vmatmul.mubr.f32.gmra.mrb[0].mxu0 %v4329
        %v4436 = vpop.f32.mrb[0].mxu0
        %v4437 = vadd.f32 %v4353, %v4436
        %v4438 = vpop.f32.mrb[0].mxu0
        %4439 = vmatprep.mubr.f32.mxu0 0.0
        %4440 = vmatmul.mubr.f32.gmra.mrb[0].mxu0 %v4330
        %v4441 = vpop.f32.mrb[0].mxu0
        %v4442 = vadd.f32 %v4353, %v4441
        %v4443 = vpop.f32.mrb[0].mxu0
        %4444 = vmatprep.mubr.f32.mxu0 0.0
        %4445 = vmatmul.mubr.f32.gmra.mrb[0].mxu0 %v4331
        %v4446 = vpop.f32.mrb[0].mxu0
        %v4447 = vadd.f32 %v4353, %v4446
        %v4448 = vpop.f32.mrb[0].mxu0
        %4449 = vdwg.mxu0
        %v4450 = vmul.f32 %v4422, 0.5
        %v4451 = vmul.f32 %v4427, 0.5
        %v4452 = vmul.f32 %v4432, 0.5
        %v4453 = vmul.f32 %v4437, 0.5
        %v4454 = vmul.f32 %v4442, 0.5
        %v4455 = vmul.f32 %v4447, 0.5
        %v4456 = vtanh.pop %v4450
        %v4457 = vtanh.pop %v4451
        %v4458 = vtanh.pop %v4452
        %v4459 = vtanh.pop %v4453
        %v4460 = vtanh.pop %v4454
        %v4461 = vtanh.pop %v4455
        %v4462 = vmul.f32 %v4456, 0.5
        %v4463 = vmul.f32 %v4457, 0.5
        %v4464 = vmul.f32 %v4458, 0.5
        %v4465 = vmul.f32 %v4459, 0.5
        %v4466 = vmul.f32 %v4460, 0.5
        %v4467 = vmul.f32 %v4461, 0.5
        %v4468 = vadd.f32 %v4462, 0.5
        %v4469 = vadd.f32 %v4463, 0.5
        %v4470 = vadd.f32 %v4464, 0.5
        %v4471 = vadd.f32 %v4465, 0.5
        %v4472 = vadd.f32 %v4466, 0.5
        %v4473 = vadd.f32 %v4467, 0.5
        %4474 = vst [vmem:[%s641] sm:$0xff] %v4468
        %4475 = vst [vmem:[%s641 + $0x8] sm:$0xff] %v4469
        %4476 = vst [vmem:[%s641 + $0x10] sm:$0xff] %v4470
        %4477 = vst [vmem:[%s641 + $0x18] sm:$0xff] %v4471
        %4478 = vst [vmem:[%s641 + $0x20] sm:$0xff] %v4472
        %4479 = vst [vmem:[%s641 + $0x28] sm:$0xff] %v4473
        %s4480 = sand.u32 %s321, 1
        %s4481 = scalar_lea.sflag [#allocation5], %s4480
        %s4482 = sand.u32 %s321, 1
        %s4483 = smul.addr %s4482, 48
        %s4484 = scalar_lea.vmem [#allocation21], %s4483
        // Predicated region
        $region149: #{tpu_custom_call.1} parent=63 // pred_check
          %p4485 = pneg %p331
        $region150: #{tpu_custom_call.1} parent=63 // pred_check_branch
          %4487 = sbr.rel (%p4485) target = $region152
        $region151: #{tpu_custom_call.1} parent=63 // pred_region
          %s4488 = smul.u32 6, %s40
          %s4490 = ssub.s32 768, 768
          %4491 = vsyncadd %s4481, %s4490
          %s4492 = smul.addr %s39, 6
          %s4493 = sadd.s32 %s4488, %s4492
          %s4494 = smul.addr %s4493, 128
          %s4495 = scalar_lea.hbm %s11, %s4494
          %s4496 = sshll.u32 %s4484, 4
          %s4497 = int_to_ptr.vmem [resolvable:$true] %s4496
          %4502 = dma.vmem_to_hbm [thread:$0]  %s4497, 768, %s4495, %s4481, 128, 128, 8
        $region152: #{tpu_custom_call.1} parent=63 // pred_fallthru
          _
      $region64: #{tpu_custom_call.1} parent=5 // pred_fallthru
        _
      %p4503 = scmp.le.s32.totalorder 2, %s30
      // Predicated region
      $region153: #{tpu_custom_call.1} parent=5 // pred_check
        %p4504 = pneg %p4503
      $region154: #{tpu_custom_call.1} parent=5 // pred_check_branch
        %4506 = sbr.rel (%p4504) target = $region156
      $region155: #{tpu_custom_call.1} parent=5 // pred_region
        %s4507 = ssub.s32 %s30, 2
        // Predicated region
        $region157: #{tpu_custom_call.1} parent=155 // pred_check
          %p4508 = pneg %p337
        $region158: #{tpu_custom_call.1} parent=155 // pred_check_branch
          %4510 = sbr.rel (%p4508) target = $region160
        $region159: #{tpu_custom_call.1} parent=155 // pred_region
          %s4511 = sand.u32 %s322, 1
          %s4512 = scalar_lea.sflag [#allocation5], %s4511
          %s4513 = sand.u32 %s322, 1
          %s4514 = smul.addr %s4513, 48
          %s4515 = scalar_lea.vmem [#allocation21], %s4514
          %4516 = dma.done %s4512, 768
        $region160: #{tpu_custom_call.1} parent=155 // pred_fallthru
          _
      $region156: #{tpu_custom_call.1} parent=5 // pred_fallthru
        _
    $region6: #{tpu_custom_call.1} parent=1 // loop_footer
      %s34 = sadd.s32 1, %s30
    $region7: #{tpu_custom_call.1} parent=1 // loop_footer_branch
      %29 = sbr.rel target = $region3
    $region8: #{tpu_custom_call.1} parent=1 // loop_exit
      _
    %4517 = vsyncpa [#allocation4], 1
    %s4518 = scalar_lea.sflag [#allocation4], 1
    %4519 = vsyncpa %s4518, 1
    %4520 = vsyncpa [#allocation7], 1
    %s4521 = scalar_lea.sflag [#allocation7], 1
    %4522 = vsyncpa %s4521, 1
    %4523 = vsyncpa [#allocation10], 1
    %4524 = vsyncpa [#allocation13], 1
    %4525 = vsyncpa [#allocation16], 1
    %4526 = vsyncpa [#allocation19], 1
    %4527 = vsyncpa [#allocation5], 1
    %s4528 = scalar_lea.sflag [#allocation5], 1
    %4529 = vsyncpa %s4528, 1

</llo_original>
